<compile_context>
chip_gen: v7x
topology: tpu7x:2x2x1
jax: 0.10.0
libtpu: 0.0.40
codegen_flags: <defaults>
</compile_context>

<pallas_src>
import functools

import jax
import jax.numpy as jnp
from jax import lax
from jax.experimental import pallas as pl
from jax.experimental.pallas import tpu as pltpu

_LANES = 128   # pad channel dims to the TPU lane width (lane-dense compute)
_LPAD = 8      # sublane-aligned left halo of the hidden scratch along W


def _round_up(x, m):
    return (x + m - 1) // m * m


def _pad_axis(a, axis, target):
    pad = target - a.shape[axis]
    if pad == 0:
        return a
    widths = [(0, 0)] * a.ndim
    widths[axis] = (0, pad)
    return jnp.pad(a, widths)


# ---------------------------------------------------------------------------
# Fused kernel
# ---------------------------------------------------------------------------
def _fused_block_kernel(*refs, has_expand, stride, shortcut, cin, cout,
                        out_h, out_w):
    if has_expand:
        (x_ref, w1_ref, s1_ref, b1_ref, wdw_ref, s2_ref, b2_ref,
         w3_ref, s3_ref, b3_ref, o_ref, hid_ref) = refs
    else:
        (x_ref, wdw_ref, s2_ref, b2_ref,
         w3_ref, s3_ref, b3_ref, o_ref, hid_ref) = refs

    h_in, w_in = x_ref.shape[1], x_ref.shape[2]
    cpad = hid_ref.shape[-1]

    # Zero the scratch: the untouched border around the hidden activation is
    # the depthwise conv's zero padding (padding=1).
    hid_ref[...] = jnp.zeros_like(hid_ref)

    x = x_ref[0]                                        # (H, W, Cin)  f32

    # ---- stage 1: 1x1 expand conv + BN + ReLU6 (MXU, bf16 in / f32 acc) ----
    if has_expand:
        x2d = x.reshape(h_in * w_in, cin).astype(jnp.bfloat16)
        hcols = jnp.dot(x2d, w1_ref[...], preferred_element_type=jnp.float32)
        hcols = jnp.clip(hcols * s1_ref[...] + b1_ref[...], 0.0, 6.0)
        hid_ref[pl.ds(1, h_in), pl.ds(_LPAD, w_in), :] = (
            hcols.reshape(h_in, w_in, cpad))
    else:
        # No expansion layer: depthwise runs directly on the raw input.
        hid_ref[pl.ds(1, h_in), pl.ds(_LPAD, w_in), pl.ds(0, cin)] = x

    # ---- stage 2: 3x3 depthwise conv + BN + ReLU6 (VPU, 9 shifted MACs) ----
    hp = hid_ref[...]                                   # (H+2, W+LPAD+1, Cpad)
    wdw = wdw_ref[...]                                  # (9, Cpad)
    acc = jnp.zeros((out_h, out_w, cpad), jnp.float32)
    for kh in range(3):
        for kw in range(3):
            r0 = kh
            c0 = _LPAD - 1 + kw
            if stride == 1:
                patch = lax.slice(hp, (r0, c0, 0),
                                  (r0 + out_h, c0 + out_w, cpad))
            else:
                # TODO(synk): strided sublane slice may lower to XLU copies;
                # a per-row gather would be cheaper for stride > 1.
                patch = lax.slice(
                    hp, (r0, c0, 0),
                    (r0 + stride * (out_h - 1) + 1,
                     c0 + stride * (out_w - 1) + 1, cpad),
                    (stride, stride, 1))
            tap = lax.slice(wdw, (kh * 3 + kw, 0), (kh * 3 + kw + 1, cpad))
            acc = acc + patch * tap
    ydw = jnp.clip(acc * s2_ref[...] + b2_ref[...], 0.0, 6.0)

    # ---- stage 3: 1x1 projection conv + BN (+ residual), no activation -----
    y2d = ydw.reshape(out_h * out_w, cpad).astype(jnp.bfloat16)
    out = jnp.dot(y2d, w3_ref[...], preferred_element_type=jnp.float32)
    out = out * s3_ref[...] + b3_ref[...]
    if shortcut:
        out = out + x.reshape(h_in * w_in, cin)        # cin == cout, stride == 1
    o_ref[0] = out.reshape(out_h, out_w, cout).astype(o_ref.dtype)


# ---------------------------------------------------------------------------
# pallas_call wrapper
# ---------------------------------------------------------------------------
def _fused_call(x_nhwc, weights, *, stride, shortcut, has_expand, cout,
                hidden_pad):
    n, h, w, cin = x_nhwc.shape
    out_h = (h - 1) // stride + 1
    out_w = (w - 1) // stride + 1

    kern = functools.partial(
        _fused_block_kernel, has_expand=has_expand, stride=stride,
        shortcut=shortcut, cin=cin, cout=cout, out_h=out_h, out_w=out_w)

    in_specs = [pl.BlockSpec((1, h, w, cin), lambda b: (b, 0, 0, 0))]
    for arr in weights:
        in_specs.append(pl.BlockSpec(arr.shape, lambda b: (0, 0)))

    return pl.pallas_call(
        kern,
        out_shape=jax.ShapeDtypeStruct((n, out_h, out_w, cout), jnp.float32),
        grid=(n,),
        in_specs=in_specs,
        out_specs=pl.BlockSpec((1, out_h, out_w, cout),
                               lambda b: (b, 0, 0, 0)),
        scratch_shapes=[
            pltpu.VMEM((h + 2, w + _LPAD + 1, hidden_pad), jnp.float32)],
        compiler_params=pltpu.CompilerParams(
            dimension_semantics=("parallel",)),
    )(x_nhwc, *weights)


# ---------------------------------------------------------------------------
# Parameters (deterministic; eval-mode BN folded into scale/bias)
# ---------------------------------------------------------------------------
def _fold_bn(gamma, beta, mean, var, eps=1e-5):
    scale = gamma / jnp.sqrt(var + eps)
    return scale, beta - mean * scale


def _bn_params(keys, c):
    gamma = 1.0 + 0.1 * jax.random.normal(keys[0], (c,), jnp.float32)
    beta = 0.1 * jax.random.normal(keys[1], (c,), jnp.float32)
    mean = 0.1 * jax.random.normal(keys[2], (c,), jnp.float32)
    var = 0.5 + jax.random.uniform(keys[3], (c,), jnp.float32)
    return _fold_bn(gamma, beta, mean, var)


def init_params(key, in_channel, out_channel, expand_ratio):
    hidden = in_channel * expand_ratio
    ks = jax.random.split(key, 15)
    p = {}
    if expand_ratio != 1:
        p["w_expand"] = 0.2 * jax.random.normal(
            ks[0], (hidden, in_channel, 1, 1), jnp.float32)
        p["s1"], p["b1"] = _bn_params(ks[1:5], hidden)
    p["w_dw"] = 0.2 * jax.random.normal(ks[5], (hidden, 1, 3, 3), jnp.float32)
    p["s2"], p["b2"] = _bn_params(ks[6:10], hidden)
    p["w_proj"] = 0.2 * jax.random.normal(
        ks[10], (out_channel, hidden, 1, 1), jnp.float32)
    p["s3"], p["b3"] = _bn_params(ks[11:15], out_channel)
    return p


# ---------------------------------------------------------------------------
# Forward pass (Pallas)
# ---------------------------------------------------------------------------
def inverted_resnet_forward(x_nchw, p, *, stride, expand_ratio, in_channel,
                            out_channel):
    shortcut = (stride == 1) and (in_channel == out_channel)
    has_expand = expand_ratio != 1
    hidden = in_channel * expand_ratio
    hidden_pad = _round_up(hidden, _LANES)

    # Model-boundary layout change only (kernel computes in channels-last).
    x = jnp.transpose(x_nchw, (0, 2, 3, 1)).astype(jnp.float32)

    weights = []
    if has_expand:
        w1 = _pad_axis(p["w_expand"].reshape(hidden, in_channel).T, 1, hidden_pad)
        weights += [w1.astype(jnp.bfloat16),
                    _pad_axis(p["s1"].reshape(1, hidden), 1, hidden_pad),
                    _pad_axis(p["b1"].reshape(1, hidden), 1, hidden_pad)]
    wdw = jnp.transpose(p["w_dw"].reshape(hidden, 3, 3), (1, 2, 0)).reshape(9, hidden)
    weights += [_pad_axis(wdw, 1, hidden_pad),
                _pad_axis(p["s2"].reshape(1, hidden), 1, hidden_pad),
                _pad_axis(p["b2"].reshape(1, hidden), 1, hidden_pad)]
    w3 = _pad_axis(p["w_proj"].reshape(out_channel, hidden).T, 0, hidden_pad)
    weights += [w3.astype(jnp.bfloat16),
                p["s3"].reshape(1, out_channel),
                p["b3"].reshape(1, out_channel)]

    out_nhwc = _fused_call(x, weights, stride=stride, shortcut=shortcut,
                           has_expand=has_expand, cout=out_channel,
                           hidden_pad=hidden_pad)
    return jnp.transpose(out_nhwc, (0, 3, 1, 2))        # back to NCHW


# ---------------------------------------------------------------------------
# Pure-JAX reference (for correctness check)
# ---------------------------------------------------------------------------
def reference_forward(x, p, *, stride, expand_ratio, in_channel, out_channel):
    hidden = in_channel * expand_ratio
    dn = ("NCHW", "OIHW", "NCHW")
    y = x
    if expand_ratio != 1:
        y = lax.conv_general_dilated(y, p["w_expand"], (1, 1), "VALID",
                                     dimension_numbers=dn,
                                     precision=lax.Precision.HIGHEST)
        y = jnp.clip(y * p["s1"][None, :, None, None]
                     + p["b1"][None, :, None, None], 0.0, 6.0)
    y = lax.conv_general_dilated(y, p["w_dw"], (stride, stride), ((1, 1), (1, 1)),
                                 dimension_numbers=dn, feature_group_count=hidden,
                                 precision=lax.Precision.HIGHEST)
    y = jnp.clip(y * p["s2"][None, :, None, None]
                 + p["b2"][None, :, None, None], 0.0, 6.0)
    y = lax.conv_general_dilated(y, p["w_proj"], (1, 1), "VALID",
                                 dimension_numbers=dn,
                                 precision=lax.Precision.HIGHEST)
    y = y * p["s3"][None, :, None, None] + p["b3"][None, :, None, None]
    if stride == 1 and in_channel == out_channel:
        y = x + y
    return y


# ---------------------------------------------------------------------------
if __name__ == "__main__":
    key = jax.random.PRNGKey(0)
    k_x, k_p1, k_p2 = jax.random.split(key, 3)
    N, H, W = 2, 16, 16

    # Config A: expand_ratio=2, stride=1, cin == cout -> shortcut branch.
    CIN_A, COUT_A, STRIDE_A, EXPAND_A = 4, 4, 1, 2
    x_a = jax.random.normal(k_x, (N, CIN_A, H, W), jnp.float32)
    p_a = init_params(k_p1, CIN_A, COUT_A, EXPAND_A)
    y_a = jax.block_until_ready(
        inverted_resnet_forward(x_a, p_a, stride=STRIDE_A, expand_ratio=EXPAND_A,
                                in_channel=CIN_A, out_channel=COUT_A))
    ref_a = reference_forward(x_a, p_a, stride=STRIDE_A, expand_ratio=EXPAND_A,
                              in_channel=CIN_A, out_channel=COUT_A)
    assert y_a.shape == (N, COUT_A, H, W), y_a.shape
    assert jnp.allclose(y_a, ref_a, rtol=2e-2, atol=2e-2), \
        float(jnp.max(jnp.abs(y_a - ref_a)))

    # Config B: expand_ratio=1 (no expansion conv), cin != cout -> no shortcut.
    CIN_B, COUT_B, STRIDE_B, EXPAND_B = 4, 8, 1, 1
    x_b = jax.random.normal(k_x, (N, CIN_B, H, W), jnp.float32)
    p_b = init_params(k_p2, CIN_B, COUT_B, EXPAND_B)
    y_b = jax.block_until_ready(
        inverted_resnet_forward(x_b, p_b, stride=STRIDE_B, expand_ratio=EXPAND_B,
                                in_channel=CIN_B, out_channel=COUT_B))
    ref_b = reference_forward(x_b, p_b, stride=STRIDE_B, expand_ratio=EXPAND_B,
                              in_channel=CIN_B, out_channel=COUT_B)
    assert y_b.shape == (N, COUT_B, H, W), y_b.shape
    assert jnp.allclose(y_b, ref_b, rtol=2e-2, atol=2e-2), \
        float(jnp.max(jnp.abs(y_b - ref_b)))

    print("KERNEL_OK")
</pallas_src>

<mosaic_0001>
module attributes {stable_mosaic.version = 11 : i64} {
  func.func @_fused_block_kernel(%arg0: i32, %arg1: memref<1x16x16x4xf32, #tpu.memory_space<vmem>>, %arg2: memref<4x128xbf16, #tpu.memory_space<vmem>>, %arg3: memref<1x128xf32, #tpu.memory_space<vmem>>, %arg4: memref<1x128xf32, #tpu.memory_space<vmem>>, %arg5: memref<9x128xf32, #tpu.memory_space<vmem>>, %arg6: memref<1x128xf32, #tpu.memory_space<vmem>>, %arg7: memref<1x128xf32, #tpu.memory_space<vmem>>, %arg8: memref<128x4xbf16, #tpu.memory_space<vmem>>, %arg9: memref<1x4xf32, #tpu.memory_space<vmem>>, %arg10: memref<1x4xf32, #tpu.memory_space<vmem>>, %arg11: memref<1x16x16x4xf32, #tpu.memory_space<vmem>>, %arg12: memref<18x25x128xf32, #tpu.memory_space<vmem>>) attributes {dimension_semantics = [#tpu.dimension_semantics<parallel>], iteration_bounds = array<i64: 2>, scalar_prefetch = 0 : i64, scratch_operands = 1 : i64, tpu.core_type = #tpu.core_type<tc>, window_params = [{transform_indices = @transform_0, window_bounds = array<i64: 1, 16, 16, 4>}, {pipeline_mode = #tpu.pipeline_mode<synchronous>, transform_indices = @transform_1, window_bounds = array<i64: 4, 128>}, {pipeline_mode = #tpu.pipeline_mode<synchronous>, transform_indices = @transform_2, window_bounds = array<i64: 1, 128>}, {pipeline_mode = #tpu.pipeline_mode<synchronous>, transform_indices = @transform_3, window_bounds = array<i64: 1, 128>}, {pipeline_mode = #tpu.pipeline_mode<synchronous>, transform_indices = @transform_4, window_bounds = array<i64: 9, 128>}, {pipeline_mode = #tpu.pipeline_mode<synchronous>, transform_indices = @transform_5, window_bounds = array<i64: 1, 128>}, {pipeline_mode = #tpu.pipeline_mode<synchronous>, transform_indices = @transform_6, window_bounds = array<i64: 1, 128>}, {pipeline_mode = #tpu.pipeline_mode<synchronous>, transform_indices = @transform_7, window_bounds = array<i64: 128, 4>}, {pipeline_mode = #tpu.pipeline_mode<synchronous>, transform_indices = @transform_8, window_bounds = array<i64: 1, 4>}, {pipeline_mode = #tpu.pipeline_mode<synchronous>, transform_indices = @transform_9, window_bounds = array<i64: 1, 4>}, {transform_indices = @transform_10, window_bounds = array<i64: 1, 16, 16, 4>}]} {
    %cst = arith.constant 0.000000e+00 : f32
    %0 = vector.broadcast %cst : f32 to vector<18x25x128xf32>
    %c0 = arith.constant 0 : index
    %c0_0 = arith.constant 0 : index
    %c0_1 = arith.constant 0 : index
    %1 = vector.load %arg12[%c0, %c0_0, %c0_1] : memref<18x25x128xf32, #tpu.memory_space<vmem>>, vector<18x25x128xf32>
    tpu.vector_store %arg12[%c0, %c0_0, %c0_1], %0 {strides = array<i32>} : memref<18x25x128xf32, #tpu.memory_space<vmem>>, vector<18x25x128xf32>,
    %c0_2 = arith.constant 0 : index
    %c0_3 = arith.constant 0 : index
    %c0_4 = arith.constant 0 : index
    %c0_5 = arith.constant 0 : index
    %2 = vector.load %arg1[%c0_2, %c0_3, %c0_4, %c0_5] : memref<1x16x16x4xf32, #tpu.memory_space<vmem>>, vector<1x16x16x4xf32>
    %3 = vector.shape_cast %2 : vector<1x16x16x4xf32> to vector<16x16x4xf32>
    %4 = vector.shape_cast %3 : vector<16x16x4xf32> to vector<256x4xf32>
    %5 = arith.truncf %4 : vector<256x4xf32> to vector<256x4xbf16>
    %c0_6 = arith.constant 0 : index
    %c0_7 = arith.constant 0 : index
    %6 = vector.load %arg2[%c0_6, %c0_7] : memref<4x128xbf16, #tpu.memory_space<vmem>>, vector<4x128xbf16>
    %cst_8 = arith.constant dense<0.000000e+00> : vector<256x128xf32>
    %7 = tpu.matmul %5, %6, %cst_8 {dimension_numbers = #tpu.dot_dimension_numbers<[1], [0], [0], [1], [0, 0, 1, 1], [], []>} : vector<256x4xbf16>, vector<4x128xbf16>, vector<256x128xf32> -> vector<256x128xf32>
    %c0_9 = arith.constant 0 : index
    %c0_10 = arith.constant 0 : index
    %8 = vector.load %arg3[%c0_9, %c0_10] : memref<1x128xf32, #tpu.memory_space<vmem>>, vector<1x128xf32>
    %9 = vector.broadcast %8 : vector<1x128xf32> to vector<256x128xf32>
    %10 = arith.mulf %7, %9 : vector<256x128xf32>
    %c0_11 = arith.constant 0 : index
    %c0_12 = arith.constant 0 : index
    %11 = vector.load %arg4[%c0_11, %c0_12] : memref<1x128xf32, #tpu.memory_space<vmem>>, vector<1x128xf32>
    %12 = vector.broadcast %11 : vector<1x128xf32> to vector<256x128xf32>
    %13 = arith.addf %10, %12 : vector<256x128xf32>
    %cst_13 = arith.constant 0.000000e+00 : f32
    %cst_14 = arith.constant 6.000000e+00 : f32
    %14 = vector.broadcast %cst_13 : f32 to vector<256x128xf32>
    %15 = arith.maximumf %14, %13 : vector<256x128xf32>
    %16 = vector.broadcast %cst_14 : f32 to vector<256x128xf32>
    %17 = arith.minimumf %16, %15 : vector<256x128xf32>
    %18 = vector.shape_cast %17 : vector<256x128xf32> to vector<16x16x128xf32>
    %c1 = arith.constant 1 : index
    %c8 = arith.constant 8 : index
    %c0_15 = arith.constant 0 : index
    %19 = vector.load %arg12[%c1, %c8, %c0_15] : memref<18x25x128xf32, #tpu.memory_space<vmem>>, vector<16x16x128xf32>
    tpu.vector_store %arg12[%c1, %c8, %c0_15], %18 {strides = array<i32>} : memref<18x25x128xf32, #tpu.memory_space<vmem>>, vector<16x16x128xf32>,
    %c0_16 = arith.constant 0 : index
    %c0_17 = arith.constant 0 : index
    %c0_18 = arith.constant 0 : index
    %20 = vector.load %arg12[%c0_16, %c0_17, %c0_18] : memref<18x25x128xf32, #tpu.memory_space<vmem>>, vector<18x25x128xf32>
    %c0_19 = arith.constant 0 : index
    %c0_20 = arith.constant 0 : index
    %21 = vector.load %arg5[%c0_19, %c0_20] : memref<9x128xf32, #tpu.memory_space<vmem>>, vector<9x128xf32>
    %cst_21 = arith.constant 0.000000e+00 : f32
    %22 = vector.broadcast %cst_21 : f32 to vector<16x16x128xf32>
    %23 = vector.extract_strided_slice %20 {offsets = [0, 7, 0], sizes = [16, 16, 128], strides = [1, 1, 1]} : vector<18x25x128xf32> to vector<16x16x128xf32>
    %24 = vector.extract_strided_slice %21 {offsets = [0, 0], sizes = [1, 128], strides = [1, 1]} : vector<9x128xf32> to vector<1x128xf32>
    %25 = vector.shape_cast %24 : vector<1x128xf32> to vector<1x1x128xf32>
    %26 = vector.broadcast %25 : vector<1x1x128xf32> to vector<16x16x128xf32>
    %27 = arith.mulf %23, %26 : vector<16x16x128xf32>
    %28 = arith.addf %22, %27 : vector<16x16x128xf32>
    %29 = vector.extract_strided_slice %20 {offsets = [0, 8, 0], sizes = [16, 16, 128], strides = [1, 1, 1]} : vector<18x25x128xf32> to vector<16x16x128xf32>
    %30 = vector.extract_strided_slice %21 {offsets = [1, 0], sizes = [1, 128], strides = [1, 1]} : vector<9x128xf32> to vector<1x128xf32>
    %31 = vector.shape_cast %30 : vector<1x128xf32> to vector<1x1x128xf32>
    %32 = vector.broadcast %31 : vector<1x1x128xf32> to vector<16x16x128xf32>
    %33 = arith.mulf %29, %32 : vector<16x16x128xf32>
    %34 = arith.addf %28, %33 : vector<16x16x128xf32>
    %35 = vector.extract_strided_slice %20 {offsets = [0, 9, 0], sizes = [16, 16, 128], strides = [1, 1, 1]} : vector<18x25x128xf32> to vector<16x16x128xf32>
    %36 = vector.extract_strided_slice %21 {offsets = [2, 0], sizes = [1, 128], strides = [1, 1]} : vector<9x128xf32> to vector<1x128xf32>
    %37 = vector.shape_cast %36 : vector<1x128xf32> to vector<1x1x128xf32>
    %38 = vector.broadcast %37 : vector<1x1x128xf32> to vector<16x16x128xf32>
    %39 = arith.mulf %35, %38 : vector<16x16x128xf32>
    %40 = arith.addf %34, %39 : vector<16x16x128xf32>
    %41 = vector.extract_strided_slice %20 {offsets = [1, 7, 0], sizes = [16, 16, 128], strides = [1, 1, 1]} : vector<18x25x128xf32> to vector<16x16x128xf32>
    %42 = vector.extract_strided_slice %21 {offsets = [3, 0], sizes = [1, 128], strides = [1, 1]} : vector<9x128xf32> to vector<1x128xf32>
    %43 = vector.shape_cast %42 : vector<1x128xf32> to vector<1x1x128xf32>
    %44 = vector.broadcast %43 : vector<1x1x128xf32> to vector<16x16x128xf32>
    %45 = arith.mulf %41, %44 : vector<16x16x128xf32>
    %46 = arith.addf %40, %45 : vector<16x16x128xf32>
    %47 = vector.extract_strided_slice %20 {offsets = [1, 8, 0], sizes = [16, 16, 128], strides = [1, 1, 1]} : vector<18x25x128xf32> to vector<16x16x128xf32>
    %48 = vector.extract_strided_slice %21 {offsets = [4, 0], sizes = [1, 128], strides = [1, 1]} : vector<9x128xf32> to vector<1x128xf32>
    %49 = vector.shape_cast %48 : vector<1x128xf32> to vector<1x1x128xf32>
    %50 = vector.broadcast %49 : vector<1x1x128xf32> to vector<16x16x128xf32>
    %51 = arith.mulf %47, %50 : vector<16x16x128xf32>
    %52 = arith.addf %46, %51 : vector<16x16x128xf32>
    %53 = vector.extract_strided_slice %20 {offsets = [1, 9, 0], sizes = [16, 16, 128], strides = [1, 1, 1]} : vector<18x25x128xf32> to vector<16x16x128xf32>
    %54 = vector.extract_strided_slice %21 {offsets = [5, 0], sizes = [1, 128], strides = [1, 1]} : vector<9x128xf32> to vector<1x128xf32>
    %55 = vector.shape_cast %54 : vector<1x128xf32> to vector<1x1x128xf32>
    %56 = vector.broadcast %55 : vector<1x1x128xf32> to vector<16x16x128xf32>
    %57 = arith.mulf %53, %56 : vector<16x16x128xf32>
    %58 = arith.addf %52, %57 : vector<16x16x128xf32>
    %59 = vector.extract_strided_slice %20 {offsets = [2, 7, 0], sizes = [16, 16, 128], strides = [1, 1, 1]} : vector<18x25x128xf32> to vector<16x16x128xf32>
    %60 = vector.extract_strided_slice %21 {offsets = [6, 0], sizes = [1, 128], strides = [1, 1]} : vector<9x128xf32> to vector<1x128xf32>
    %61 = vector.shape_cast %60 : vector<1x128xf32> to vector<1x1x128xf32>
    %62 = vector.broadcast %61 : vector<1x1x128xf32> to vector<16x16x128xf32>
    %63 = arith.mulf %59, %62 : vector<16x16x128xf32>
    %64 = arith.addf %58, %63 : vector<16x16x128xf32>
    %65 = vector.extract_strided_slice %20 {offsets = [2, 8, 0], sizes = [16, 16, 128], strides = [1, 1, 1]} : vector<18x25x128xf32> to vector<16x16x128xf32>
    %66 = vector.extract_strided_slice %21 {offsets = [7, 0], sizes = [1, 128], strides = [1, 1]} : vector<9x128xf32> to vector<1x128xf32>
    %67 = vector.shape_cast %66 : vector<1x128xf32> to vector<1x1x128xf32>
    %68 = vector.broadcast %67 : vector<1x1x128xf32> to vector<16x16x128xf32>
    %69 = arith.mulf %65, %68 : vector<16x16x128xf32>
    %70 = arith.addf %64, %69 : vector<16x16x128xf32>
    %71 = vector.extract_strided_slice %20 {offsets = [2, 9, 0], sizes = [16, 16, 128], strides = [1, 1, 1]} : vector<18x25x128xf32> to vector<16x16x128xf32>
    %72 = vector.extract_strided_slice %21 {offsets = [8, 0], sizes = [1, 128], strides = [1, 1]} : vector<9x128xf32> to vector<1x128xf32>
    %73 = vector.shape_cast %72 : vector<1x128xf32> to vector<1x1x128xf32>
    %74 = vector.broadcast %73 : vector<1x1x128xf32> to vector<16x16x128xf32>
    %75 = arith.mulf %71, %74 : vector<16x16x128xf32>
    %76 = arith.addf %70, %75 : vector<16x16x128xf32>
    %c0_22 = arith.constant 0 : index
    %c0_23 = arith.constant 0 : index
    %77 = vector.load %arg6[%c0_22, %c0_23] : memref<1x128xf32, #tpu.memory_space<vmem>>, vector<1x128xf32>
    %78 = vector.shape_cast %77 : vector<1x128xf32> to vector<1x1x128xf32>
    %79 = vector.broadcast %78 : vector<1x1x128xf32> to vector<16x16x128xf32>
    %80 = arith.mulf %76, %79 : vector<16x16x128xf32>
    %c0_24 = arith.constant 0 : index
    %c0_25 = arith.constant 0 : index
    %81 = vector.load %arg7[%c0_24, %c0_25] : memref<1x128xf32, #tpu.memory_space<vmem>>, vector<1x128xf32>
    %82 = vector.shape_cast %81 : vector<1x128xf32> to vector<1x1x128xf32>
    %83 = vector.broadcast %82 : vector<1x1x128xf32> to vector<16x16x128xf32>
    %84 = arith.addf %80, %83 : vector<16x16x128xf32>
    %cst_26 = arith.constant 0.000000e+00 : f32
    %cst_27 = arith.constant 6.000000e+00 : f32
    %85 = vector.broadcast %cst_26 : f32 to vector<16x16x128xf32>
    %86 = arith.maximumf %85, %84 : vector<16x16x128xf32>
    %87 = vector.broadcast %cst_27 : f32 to vector<16x16x128xf32>
    %88 = arith.minimumf %87, %86 : vector<16x16x128xf32>
    %89 = vector.shape_cast %88 : vector<16x16x128xf32> to vector<256x128xf32>
    %90 = arith.truncf %89 : vector<256x128xf32> to vector<256x128xbf16>
    %c0_28 = arith.constant 0 : index
    %c0_29 = arith.constant 0 : index
    %91 = vector.load %arg8[%c0_28, %c0_29] : memref<128x4xbf16, #tpu.memory_space<vmem>>, vector<128x4xbf16>
    %cst_30 = arith.constant dense<0.000000e+00> : vector<256x4xf32>
    %92 = tpu.matmul %90, %91, %cst_30 {dimension_numbers = #tpu.dot_dimension_numbers<[1], [0], [0], [1], [0, 0, 1, 1], [], []>} : vector<256x128xbf16>, vector<128x4xbf16>, vector<256x4xf32> -> vector<256x4xf32>
    %c0_31 = arith.constant 0 : index
    %c0_32 = arith.constant 0 : index
    %93 = vector.load %arg9[%c0_31, %c0_32] : memref<1x4xf32, #tpu.memory_space<vmem>>, vector<1x4xf32>
    %94 = vector.broadcast %93 : vector<1x4xf32> to vector<256x4xf32>
    %95 = arith.mulf %92, %94 : vector<256x4xf32>
    %c0_33 = arith.constant 0 : index
    %c0_34 = arith.constant 0 : index
    %96 = vector.load %arg10[%c0_33, %c0_34] : memref<1x4xf32, #tpu.memory_space<vmem>>, vector<1x4xf32>
    %97 = vector.broadcast %96 : vector<1x4xf32> to vector<256x4xf32>
    %98 = arith.addf %95, %97 : vector<256x4xf32>
    %99 = vector.shape_cast %3 : vector<16x16x4xf32> to vector<256x4xf32>
    %100 = arith.addf %98, %99 : vector<256x4xf32>
    %101 = vector.shape_cast %100 : vector<256x4xf32> to vector<16x16x4xf32>
    %c0_35 = arith.constant 0 : index
    %c0_36 = arith.constant 0 : index
    %c0_37 = arith.constant 0 : index
    %c0_38 = arith.constant 0 : index
    %102 = vector.load %arg11[%c0_35, %c0_36, %c0_37, %c0_38] : memref<1x16x16x4xf32, #tpu.memory_space<vmem>>, vector<1x16x16x4xf32>
    %103 = vector.shape_cast %102 : vector<1x16x16x4xf32> to vector<16x16x4xf32>
    %104 = vector.shape_cast %101 : vector<16x16x4xf32> to vector<1x16x16x4xf32>
    tpu.vector_store %arg11[%c0_35, %c0_36, %c0_37, %c0_38], %104 {strides = array<i32>} : memref<1x16x16x4xf32, #tpu.memory_space<vmem>>, vector<1x16x16x4xf32>,
    return
  }
  func.func @transform_0(%arg0: i32) -> (i32, i32, i32, i32) {
    %c0_i32 = arith.constant 0 : i32
    %c0_i32_0 = arith.constant 0 : i32
    %c0_i32_1 = arith.constant 0 : i32
    %c0_i32_2 = arith.constant 0 : i32
    return %arg0, %c0_i32, %c0_i32_0, %c0_i32_1 : i32, i32, i32, i32
  }
  func.func @transform_1(%arg0: i32) -> (i32, i32) {
    %c0_i32 = arith.constant 0 : i32
    %c0_i32_0 = arith.constant 0 : i32
    %c0_i32_1 = arith.constant 0 : i32
    return %c0_i32, %c0_i32_0 : i32, i32
  }
  func.func @transform_2(%arg0: i32) -> (i32, i32) {
    %c0_i32 = arith.constant 0 : i32
    %c0_i32_0 = arith.constant 0 : i32
    %c0_i32_1 = arith.constant 0 : i32
    return %c0_i32, %c0_i32_0 : i32, i32
  }
  func.func @transform_3(%arg0: i32) -> (i32, i32) {
    %c0_i32 = arith.constant 0 : i32
    %c0_i32_0 = arith.constant 0 : i32
    %c0_i32_1 = arith.constant 0 : i32
    return %c0_i32, %c0_i32_0 : i32, i32
  }
  func.func @transform_4(%arg0: i32) -> (i32, i32) {
    %c0_i32 = arith.constant 0 : i32
    %c0_i32_0 = arith.constant 0 : i32
    %c0_i32_1 = arith.constant 0 : i32
    return %c0_i32, %c0_i32_0 : i32, i32
  }
  func.func @transform_5(%arg0: i32) -> (i32, i32) {
    %c0_i32 = arith.constant 0 : i32
    %c0_i32_0 = arith.constant 0 : i32
    %c0_i32_1 = arith.constant 0 : i32
    return %c0_i32, %c0_i32_0 : i32, i32
  }
  func.func @transform_6(%arg0: i32) -> (i32, i32) {
    %c0_i32 = arith.constant 0 : i32
    %c0_i32_0 = arith.constant 0 : i32
    %c0_i32_1 = arith.constant 0 : i32
    return %c0_i32, %c0_i32_0 : i32, i32
  }
  func.func @transform_7(%arg0: i32) -> (i32, i32) {
    %c0_i32 = arith.constant 0 : i32
    %c0_i32_0 = arith.constant 0 : i32
    %c0_i32_1 = arith.constant 0 : i32
    return %c0_i32, %c0_i32_0 : i32, i32
  }
  func.func @transform_8(%arg0: i32) -> (i32, i32) {
    %c0_i32 = arith.constant 0 : i32
    %c0_i32_0 = arith.constant 0 : i32
    %c0_i32_1 = arith.constant 0 : i32
    return %c0_i32, %c0_i32_0 : i32, i32
  }
  func.func @transform_9(%arg0: i32) -> (i32, i32) {
    %c0_i32 = arith.constant 0 : i32
    %c0_i32_0 = arith.constant 0 : i32
    %c0_i32_1 = arith.constant 0 : i32
    return %c0_i32, %c0_i32_0 : i32, i32
  }
  func.func @transform_10(%arg0: i32) -> (i32, i32, i32, i32) {
    %c0_i32 = arith.constant 0 : i32
    %c0_i32_0 = arith.constant 0 : i32
    %c0_i32_1 = arith.constant 0 : i32
    %c0_i32_2 = arith.constant 0 : i32
    return %arg0, %c0_i32, %c0_i32_0, %c0_i32_1 : i32, i32, i32, i32
  }
}

</mosaic_0001>

<llo_original>
// kernel: tpu_custom_call.1
$region0: #{tpu_custom_call.1}
  #allocation0 [shape = 'u32[]', space=smem, size = 0x4, offset = 0x4, fixed_abs, tag = 'smem constant byte address 0x4 - core index']
  #allocation1 [shape = 'u32[144,128]{1,0:T(1,128)}', space=vmem, size = 0x12000, scoped, tag = 'internal scratch']
  #allocation2 [shape = 'f32[18,25,128]{2,1,0:T(8,128)}', space=vmem, size = 0x48000, scoped, tag = 'scratch operand']
  %s0 = inlined_call_operand.vmem [shape: f32[2,16,16,4], index: 0, kind: input, shape index: {}]
  %s1 = inlined_call_operand.vmem [shape: bf16[4,128], index: 1, kind: input, shape index: {}]
  %s2 = inlined_call_operand.vmem [shape: f32[1,128], index: 2, kind: input, shape index: {}]
  %s3 = inlined_call_operand.vmem [shape: f32[1,128], index: 3, kind: input, shape index: {}]
  %s4 = inlined_call_operand.vmem [shape: f32[9,128], index: 4, kind: input, shape index: {}]
  %s5 = inlined_call_operand.vmem [shape: f32[1,128], index: 5, kind: input, shape index: {}]
  %s6 = inlined_call_operand.vmem [shape: f32[1,128], index: 6, kind: input, shape index: {}]
  %s7 = inlined_call_operand.vmem [shape: bf16[128,4], index: 7, kind: input, shape index: {}]
  %s8 = inlined_call_operand.vmem [shape: f32[1,4], index: 8, kind: input, shape index: {}]
  %s9 = inlined_call_operand.vmem [shape: f32[1,4], index: 9, kind: input, shape index: {}]
  %s10 = inlined_call_operand.vmem [shape: f32[2,16,16,4], index: 10, kind: output, shape index: {}]
  %s11 = sld [smem:[#allocation0]]
  $region73: #{tpu_custom_call.1} parent=0
    _
  %s13 = ssub.s32 1, %s11
  %s14 = scalar_select 0, %s13, %s11
  loop: start=0, step=1, limit=4
  $region2: #{tpu_custom_call.1} parent=0 // loop_pre_header
    _
  $region3: #{tpu_custom_call.1} parent=0 // loop_header
    %s16 = sphi 0, %s20
    %p17 = scmp.ge.s32.totalorder %s16, 4
    %s26 = sphi 0, %s28
    %s29 = sphi 0, %s26
    %s30 = sphi 0, %s29
    %s46 = sphi 0, %s30
    %s50 = sphi 0, %s50
    %s52 = sphi 0, %s50
    %s53 = sphi 0, %s52
    %s67 = sphi 0, %s53
    %s71 = sphi 0, %s71
    %s73 = sphi 0, %s71
    %s74 = sphi 0, %s73
    %s88 = sphi 0, %s74
    %s92 = sphi 0, %s92
    %s94 = sphi 0, %s92
    %s95 = sphi 0, %s94
    %s109 = sphi 0, %s95
    %s113 = sphi 0, %s113
    %s115 = sphi 0, %s113
    %s116 = sphi 0, %s115
    %s130 = sphi 0, %s116
    %s134 = sphi 0, %s134
    %s136 = sphi 0, %s134
    %s137 = sphi 0, %s136
    %s151 = sphi 0, %s137
    %s155 = sphi 0, %s155
    %s157 = sphi 0, %s155
    %s158 = sphi 0, %s157
    %s172 = sphi 0, %s158
    %s176 = sphi 0, %s176
    %s178 = sphi 0, %s176
    %s179 = sphi 0, %s178
    %s193 = sphi 0, %s179
    %s197 = sphi 0, %s197
    %s199 = sphi 0, %s197
    %s200 = sphi 0, %s199
    %s214 = sphi 0, %s200
    %s218 = sphi 0, %s218
    %s220 = sphi 0, %s218
    %s221 = sphi 0, %s220
    %s235 = sphi 0, %s221
    %s241 = sphi 0, %s243
    %s244 = sphi 0, %s241
    %s245 = sphi 0, %s244
    %s261 = sphi 0, %s245
  $region4: #{tpu_custom_call.1} parent=0 // loop_header_branch
    %19 = sbr.rel (%p17) target = $region8
  $region5: #{tpu_custom_call.1} parent=0 // loop_body
    %s21 = ssub.s32 %s16, 1
    %s22 = ssub.s32 %s16, 2
    %s23 = sadd.s32 %s16, 1
    %s24 = ssub.s32 %s16, %s23
    %p25 = scmp.eq.s32.totalorder %s24, 0
    %s27 = sadd.s32 %s26, 1
    %s28 = scalar_select %p25, %s26, %s27
    %p31 = pneg %p25
    %p32 = scmp.eq.s32.totalorder %s16, 1
    %p33 = por %p31, %p32
    %p34 = scmp.ne.s32.totalorder %s26, %s29
    %p35 = scmp.eq.s32.totalorder %s16, 0
    %p36 = por %p34, %p35
    %p37 = scmp.ne.s32.totalorder %s26, %s29
    %p38 = scmp.eq.s32.totalorder %s21, 1
    %p39 = por %p37, %p38
    %p40 = scmp.ne.s32.totalorder %s29, %s30
    %p41 = scmp.eq.s32.totalorder %s21, 0
    %p42 = por %p40, %p41
    %p43 = scmp.ne.s32.totalorder %s29, %s30
    %p44 = scmp.eq.s32.totalorder %s22, 1
    %p45 = por %p43, %p44
    %p47 = scmp.ne.s32.totalorder %s30, %s46
    %p48 = scmp.eq.s32.totalorder %s22, 0
    %p49 = por %p47, %p48
    %s51 = sadd.s32 %s50, 1
    %p54 = scmp.eq.s32.totalorder %s16, 1
    %p55 = scmp.ne.s32.totalorder %s50, %s52
    %p56 = scmp.eq.s32.totalorder %s16, 0
    %p57 = por %p55, %p56
    %p58 = scmp.ne.s32.totalorder %s50, %s52
    %p59 = scmp.eq.s32.totalorder %s21, 1
    %p60 = por %p58, %p59
    %p61 = scmp.ne.s32.totalorder %s52, %s53
    %p62 = scmp.eq.s32.totalorder %s21, 0
    %p63 = por %p61, %p62
    %p64 = scmp.ne.s32.totalorder %s52, %s53
    %p65 = scmp.eq.s32.totalorder %s22, 1
    %p66 = por %p64, %p65
    %p68 = scmp.ne.s32.totalorder %s53, %s67
    %p69 = scmp.eq.s32.totalorder %s22, 0
    %p70 = por %p68, %p69
    %s72 = sadd.s32 %s71, 1
    %p75 = scmp.eq.s32.totalorder %s16, 1
    %p76 = scmp.ne.s32.totalorder %s71, %s73
    %p77 = scmp.eq.s32.totalorder %s16, 0
    %p78 = por %p76, %p77
    %p79 = scmp.ne.s32.totalorder %s71, %s73
    %p80 = scmp.eq.s32.totalorder %s21, 1
    %p81 = por %p79, %p80
    %p82 = scmp.ne.s32.totalorder %s73, %s74
    %p83 = scmp.eq.s32.totalorder %s21, 0
    %p84 = por %p82, %p83
    %p85 = scmp.ne.s32.totalorder %s73, %s74
    %p86 = scmp.eq.s32.totalorder %s22, 1
    %p87 = por %p85, %p86
    %p89 = scmp.ne.s32.totalorder %s74, %s88
    %p90 = scmp.eq.s32.totalorder %s22, 0
    %p91 = por %p89, %p90
    %s93 = sadd.s32 %s92, 1
    %p96 = scmp.eq.s32.totalorder %s16, 1
    %p97 = scmp.ne.s32.totalorder %s92, %s94
    %p98 = scmp.eq.s32.totalorder %s16, 0
    %p99 = por %p97, %p98
    %p100 = scmp.ne.s32.totalorder %s92, %s94
    %p101 = scmp.eq.s32.totalorder %s21, 1
    %p102 = por %p100, %p101
    %p103 = scmp.ne.s32.totalorder %s94, %s95
    %p104 = scmp.eq.s32.totalorder %s21, 0
    %p105 = por %p103, %p104
    %p106 = scmp.ne.s32.totalorder %s94, %s95
    %p107 = scmp.eq.s32.totalorder %s22, 1
    %p108 = por %p106, %p107
    %p110 = scmp.ne.s32.totalorder %s95, %s109
    %p111 = scmp.eq.s32.totalorder %s22, 0
    %p112 = por %p110, %p111
    %s114 = sadd.s32 %s113, 1
    %p117 = scmp.eq.s32.totalorder %s16, 1
    %p118 = scmp.ne.s32.totalorder %s113, %s115
    %p119 = scmp.eq.s32.totalorder %s16, 0
    %p120 = por %p118, %p119
    %p121 = scmp.ne.s32.totalorder %s113, %s115
    %p122 = scmp.eq.s32.totalorder %s21, 1
    %p123 = por %p121, %p122
    %p124 = scmp.ne.s32.totalorder %s115, %s116
    %p125 = scmp.eq.s32.totalorder %s21, 0
    %p126 = por %p124, %p125
    %p127 = scmp.ne.s32.totalorder %s115, %s116
    %p128 = scmp.eq.s32.totalorder %s22, 1
    %p129 = por %p127, %p128
    %p131 = scmp.ne.s32.totalorder %s116, %s130
    %p132 = scmp.eq.s32.totalorder %s22, 0
    %p133 = por %p131, %p132
    %s135 = sadd.s32 %s134, 1
    %p138 = scmp.eq.s32.totalorder %s16, 1
    %p139 = scmp.ne.s32.totalorder %s134, %s136
    %p140 = scmp.eq.s32.totalorder %s16, 0
    %p141 = por %p139, %p140
    %p142 = scmp.ne.s32.totalorder %s134, %s136
    %p143 = scmp.eq.s32.totalorder %s21, 1
    %p144 = por %p142, %p143
    %p145 = scmp.ne.s32.totalorder %s136, %s137
    %p146 = scmp.eq.s32.totalorder %s21, 0
    %p147 = por %p145, %p146
    %p148 = scmp.ne.s32.totalorder %s136, %s137
    %p149 = scmp.eq.s32.totalorder %s22, 1
    %p150 = por %p148, %p149
    %p152 = scmp.ne.s32.totalorder %s137, %s151
    %p153 = scmp.eq.s32.totalorder %s22, 0
    %p154 = por %p152, %p153
    %s156 = sadd.s32 %s155, 1
    %p159 = scmp.eq.s32.totalorder %s16, 1
    %p160 = scmp.ne.s32.totalorder %s155, %s157
    %p161 = scmp.eq.s32.totalorder %s16, 0
    %p162 = por %p160, %p161
    %p163 = scmp.ne.s32.totalorder %s155, %s157
    %p164 = scmp.eq.s32.totalorder %s21, 1
    %p165 = por %p163, %p164
    %p166 = scmp.ne.s32.totalorder %s157, %s158
    %p167 = scmp.eq.s32.totalorder %s21, 0
    %p168 = por %p166, %p167
    %p169 = scmp.ne.s32.totalorder %s157, %s158
    %p170 = scmp.eq.s32.totalorder %s22, 1
    %p171 = por %p169, %p170
    %p173 = scmp.ne.s32.totalorder %s158, %s172
    %p174 = scmp.eq.s32.totalorder %s22, 0
    %p175 = por %p173, %p174
    %s177 = sadd.s32 %s176, 1
    %p180 = scmp.eq.s32.totalorder %s16, 1
    %p181 = scmp.ne.s32.totalorder %s176, %s178
    %p182 = scmp.eq.s32.totalorder %s16, 0
    %p183 = por %p181, %p182
    %p184 = scmp.ne.s32.totalorder %s176, %s178
    %p185 = scmp.eq.s32.totalorder %s21, 1
    %p186 = por %p184, %p185
    %p187 = scmp.ne.s32.totalorder %s178, %s179
    %p188 = scmp.eq.s32.totalorder %s21, 0
    %p189 = por %p187, %p188
    %p190 = scmp.ne.s32.totalorder %s178, %s179
    %p191 = scmp.eq.s32.totalorder %s22, 1
    %p192 = por %p190, %p191
    %p194 = scmp.ne.s32.totalorder %s179, %s193
    %p195 = scmp.eq.s32.totalorder %s22, 0
    %p196 = por %p194, %p195
    %s198 = sadd.s32 %s197, 1
    %p201 = scmp.eq.s32.totalorder %s16, 1
    %p202 = scmp.ne.s32.totalorder %s197, %s199
    %p203 = scmp.eq.s32.totalorder %s16, 0
    %p204 = por %p202, %p203
    %p205 = scmp.ne.s32.totalorder %s197, %s199
    %p206 = scmp.eq.s32.totalorder %s21, 1
    %p207 = por %p205, %p206
    %p208 = scmp.ne.s32.totalorder %s199, %s200
    %p209 = scmp.eq.s32.totalorder %s21, 0
    %p210 = por %p208, %p209
    %p211 = scmp.ne.s32.totalorder %s199, %s200
    %p212 = scmp.eq.s32.totalorder %s22, 1
    %p213 = por %p211, %p212
    %p215 = scmp.ne.s32.totalorder %s200, %s214
    %p216 = scmp.eq.s32.totalorder %s22, 0
    %p217 = por %p215, %p216
    %s219 = sadd.s32 %s218, 1
    %p222 = scmp.eq.s32.totalorder %s16, 1
    %p223 = scmp.ne.s32.totalorder %s218, %s220
    %p224 = scmp.eq.s32.totalorder %s16, 0
    %p225 = por %p223, %p224
    %p226 = scmp.ne.s32.totalorder %s218, %s220
    %p227 = scmp.eq.s32.totalorder %s21, 1
    %p228 = por %p226, %p227
    %p229 = scmp.ne.s32.totalorder %s220, %s221
    %p230 = scmp.eq.s32.totalorder %s21, 0
    %p231 = por %p229, %p230
    %p232 = scmp.ne.s32.totalorder %s220, %s221
    %p233 = scmp.eq.s32.totalorder %s22, 1
    %p234 = por %p232, %p233
    %p236 = scmp.ne.s32.totalorder %s221, %s235
    %p237 = scmp.eq.s32.totalorder %s22, 0
    %p238 = por %p236, %p237
    %s239 = ssub.s32 %s16, %s23
    %p240 = scmp.eq.s32.totalorder %s239, 0
    %s242 = sadd.s32 %s241, 1
    %s243 = scalar_select %p240, %s241, %s242
    %p246 = pneg %p240
    %p247 = scmp.eq.s32.totalorder %s16, 1
    %p248 = por %p246, %p247
    %p249 = scmp.ne.s32.totalorder %s241, %s244
    %p250 = scmp.eq.s32.totalorder %s16, 0
    %p251 = por %p249, %p250
    %p252 = scmp.ne.s32.totalorder %s241, %s244
    %p253 = scmp.eq.s32.totalorder %s21, 1
    %p254 = por %p252, %p253
    %p255 = scmp.ne.s32.totalorder %s244, %s245
    %p256 = scmp.eq.s32.totalorder %s21, 0
    %p257 = por %p255, %p256
    %p258 = scmp.ne.s32.totalorder %s244, %s245
    %p259 = scmp.eq.s32.totalorder %s22, 1
    %p260 = por %p258, %p259
    %p262 = scmp.ne.s32.totalorder %s245, %s261
    %p263 = scmp.eq.s32.totalorder %s22, 0
    %p264 = por %p262, %p263
    %p265 = scmp.le.s32.totalorder 1, %s16
    %p266 = scmp.lt.s32.totalorder %s16, 3
    %p267 = pnand %p265, %p266
    %p268 = pneg %p267
    // Predicated region
    $region9: #{tpu_custom_call.1} parent=5 // pred_check
      _
    $region10: #{tpu_custom_call.1} parent=5 // pred_check_branch
      %270 = sbr.rel (%p267) target = $region12
    $region11: #{tpu_custom_call.1} parent=5 // pred_region
      %s271 = ssub.s32 %s16, 1
      // Predicated region
      $region13: #{tpu_custom_call.1} parent=11 // pred_check
        %p272 = pneg %p63
      $region14: #{tpu_custom_call.1} parent=11 // pred_check_branch
        %274 = sbr.rel (%p272) target = $region16
      $region15: #{tpu_custom_call.1} parent=11 // pred_region
        _
      $region16: #{tpu_custom_call.1} parent=11 // pred_fallthru
        _
      // Predicated region
      $region17: #{tpu_custom_call.1} parent=11 // pred_check
        %p275 = pneg %p84
      $region18: #{tpu_custom_call.1} parent=11 // pred_check_branch
        %277 = sbr.rel (%p275) target = $region20
      $region19: #{tpu_custom_call.1} parent=11 // pred_region
        _
      $region20: #{tpu_custom_call.1} parent=11 // pred_fallthru
        _
      // Predicated region
      $region21: #{tpu_custom_call.1} parent=11 // pred_check
        %p278 = pneg %p105
      $region22: #{tpu_custom_call.1} parent=11 // pred_check_branch
        %280 = sbr.rel (%p278) target = $region24
      $region23: #{tpu_custom_call.1} parent=11 // pred_region
        _
      $region24: #{tpu_custom_call.1} parent=11 // pred_fallthru
        _
      // Predicated region
      $region25: #{tpu_custom_call.1} parent=11 // pred_check
        %p281 = pneg %p126
      $region26: #{tpu_custom_call.1} parent=11 // pred_check_branch
        %283 = sbr.rel (%p281) target = $region28
      $region27: #{tpu_custom_call.1} parent=11 // pred_region
        _
      $region28: #{tpu_custom_call.1} parent=11 // pred_fallthru
        _
      // Predicated region
      $region29: #{tpu_custom_call.1} parent=11 // pred_check
        %p284 = pneg %p147
      $region30: #{tpu_custom_call.1} parent=11 // pred_check_branch
        %286 = sbr.rel (%p284) target = $region32
      $region31: #{tpu_custom_call.1} parent=11 // pred_region
        _
      $region32: #{tpu_custom_call.1} parent=11 // pred_fallthru
        _
      // Predicated region
      $region33: #{tpu_custom_call.1} parent=11 // pred_check
        %p287 = pneg %p168
      $region34: #{tpu_custom_call.1} parent=11 // pred_check_branch
        %289 = sbr.rel (%p287) target = $region36
      $region35: #{tpu_custom_call.1} parent=11 // pred_region
        _
      $region36: #{tpu_custom_call.1} parent=11 // pred_fallthru
        _
      // Predicated region
      $region37: #{tpu_custom_call.1} parent=11 // pred_check
        %p290 = pneg %p189
      $region38: #{tpu_custom_call.1} parent=11 // pred_check_branch
        %292 = sbr.rel (%p290) target = $region40
      $region39: #{tpu_custom_call.1} parent=11 // pred_region
        _
      $region40: #{tpu_custom_call.1} parent=11 // pred_fallthru
        _
      // Predicated region
      $region41: #{tpu_custom_call.1} parent=11 // pred_check
        %p293 = pneg %p210
      $region42: #{tpu_custom_call.1} parent=11 // pred_check_branch
        %295 = sbr.rel (%p293) target = $region44
      $region43: #{tpu_custom_call.1} parent=11 // pred_region
        _
      $region44: #{tpu_custom_call.1} parent=11 // pred_fallthru
        _
      // Predicated region
      $region45: #{tpu_custom_call.1} parent=11 // pred_check
        %p296 = pneg %p231
      $region46: #{tpu_custom_call.1} parent=11 // pred_check_branch
        %298 = sbr.rel (%p296) target = $region48
      $region47: #{tpu_custom_call.1} parent=11 // pred_region
        _
      $region48: #{tpu_custom_call.1} parent=11 // pred_fallthru
        _
    $region12: #{tpu_custom_call.1} parent=5 // pred_fallthru
      _
    %p299 = scmp.lt.s32.totalorder %s16, 2
    // Predicated region
    $region49: #{tpu_custom_call.1} parent=5 // pred_check
      %p300 = pneg %p299
    $region50: #{tpu_custom_call.1} parent=5 // pred_check_branch
      %302 = sbr.rel (%p300) target = $region52
    $region51: #{tpu_custom_call.1} parent=5 // pred_region
      // Predicated region
      $region53: #{tpu_custom_call.1} parent=51 // pred_check
        %p303 = pneg %p36
      $region54: #{tpu_custom_call.1} parent=51 // pred_check_branch
        %305 = sbr.rel (%p303) target = $region56
      $region55: #{tpu_custom_call.1} parent=51 // pred_region
        %p306 = scmp.lt.s32.totalorder %s16, 1
        %s307 = scalar_select %p306, %s16, 1
        %s308 = smul.addr %s307, 32
        %s309 = smul.addr %s308, 8
        %s310 = scalar_lea.vmem %s0, %s309
      $region56: #{tpu_custom_call.1} parent=51 // pred_fallthru
        _
    $region52: #{tpu_custom_call.1} parent=5 // pred_fallthru
      _
    %p311 = scmp.le.s32.totalorder 1, %s16
    %p312 = scmp.lt.s32.totalorder %s16, 3
    %p313 = pnand %p311, %p312
    %p314 = pneg %p313
    // Predicated region
    $region57: #{tpu_custom_call.1} parent=5 // pred_check
      _
    $region58: #{tpu_custom_call.1} parent=5 // pred_check_branch
      %316 = sbr.rel (%p313) target = $region60
    $region59: #{tpu_custom_call.1} parent=5 // pred_region
      %s317 = ssub.s32 %s16, 1
      %p318 = scmp.lt.s32.totalorder %s21, 1
      %s319 = scalar_select %p318, %s21, 1
      %s320 = smul.addr %s319, 32
      %s321 = smul.addr %s320, 8
      %s322 = scalar_lea.vmem %s0, %s321
      %p323 = pneg %p42
      %p324 = pneg %p39
      %p325 = pneg %p63
      %p326 = pneg %p60
      %p327 = pneg %p84
      %p328 = pneg %p81
      %p329 = pneg %p105
      %p330 = pneg %p102
      %p331 = pneg %p126
      %p332 = pneg %p123
      %p333 = pneg %p147
      %p334 = pneg %p144
      %p335 = pneg %p168
      %p336 = pneg %p165
      %p337 = pneg %p189
      %p338 = pneg %p186
      %p339 = pneg %p210
      %p340 = pneg %p207
      %p341 = pneg %p231
      %p342 = pneg %p228
      %p343 = pneg %p257
      %p344 = pneg %p254
      %p345 = scmp.lt.s32.totalorder %s21, 1
      %s346 = scalar_select %p345, %s21, 1
      %s347 = smul.addr %s346, 32
      %s348 = smul.addr %s347, 8
      %s349 = scalar_lea.vmem %s10, %s348
      %p350 = scmp.lt.s32.totalorder %s21, 1
      %s351 = scalar_select %p350, %s21, 1
      %s352 = smul.addr %s351, 32
      %s353 = smul.addr %s352, 8
      %s354 = scalar_lea.vmem %s0, %s353
      %p355 = scmp.lt.s32.totalorder %s21, 1
      %s356 = scalar_select %p355, %s21, 1
      %s357 = smul.addr %s356, 32
      %s358 = smul.addr %s357, 8
      %s359 = scalar_lea.vmem %s10, %s358
      %361 = vst [vmem:[#allocation2] sm:$0xff] 0.0
      %362 = vst [vmem:[#allocation2 + $0x8] sm:$0xff] 0.0
      %363 = vst [vmem:[#allocation2 + $0x10] sm:$0xff] 0.0
      %364 = vst [vmem:[#allocation2 + $0x18] sm:$0x1] 0.0
      %365 = vst [vmem:[#allocation2 + $0x20] sm:$0xff] 0.0
      %366 = vst [vmem:[#allocation2 + $0x28] sm:$0xff] 0.0
      %367 = vst [vmem:[#allocation2 + $0x30] sm:$0xff] 0.0
      %368 = vst [vmem:[#allocation2 + $0x38] sm:$0x1] 0.0
      %369 = vst [vmem:[#allocation2 + $0x40] sm:$0xff] 0.0
      %370 = vst [vmem:[#allocation2 + $0x48] sm:$0xff] 0.0
      %371 = vst [vmem:[#allocation2 + $0x50] sm:$0xff] 0.0
      %372 = vst [vmem:[#allocation2 + $0x58] sm:$0x1] 0.0
      %373 = vst [vmem:[#allocation2 + $0x60] sm:$0xff] 0.0
      %374 = vst [vmem:[#allocation2 + $0x68] sm:$0xff] 0.0
      %375 = vst [vmem:[#allocation2 + $0x70] sm:$0xff] 0.0
      %376 = vst [vmem:[#allocation2 + $0x78] sm:$0x1] 0.0
      %377 = vst [vmem:[#allocation2 + $0x80] sm:$0xff] 0.0
      %378 = vst [vmem:[#allocation2 + $0x88] sm:$0xff] 0.0
      %379 = vst [vmem:[#allocation2 + $0x90] sm:$0xff] 0.0
      %380 = vst [vmem:[#allocation2 + $0x98] sm:$0x1] 0.0
      %381 = vst [vmem:[#allocation2 + $0xa0] sm:$0xff] 0.0
      %382 = vst [vmem:[#allocation2 + $0xa8] sm:$0xff] 0.0
      %383 = vst [vmem:[#allocation2 + $0xb0] sm:$0xff] 0.0
      %384 = vst [vmem:[#allocation2 + $0xb8] sm:$0x1] 0.0
      %385 = vst [vmem:[#allocation2 + $0xc0] sm:$0xff] 0.0
      %386 = vst [vmem:[#allocation2 + $0xc8] sm:$0xff] 0.0
      %387 = vst [vmem:[#allocation2 + $0xd0] sm:$0xff] 0.0
      %388 = vst [vmem:[#allocation2 + $0xd8] sm:$0x1] 0.0
      %389 = vst [vmem:[#allocation2 + $0xe0] sm:$0xff] 0.0
      %390 = vst [vmem:[#allocation2 + $0xe8] sm:$0xff] 0.0
      %391 = vst [vmem:[#allocation2 + $0xf0] sm:$0xff] 0.0
      %392 = vst [vmem:[#allocation2 + $0xf8] sm:$0x1] 0.0
      %393 = vst [vmem:[#allocation2 + $0x100] sm:$0xff] 0.0
      %394 = vst [vmem:[#allocation2 + $0x108] sm:$0xff] 0.0
      %395 = vst [vmem:[#allocation2 + $0x110] sm:$0xff] 0.0
      %396 = vst [vmem:[#allocation2 + $0x118] sm:$0x1] 0.0
      %397 = vst [vmem:[#allocation2 + $0x120] sm:$0xff] 0.0
      %398 = vst [vmem:[#allocation2 + $0x128] sm:$0xff] 0.0
      %399 = vst [vmem:[#allocation2 + $0x130] sm:$0xff] 0.0
      %400 = vst [vmem:[#allocation2 + $0x138] sm:$0x1] 0.0
      %401 = vst [vmem:[#allocation2 + $0x140] sm:$0xff] 0.0
      %402 = vst [vmem:[#allocation2 + $0x148] sm:$0xff] 0.0
      %403 = vst [vmem:[#allocation2 + $0x150] sm:$0xff] 0.0
      %404 = vst [vmem:[#allocation2 + $0x158] sm:$0x1] 0.0
      %405 = vst [vmem:[#allocation2 + $0x160] sm:$0xff] 0.0
      %406 = vst [vmem:[#allocation2 + $0x168] sm:$0xff] 0.0
      %407 = vst [vmem:[#allocation2 + $0x170] sm:$0xff] 0.0
      %408 = vst [vmem:[#allocation2 + $0x178] sm:$0x1] 0.0
      %409 = vst [vmem:[#allocation2 + $0x180] sm:$0xff] 0.0
      %410 = vst [vmem:[#allocation2 + $0x188] sm:$0xff] 0.0
      %411 = vst [vmem:[#allocation2 + $0x190] sm:$0xff] 0.0
      %412 = vst [vmem:[#allocation2 + $0x198] sm:$0x1] 0.0
      %413 = vst [vmem:[#allocation2 + $0x1a0] sm:$0xff] 0.0
      %414 = vst [vmem:[#allocation2 + $0x1a8] sm:$0xff] 0.0
      %415 = vst [vmem:[#allocation2 + $0x1b0] sm:$0xff] 0.0
      %416 = vst [vmem:[#allocation2 + $0x1b8] sm:$0x1] 0.0
      %417 = vst [vmem:[#allocation2 + $0x1c0] sm:$0xff] 0.0
      %418 = vst [vmem:[#allocation2 + $0x1c8] sm:$0xff] 0.0
      %419 = vst [vmem:[#allocation2 + $0x1d0] sm:$0xff] 0.0
      %420 = vst [vmem:[#allocation2 + $0x1d8] sm:$0x1] 0.0
      %421 = vst [vmem:[#allocation2 + $0x1e0] sm:$0xff] 0.0
      %422 = vst [vmem:[#allocation2 + $0x1e8] sm:$0xff] 0.0
      %423 = vst [vmem:[#allocation2 + $0x1f0] sm:$0xff] 0.0
      %424 = vst [vmem:[#allocation2 + $0x1f8] sm:$0x1] 0.0
      %425 = vst [vmem:[#allocation2 + $0x200] sm:$0xff] 0.0
      %426 = vst [vmem:[#allocation2 + $0x208] sm:$0xff] 0.0
      %427 = vst [vmem:[#allocation2 + $0x210] sm:$0xff] 0.0
      %428 = vst [vmem:[#allocation2 + $0x218] sm:$0x1] 0.0
      %429 = vst [vmem:[#allocation2 + $0x220] sm:$0xff] 0.0
      %430 = vst [vmem:[#allocation2 + $0x228] sm:$0xff] 0.0
      %431 = vst [vmem:[#allocation2 + $0x230] sm:$0xff] 0.0
      %432 = vst [vmem:[#allocation2 + $0x238] sm:$0x1] 0.0
      %v433 = vld [vmem:[%s354] sm:$0xff]
      %v434 = vld [vmem:[%s354 + $0x8] sm:$0xff]
      %v435 = vld [vmem:[%s354 + $0x10] sm:$0xff]
      %v436 = vld [vmem:[%s354 + $0x18] sm:$0xff]
      %v437 = vld [vmem:[%s354 + $0x20] sm:$0xff]
      %v438 = vld [vmem:[%s354 + $0x28] sm:$0xff]
      %v439 = vld [vmem:[%s354 + $0x30] sm:$0xff]
      %v440 = vld [vmem:[%s354 + $0x38] sm:$0xff]
      %v441 = vld [vmem:[%s354 + $0x40] sm:$0xff]
      %v442 = vld [vmem:[%s354 + $0x48] sm:$0xff]
      %v443 = vld [vmem:[%s354 + $0x50] sm:$0xff]
      %v444 = vld [vmem:[%s354 + $0x58] sm:$0xff]
      %v445 = vld [vmem:[%s354 + $0x60] sm:$0xff]
      %v446 = vld [vmem:[%s354 + $0x68] sm:$0xff]
      %v447 = vld [vmem:[%s354 + $0x70] sm:$0xff]
      %v448 = vld [vmem:[%s354 + $0x78] sm:$0xff]
      %v449 = vld [vmem:[%s354 + $0x80] sm:$0xff]
      %v450 = vld [vmem:[%s354 + $0x88] sm:$0xff]
      %v451 = vld [vmem:[%s354 + $0x90] sm:$0xff]
      %v452 = vld [vmem:[%s354 + $0x98] sm:$0xff]
      %v453 = vld [vmem:[%s354 + $0xa0] sm:$0xff]
      %v454 = vld [vmem:[%s354 + $0xa8] sm:$0xff]
      %v455 = vld [vmem:[%s354 + $0xb0] sm:$0xff]
      %v456 = vld [vmem:[%s354 + $0xb8] sm:$0xff]
      %v457 = vld [vmem:[%s354 + $0xc0] sm:$0xff]
      %v458 = vld [vmem:[%s354 + $0xc8] sm:$0xff]
      %v459 = vld [vmem:[%s354 + $0xd0] sm:$0xff]
      %v460 = vld [vmem:[%s354 + $0xd8] sm:$0xff]
      %v461 = vld [vmem:[%s354 + $0xe0] sm:$0xff]
      %v462 = vld [vmem:[%s354 + $0xe8] sm:$0xff]
      %v463 = vld [vmem:[%s354 + $0xf0] sm:$0xff]
      %v464 = vld [vmem:[%s354 + $0xf8] sm:$0xff]
      %v465 = vpack.c.bf16 %v434, %v433
      %v466 = vpack.c.bf16 %v436, %v435
      %v467 = vpack.c.bf16 %v438, %v437
      %v468 = vpack.c.bf16 %v440, %v439
      %v469 = vpack.c.bf16 %v442, %v441
      %v470 = vpack.c.bf16 %v444, %v443
      %v471 = vpack.c.bf16 %v446, %v445
      %v472 = vpack.c.bf16 %v448, %v447
      %v473 = vpack.c.bf16 %v450, %v449
      %v474 = vpack.c.bf16 %v452, %v451
      %v475 = vpack.c.bf16 %v454, %v453
      %v476 = vpack.c.bf16 %v456, %v455
      %v477 = vpack.c.bf16 %v458, %v457
      %v478 = vpack.c.bf16 %v460, %v459
      %v479 = vpack.c.bf16 %v462, %v461
      %v480 = vpack.c.bf16 %v464, %v463
      %v481 = vld [vmem:[%s1] sm:$0x3]
      %vm482 = vcmask 31744
      %v484 = vsel %vm482, %v465, 0
      %v487 = vsel %vm482, %v466, 0
      %v490 = vsel %vm482, %v467, 0
      %v493 = vsel %vm482, %v468, 0
      %v496 = vsel %vm482, %v469, 0
      %v499 = vsel %vm482, %v470, 0
      %v502 = vsel %vm482, %v471, 0
      %v505 = vsel %vm482, %v472, 0
      %v508 = vsel %vm482, %v473, 0
      %v511 = vsel %vm482, %v474, 0
      %v514 = vsel %vm482, %v475, 0
      %v517 = vsel %vm482, %v476, 0
      %v520 = vsel %vm482, %v477, 0
      %v523 = vsel %vm482, %v478, 0
      %v526 = vsel %vm482, %v479, 0
      %v529 = vsel %vm482, %v480, 0
      %vm531 = vcmask 1041408
      %v533 = vsel %vm531, %v481, 0
      %535 = vmatprep.subr.bf16.mxu0 0
      %536 = vmatpush1.bf16.msra.mxu0 %v533
      %537 = vmatprep.subr.bf16.mxu0 0
      %538 = vmatpush1.bf16.msra.mxu0 0
      %539 = vmatprep.subr.bf16.mxu0 0
      %540 = vmatpush1.bf16.msra.mxu0 0
      %541 = vmatprep.subr.bf16.mxu0 0
      %542 = vmatpush1.bf16.msra.mxu0 0
      %543 = vmatprep.subr.bf16.mxu0 0
      %544 = vmatpush1.bf16.msra.mxu0 0
      %545 = vmatprep.subr.bf16.mxu0 0
      %546 = vmatpush1.bf16.msra.mxu0 0
      %547 = vmatprep.subr.bf16.mxu0 0
      %548 = vmatpush1.bf16.msra.mxu0 0
      %549 = vmatprep.subr.bf16.mxu0 0
      %550 = vmatpush1.bf16.msra.mxu0 0
      %551 = vmatprep.subr.bf16.mxu0 0
      %552 = vmatpush1.bf16.msra.mxu0 0
      %553 = vmatprep.subr.bf16.mxu0 0
      %554 = vmatpush1.bf16.msra.mxu0 0
      %555 = vmatprep.subr.bf16.mxu0 0
      %556 = vmatpush1.bf16.msra.mxu0 0
      %557 = vmatprep.subr.bf16.mxu0 0
      %558 = vmatpush1.bf16.msra.mxu0 0
      %559 = vmatprep.subr.bf16.mxu0 0
      %560 = vmatpush1.bf16.msra.mxu0 0
      %561 = vmatprep.subr.bf16.mxu0 0
      %562 = vmatpush1.bf16.msra.mxu0 0
      %563 = vmatprep.subr.bf16.mxu0 0
      %564 = vmatpush1.bf16.msra.mxu0 0
      %565 = vmatprep.subr.bf16.mxu0 0
      %566 = vmatpush1.bf16.msra.mxu0 0
      %567 = vmatprep.mubr.bf16.mxu0 0
      %568 = vmatmul.mubr.bf16.gmra.mrb[0].mxu0 %v484
      %v569 = vpop.f32.mrb[0].mxu0
      %v570 = vadd.f32 0.0, %v569
      %v571 = vpop.f32.mrb[0].mxu0
      %v572 = vpop.f32.mrb[0].mxu0
      %v573 = vadd.f32 0.0, %v572
      %v574 = vpop.f32.mrb[0].mxu0
      %575 = vmatprep.mubr.bf16.mxu0 0
      %576 = vmatmul.mubr.bf16.gmra.mrb[0].mxu0 %v487
      %v577 = vpop.f32.mrb[0].mxu0
      %v578 = vadd.f32 0.0, %v577
      %v579 = vpop.f32.mrb[0].mxu0
      %v580 = vpop.f32.mrb[0].mxu0
      %v581 = vadd.f32 0.0, %v580
      %v582 = vpop.f32.mrb[0].mxu0
      %583 = vmatprep.mubr.bf16.mxu0 0
      %584 = vmatmul.mubr.bf16.gmra.mrb[0].mxu0 %v490
      %v585 = vpop.f32.mrb[0].mxu0
      %v586 = vadd.f32 0.0, %v585
      %v587 = vpop.f32.mrb[0].mxu0
      %v588 = vpop.f32.mrb[0].mxu0
      %v589 = vadd.f32 0.0, %v588
      %v590 = vpop.f32.mrb[0].mxu0
      %591 = vmatprep.mubr.bf16.mxu0 0
      %592 = vmatmul.mubr.bf16.gmra.mrb[0].mxu0 %v493
      %v593 = vpop.f32.mrb[0].mxu0
      %v594 = vadd.f32 0.0, %v593
      %v595 = vpop.f32.mrb[0].mxu0
      %v596 = vpop.f32.mrb[0].mxu0
      %v597 = vadd.f32 0.0, %v596
      %v598 = vpop.f32.mrb[0].mxu0
      %599 = vmatprep.mubr.bf16.mxu0 0
      %600 = vmatmul.mubr.bf16.gmra.mrb[0].mxu0 %v496
      %v601 = vpop.f32.mrb[0].mxu0
      %v602 = vadd.f32 0.0, %v601
      %v603 = vpop.f32.mrb[0].mxu0
      %v604 = vpop.f32.mrb[0].mxu0
      %v605 = vadd.f32 0.0, %v604
      %v606 = vpop.f32.mrb[0].mxu0
      %607 = vmatprep.mubr.bf16.mxu0 0
      %608 = vmatmul.mubr.bf16.gmra.mrb[0].mxu0 %v499
      %v609 = vpop.f32.mrb[0].mxu0
      %v610 = vadd.f32 0.0, %v609
      %v611 = vpop.f32.mrb[0].mxu0
      %v612 = vpop.f32.mrb[0].mxu0
      %v613 = vadd.f32 0.0, %v612
      %v614 = vpop.f32.mrb[0].mxu0
      %615 = vmatprep.mubr.bf16.mxu0 0
      %616 = vmatmul.mubr.bf16.gmra.mrb[0].mxu0 %v502
      %v617 = vpop.f32.mrb[0].mxu0
      %v618 = vadd.f32 0.0, %v617
      %v619 = vpop.f32.mrb[0].mxu0
      %v620 = vpop.f32.mrb[0].mxu0
      %v621 = vadd.f32 0.0, %v620
      %v622 = vpop.f32.mrb[0].mxu0
      %623 = vmatprep.mubr.bf16.mxu0 0
      %624 = vmatmul.mubr.bf16.gmra.mrb[0].mxu0 %v505
      %v625 = vpop.f32.mrb[0].mxu0
      %v626 = vadd.f32 0.0, %v625
      %v627 = vpop.f32.mrb[0].mxu0
      %v628 = vpop.f32.mrb[0].mxu0
      %v629 = vadd.f32 0.0, %v628
      %v630 = vpop.f32.mrb[0].mxu0
      %631 = vmatprep.mubr.bf16.mxu0 0
      %632 = vmatmul.mubr.bf16.gmra.mrb[0].mxu0 %v508
      %v633 = vpop.f32.mrb[0].mxu0
      %v634 = vadd.f32 0.0, %v633
      %v635 = vpop.f32.mrb[0].mxu0
      %v636 = vpop.f32.mrb[0].mxu0
      %v637 = vadd.f32 0.0, %v636
      %v638 = vpop.f32.mrb[0].mxu0
      %639 = vmatprep.mubr.bf16.mxu0 0
      %640 = vmatmul.mubr.bf16.gmra.mrb[0].mxu0 %v511
      %v641 = vpop.f32.mrb[0].mxu0
      %v642 = vadd.f32 0.0, %v641
      %v643 = vpop.f32.mrb[0].mxu0
      %v644 = vpop.f32.mrb[0].mxu0
      %v645 = vadd.f32 0.0, %v644
      %v646 = vpop.f32.mrb[0].mxu0
      %647 = vmatprep.mubr.bf16.mxu0 0
      %648 = vmatmul.mubr.bf16.gmra.mrb[0].mxu0 %v514
      %v649 = vpop.f32.mrb[0].mxu0
      %v650 = vadd.f32 0.0, %v649
      %v651 = vpop.f32.mrb[0].mxu0
      %v652 = vpop.f32.mrb[0].mxu0
      %v653 = vadd.f32 0.0, %v652
      %v654 = vpop.f32.mrb[0].mxu0
      %655 = vmatprep.mubr.bf16.mxu0 0
      %656 = vmatmul.mubr.bf16.gmra.mrb[0].mxu0 %v517
      %v657 = vpop.f32.mrb[0].mxu0
      %v658 = vadd.f32 0.0, %v657
      %v659 = vpop.f32.mrb[0].mxu0
      %v660 = vpop.f32.mrb[0].mxu0
      %v661 = vadd.f32 0.0, %v660
      %v662 = vpop.f32.mrb[0].mxu0
      %663 = vmatprep.mubr.bf16.mxu0 0
      %664 = vmatmul.mubr.bf16.gmra.mrb[0].mxu0 %v520
      %v665 = vpop.f32.mrb[0].mxu0
      %v666 = vadd.f32 0.0, %v665
      %v667 = vpop.f32.mrb[0].mxu0
      %v668 = vpop.f32.mrb[0].mxu0
      %v669 = vadd.f32 0.0, %v668
      %v670 = vpop.f32.mrb[0].mxu0
      %671 = vmatprep.mubr.bf16.mxu0 0
      %672 = vmatmul.mubr.bf16.gmra.mrb[0].mxu0 %v523
      %v673 = vpop.f32.mrb[0].mxu0
      %v674 = vadd.f32 0.0, %v673
      %v675 = vpop.f32.mrb[0].mxu0
      %v676 = vpop.f32.mrb[0].mxu0
      %v677 = vadd.f32 0.0, %v676
      %v678 = vpop.f32.mrb[0].mxu0
      %679 = vmatprep.mubr.bf16.mxu0 0
      %680 = vmatmul.mubr.bf16.gmra.mrb[0].mxu0 %v526
      %v681 = vpop.f32.mrb[0].mxu0
      %v682 = vadd.f32 0.0, %v681
      %v683 = vpop.f32.mrb[0].mxu0
      %v684 = vpop.f32.mrb[0].mxu0
      %v685 = vadd.f32 0.0, %v684
      %v686 = vpop.f32.mrb[0].mxu0
      %687 = vmatprep.mubr.bf16.mxu0 0
      %688 = vmatmul.mubr.bf16.gmra.mrb[0].mxu0 %v529
      %v689 = vpop.f32.mrb[0].mxu0
      %v690 = vadd.f32 0.0, %v689
      %v691 = vpop.f32.mrb[0].mxu0
      %v692 = vpop.f32.mrb[0].mxu0
      %v693 = vadd.f32 0.0, %v692
      %v694 = vpop.f32.mrb[0].mxu0
      %695 = vdwg.mxu0
      %v696 = vld [vmem:[%s2] sm:$0x1]
      %v698 = vlaneseq
      %v699 = vshrl.u32 %v698, 7
      %v700 = vsub.s32 0, %v699
      %v701 = vrot.slane %v696, %v700
      %v703 = vmul.f32 %v570, %v701
      %v704 = vmul.f32 %v573, %v701
      %v705 = vmul.f32 %v578, %v701
      %v706 = vmul.f32 %v581, %v701
      %v707 = vmul.f32 %v586, %v701
      %v708 = vmul.f32 %v589, %v701
      %v709 = vmul.f32 %v594, %v701
      %v710 = vmul.f32 %v597, %v701
      %v711 = vmul.f32 %v602, %v701
      %v712 = vmul.f32 %v605, %v701
      %v713 = vmul.f32 %v610, %v701
      %v714 = vmul.f32 %v613, %v701
      %v715 = vmul.f32 %v618, %v701
      %v716 = vmul.f32 %v621, %v701
      %v717 = vmul.f32 %v626, %v701
      %v718 = vmul.f32 %v629, %v701
      %v719 = vmul.f32 %v634, %v701
      %v720 = vmul.f32 %v637, %v701
      %v721 = vmul.f32 %v642, %v701
      %v722 = vmul.f32 %v645, %v701
      %v723 = vmul.f32 %v650, %v701
      %v724 = vmul.f32 %v653, %v701
      %v725 = vmul.f32 %v658, %v701
      %v726 = vmul.f32 %v661, %v701
      %v727 = vmul.f32 %v666, %v701
      %v728 = vmul.f32 %v669, %v701
      %v729 = vmul.f32 %v674, %v701
      %v730 = vmul.f32 %v677, %v701
      %v731 = vmul.f32 %v682, %v701
      %v732 = vmul.f32 %v685, %v701
      %v733 = vmul.f32 %v690, %v701
      %v734 = vmul.f32 %v693, %v701
      %v735 = vld [vmem:[%s3] sm:$0x1]
      %v737 = vlaneseq
      %v738 = vshrl.u32 %v737, 7
      %v739 = vsub.s32 0, %v738
      %v740 = vrot.slane %v735, %v739
      %v742 = vadd.f32 %v703, %v740
      %v743 = vadd.f32 %v704, %v740
      %v744 = vadd.f32 %v705, %v740
      %v745 = vadd.f32 %v706, %v740
      %v746 = vadd.f32 %v707, %v740
      %v747 = vadd.f32 %v708, %v740
      %v748 = vadd.f32 %v709, %v740
      %v749 = vadd.f32 %v710, %v740
      %v750 = vadd.f32 %v711, %v740
      %v751 = vadd.f32 %v712, %v740
      %v752 = vadd.f32 %v713, %v740
      %v753 = vadd.f32 %v714, %v740
      %v754 = vadd.f32 %v715, %v740
      %v755 = vadd.f32 %v716, %v740
      %v756 = vadd.f32 %v717, %v740
      %v757 = vadd.f32 %v718, %v740
      %v758 = vadd.f32 %v719, %v740
      %v759 = vadd.f32 %v720, %v740
      %v760 = vadd.f32 %v721, %v740
      %v761 = vadd.f32 %v722, %v740
      %v762 = vadd.f32 %v723, %v740
      %v763 = vadd.f32 %v724, %v740
      %v764 = vadd.f32 %v725, %v740
      %v765 = vadd.f32 %v726, %v740
      %v766 = vadd.f32 %v727, %v740
      %v767 = vadd.f32 %v728, %v740
      %v768 = vadd.f32 %v729, %v740
      %v769 = vadd.f32 %v730, %v740
      %v770 = vadd.f32 %v731, %v740
      %v771 = vadd.f32 %v732, %v740
      %v772 = vadd.f32 %v733, %v740
      %v773 = vadd.f32 %v734, %v740
      %v774 = vmax.f32 %v742, 0.0
      %v775 = vmax.f32 %v743, 0.0
      %v776 = vmax.f32 %v744, 0.0
      %v777 = vmax.f32 %v745, 0.0
      %v778 = vmax.f32 %v746, 0.0
      %v779 = vmax.f32 %v747, 0.0
      %v780 = vmax.f32 %v748, 0.0
      %v781 = vmax.f32 %v749, 0.0
      %v782 = vmax.f32 %v750, 0.0
      %v783 = vmax.f32 %v751, 0.0
      %v784 = vmax.f32 %v752, 0.0
      %v785 = vmax.f32 %v753, 0.0
      %v786 = vmax.f32 %v754, 0.0
      %v787 = vmax.f32 %v755, 0.0
      %v788 = vmax.f32 %v756, 0.0
      %v789 = vmax.f32 %v757, 0.0
      %v790 = vmax.f32 %v758, 0.0
      %v791 = vmax.f32 %v759, 0.0
      %v792 = vmax.f32 %v760, 0.0
      %v793 = vmax.f32 %v761, 0.0
      %v794 = vmax.f32 %v762, 0.0
      %v795 = vmax.f32 %v763, 0.0
      %v796 = vmax.f32 %v764, 0.0
      %v797 = vmax.f32 %v765, 0.0
      %v798 = vmax.f32 %v766, 0.0
      %v799 = vmax.f32 %v767, 0.0
      %v800 = vmax.f32 %v768, 0.0
      %v801 = vmax.f32 %v769, 0.0
      %v802 = vmax.f32 %v770, 0.0
      %v803 = vmax.f32 %v771, 0.0
      %v804 = vmax.f32 %v772, 0.0
      %v805 = vmax.f32 %v773, 0.0
      %v806 = vmin.f32 %v774, 6.0
      %v807 = vmin.f32 %v775, 6.0
      %v808 = vmin.f32 %v776, 6.0
      %v809 = vmin.f32 %v777, 6.0
      %v810 = vmin.f32 %v778, 6.0
      %v811 = vmin.f32 %v779, 6.0
      %v812 = vmin.f32 %v780, 6.0
      %v813 = vmin.f32 %v781, 6.0
      %v814 = vmin.f32 %v782, 6.0
      %v815 = vmin.f32 %v783, 6.0
      %v816 = vmin.f32 %v784, 6.0
      %v817 = vmin.f32 %v785, 6.0
      %v818 = vmin.f32 %v786, 6.0
      %v819 = vmin.f32 %v787, 6.0
      %v820 = vmin.f32 %v788, 6.0
      %v821 = vmin.f32 %v789, 6.0
      %v822 = vmin.f32 %v790, 6.0
      %v823 = vmin.f32 %v791, 6.0
      %v824 = vmin.f32 %v792, 6.0
      %v825 = vmin.f32 %v793, 6.0
      %v826 = vmin.f32 %v794, 6.0
      %v827 = vmin.f32 %v795, 6.0
      %v828 = vmin.f32 %v796, 6.0
      %v829 = vmin.f32 %v797, 6.0
      %v830 = vmin.f32 %v798, 6.0
      %v831 = vmin.f32 %v799, 6.0
      %v832 = vmin.f32 %v800, 6.0
      %v833 = vmin.f32 %v801, 6.0
      %v834 = vmin.f32 %v802, 6.0
      %v835 = vmin.f32 %v803, 6.0
      %v836 = vmin.f32 %v804, 6.0
      %v837 = vmin.f32 %v805, 6.0
      %s838 = scalar_lea.vmem [#allocation2], 32
      %839 = vst [vmem:[%s838 + $0x8] sm:$0xff] %v806
      %840 = vst [vmem:[%s838 + $0x10] sm:$0xff] %v807
      %841 = vst [vmem:[%s838 + $0x28] sm:$0xff] %v808
      %842 = vst [vmem:[%s838 + $0x30] sm:$0xff] %v809
      %843 = vst [vmem:[%s838 + $0x48] sm:$0xff] %v810
      %844 = vst [vmem:[%s838 + $0x50] sm:$0xff] %v811
      %845 = vst [vmem:[%s838 + $0x68] sm:$0xff] %v812
      %846 = vst [vmem:[%s838 + $0x70] sm:$0xff] %v813
      %847 = vst [vmem:[%s838 + $0x88] sm:$0xff] %v814
      %848 = vst [vmem:[%s838 + $0x90] sm:$0xff] %v815
      %849 = vst [vmem:[%s838 + $0xa8] sm:$0xff] %v816
      %850 = vst [vmem:[%s838 + $0xb0] sm:$0xff] %v817
      %851 = vst [vmem:[%s838 + $0xc8] sm:$0xff] %v818
      %852 = vst [vmem:[%s838 + $0xd0] sm:$0xff] %v819
      %853 = vst [vmem:[%s838 + $0xe8] sm:$0xff] %v820
      %854 = vst [vmem:[%s838 + $0xf0] sm:$0xff] %v821
      %855 = vst [vmem:[%s838 + $0x108] sm:$0xff] %v822
      %856 = vst [vmem:[%s838 + $0x110] sm:$0xff] %v823
      %857 = vst [vmem:[%s838 + $0x128] sm:$0xff] %v824
      %858 = vst [vmem:[%s838 + $0x130] sm:$0xff] %v825
      %859 = vst [vmem:[%s838 + $0x148] sm:$0xff] %v826
      %860 = vst [vmem:[%s838 + $0x150] sm:$0xff] %v827
      %861 = vst [vmem:[%s838 + $0x168] sm:$0xff] %v828
      %862 = vst [vmem:[%s838 + $0x170] sm:$0xff] %v829
      %863 = vst [vmem:[%s838 + $0x188] sm:$0xff] %v830
      %864 = vst [vmem:[%s838 + $0x190] sm:$0xff] %v831
      %865 = vst [vmem:[%s838 + $0x1a8] sm:$0xff] %v832
      %866 = vst [vmem:[%s838 + $0x1b0] sm:$0xff] %v833
      %867 = vst [vmem:[%s838 + $0x1c8] sm:$0xff] %v834
      %868 = vst [vmem:[%s838 + $0x1d0] sm:$0xff] %v835
      %869 = vst [vmem:[%s838 + $0x1e8] sm:$0xff] %v836
      %870 = vst [vmem:[%s838 + $0x1f0] sm:$0xff] %v837
      %v871 = vld [vmem:[#allocation2] sm:$0xff]
      %v872 = vld [vmem:[#allocation2 + $0x8] sm:$0xff]
      %v873 = vld [vmem:[#allocation2 + $0x10] sm:$0xff]
      %v874 = vld [vmem:[#allocation2 + $0x18] sm:$0x1]
      %v875 = vld [vmem:[#allocation2 + $0x20] sm:$0xff]
      %v876 = vld [vmem:[#allocation2 + $0x28] sm:$0xff]
      %v877 = vld [vmem:[#allocation2 + $0x30] sm:$0xff]
      %v878 = vld [vmem:[#allocation2 + $0x38] sm:$0x1]
      %v879 = vld [vmem:[#allocation2 + $0x40] sm:$0xff]
      %v880 = vld [vmem:[#allocation2 + $0x48] sm:$0xff]
      %v881 = vld [vmem:[#allocation2 + $0x50] sm:$0xff]
      %v882 = vld [vmem:[#allocation2 + $0x58] sm:$0x1]
      %v883 = vld [vmem:[#allocation2 + $0x60] sm:$0xff]
      %v884 = vld [vmem:[#allocation2 + $0x68] sm:$0xff]
      %v885 = vld [vmem:[#allocation2 + $0x70] sm:$0xff]
      %v886 = vld [vmem:[#allocation2 + $0x78] sm:$0x1]
      %v887 = vld [vmem:[#allocation2 + $0x80] sm:$0xff]
      %v888 = vld [vmem:[#allocation2 + $0x88] sm:$0xff]
      %v889 = vld [vmem:[#allocation2 + $0x90] sm:$0xff]
      %v890 = vld [vmem:[#allocation2 + $0x98] sm:$0x1]
      %v891 = vld [vmem:[#allocation2 + $0xa0] sm:$0xff]
      %v892 = vld [vmem:[#allocation2 + $0xa8] sm:$0xff]
      %v893 = vld [vmem:[#allocation2 + $0xb0] sm:$0xff]
      %v894 = vld [vmem:[#allocation2 + $0xb8] sm:$0x1]
      %v895 = vld [vmem:[#allocation2 + $0xc0] sm:$0xff]
      %v896 = vld [vmem:[#allocation2 + $0xc8] sm:$0xff]
      %v897 = vld [vmem:[#allocation2 + $0xd0] sm:$0xff]
      %v898 = vld [vmem:[#allocation2 + $0xd8] sm:$0x1]
      %v899 = vld [vmem:[#allocation2 + $0xe0] sm:$0xff]
      %v900 = vld [vmem:[#allocation2 + $0xe8] sm:$0xff]
      %v901 = vld [vmem:[#allocation2 + $0xf0] sm:$0xff]
      %v902 = vld [vmem:[#allocation2 + $0xf8] sm:$0x1]
      %v903 = vld [vmem:[#allocation2 + $0x100] sm:$0xff]
      %v904 = vld [vmem:[#allocation2 + $0x108] sm:$0xff]
      %v905 = vld [vmem:[#allocation2 + $0x110] sm:$0xff]
      %v906 = vld [vmem:[#allocation2 + $0x118] sm:$0x1]
      %v907 = vld [vmem:[#allocation2 + $0x120] sm:$0xff]
      %v908 = vld [vmem:[#allocation2 + $0x128] sm:$0xff]
      %v909 = vld [vmem:[#allocation2 + $0x130] sm:$0xff]
      %v910 = vld [vmem:[#allocation2 + $0x138] sm:$0x1]
      %v911 = vld [vmem:[#allocation2 + $0x140] sm:$0xff]
      %v912 = vld [vmem:[#allocation2 + $0x148] sm:$0xff]
      %v913 = vld [vmem:[#allocation2 + $0x150] sm:$0xff]
      %v914 = vld [vmem:[#allocation2 + $0x158] sm:$0x1]
      %v915 = vld [vmem:[#allocation2 + $0x160] sm:$0xff]
      %v916 = vld [vmem:[#allocation2 + $0x168] sm:$0xff]
      %v917 = vld [vmem:[#allocation2 + $0x170] sm:$0xff]
      %v918 = vld [vmem:[#allocation2 + $0x178] sm:$0x1]
      %v919 = vld [vmem:[#allocation2 + $0x180] sm:$0xff]
      %v920 = vld [vmem:[#allocation2 + $0x188] sm:$0xff]
      %v921 = vld [vmem:[#allocation2 + $0x190] sm:$0xff]
      %v922 = vld [vmem:[#allocation2 + $0x198] sm:$0x1]
      %v923 = vld [vmem:[#allocation2 + $0x1a0] sm:$0xff]
      %v924 = vld [vmem:[#allocation2 + $0x1a8] sm:$0xff]
      %v925 = vld [vmem:[#allocation2 + $0x1b0] sm:$0xff]
      %v926 = vld [vmem:[#allocation2 + $0x1b8] sm:$0x1]
      %v927 = vld [vmem:[#allocation2 + $0x1c0] sm:$0xff]
      %v928 = vld [vmem:[#allocation2 + $0x1c8] sm:$0xff]
      %v929 = vld [vmem:[#allocation2 + $0x1d0] sm:$0xff]
      %v930 = vld [vmem:[#allocation2 + $0x1d8] sm:$0x1]
      %v931 = vld [vmem:[#allocation2 + $0x1e0] sm:$0xff]
      %v932 = vld [vmem:[#allocation2 + $0x1e8] sm:$0xff]
      %v933 = vld [vmem:[#allocation2 + $0x1f0] sm:$0xff]
      %v934 = vld [vmem:[#allocation2 + $0x1f8] sm:$0x1]
      %v935 = vld [vmem:[#allocation2 + $0x200] sm:$0xff]
      %v936 = vld [vmem:[#allocation2 + $0x208] sm:$0xff]
      %v937 = vld [vmem:[#allocation2 + $0x210] sm:$0xff]
      %v938 = vld [vmem:[#allocation2 + $0x218] sm:$0x1]
      %v939 = vld [vmem:[#allocation2 + $0x220] sm:$0xff]
      %v940 = vld [vmem:[#allocation2 + $0x228] sm:$0xff]
      %v941 = vld [vmem:[#allocation2 + $0x230] sm:$0xff]
      %v942 = vld [vmem:[#allocation2 + $0x238] sm:$0x1]
      %v943 = vld [vmem:[%s4] sm:$0xff]
      %v944 = vld [vmem:[%s4 + $0x8] sm:$0x1]
      %v945 = vlaneseq
      %v946 = vshrl.u32 %v945, 7
      %v947 = vsub.s32 0, %v946
      %v948 = vrot.slane %v943, %v947
      %v949 = vmul.f32 %v871, %v948
      %v950 = vmul.f32 %v872, %v948
      %v951 = vmul.f32 %v873, %v948
      %v952 = vmul.f32 %v875, %v948
      %v953 = vmul.f32 %v876, %v948
      %v954 = vmul.f32 %v877, %v948
      %v955 = vmul.f32 %v879, %v948
      %v956 = vmul.f32 %v880, %v948
      %v957 = vmul.f32 %v881, %v948
      %v958 = vmul.f32 %v883, %v948
      %v959 = vmul.f32 %v884, %v948
      %v960 = vmul.f32 %v885, %v948
      %v961 = vmul.f32 %v887, %v948
      %v962 = vmul.f32 %v888, %v948
      %v963 = vmul.f32 %v889, %v948
      %v964 = vmul.f32 %v891, %v948
      %v965 = vmul.f32 %v892, %v948
      %v966 = vmul.f32 %v893, %v948
      %v967 = vmul.f32 %v895, %v948
      %v968 = vmul.f32 %v896, %v948
      %v969 = vmul.f32 %v897, %v948
      %v970 = vmul.f32 %v899, %v948
      %v971 = vmul.f32 %v900, %v948
      %v972 = vmul.f32 %v901, %v948
      %v973 = vmul.f32 %v903, %v948
      %v974 = vmul.f32 %v904, %v948
      %v975 = vmul.f32 %v905, %v948
      %v976 = vmul.f32 %v907, %v948
      %v977 = vmul.f32 %v908, %v948
      %v978 = vmul.f32 %v909, %v948
      %v979 = vmul.f32 %v911, %v948
      %v980 = vmul.f32 %v912, %v948
      %v981 = vmul.f32 %v913, %v948
      %v982 = vmul.f32 %v915, %v948
      %v983 = vmul.f32 %v916, %v948
      %v984 = vmul.f32 %v917, %v948
      %v985 = vmul.f32 %v919, %v948
      %v986 = vmul.f32 %v920, %v948
      %v987 = vmul.f32 %v921, %v948
      %v988 = vmul.f32 %v923, %v948
      %v989 = vmul.f32 %v924, %v948
      %v990 = vmul.f32 %v925, %v948
      %v991 = vmul.f32 %v927, %v948
      %v992 = vmul.f32 %v928, %v948
      %v993 = vmul.f32 %v929, %v948
      %v994 = vmul.f32 %v931, %v948
      %v995 = vmul.f32 %v932, %v948
      %v996 = vmul.f32 %v933, %v948
      %v997 = vadd.f32 %v949, 0.0
      %v998 = vadd.f32 %v950, 0.0
      %v999 = vadd.f32 %v951, 0.0
      %v1000 = vadd.f32 %v952, 0.0
      %v1001 = vadd.f32 %v953, 0.0
      %v1002 = vadd.f32 %v954, 0.0
      %v1003 = vadd.f32 %v955, 0.0
      %v1004 = vadd.f32 %v956, 0.0
      %v1005 = vadd.f32 %v957, 0.0
      %v1006 = vadd.f32 %v958, 0.0
      %v1007 = vadd.f32 %v959, 0.0
      %v1008 = vadd.f32 %v960, 0.0
      %v1009 = vadd.f32 %v961, 0.0
      %v1010 = vadd.f32 %v962, 0.0
      %v1011 = vadd.f32 %v963, 0.0
      %v1012 = vadd.f32 %v964, 0.0
      %v1013 = vadd.f32 %v965, 0.0
      %v1014 = vadd.f32 %v966, 0.0
      %v1015 = vadd.f32 %v967, 0.0
      %v1016 = vadd.f32 %v968, 0.0
      %v1017 = vadd.f32 %v969, 0.0
      %v1018 = vadd.f32 %v970, 0.0
      %v1019 = vadd.f32 %v971, 0.0
      %v1020 = vadd.f32 %v972, 0.0
      %v1021 = vadd.f32 %v973, 0.0
      %v1022 = vadd.f32 %v974, 0.0
      %v1023 = vadd.f32 %v975, 0.0
      %v1024 = vadd.f32 %v976, 0.0
      %v1025 = vadd.f32 %v977, 0.0
      %v1026 = vadd.f32 %v978, 0.0
      %v1027 = vadd.f32 %v979, 0.0
      %v1028 = vadd.f32 %v980, 0.0
      %v1029 = vadd.f32 %v981, 0.0
      %v1030 = vadd.f32 %v982, 0.0
      %v1031 = vadd.f32 %v983, 0.0
      %v1032 = vadd.f32 %v984, 0.0
      %v1033 = vadd.f32 %v985, 0.0
      %v1034 = vadd.f32 %v986, 0.0
      %v1035 = vadd.f32 %v987, 0.0
      %v1036 = vadd.f32 %v988, 0.0
      %v1037 = vadd.f32 %v989, 0.0
      %v1038 = vadd.f32 %v990, 0.0
      %v1039 = vadd.f32 %v991, 0.0
      %v1040 = vadd.f32 %v992, 0.0
      %v1041 = vadd.f32 %v993, 0.0
      %v1042 = vadd.f32 %v994, 0.0
      %v1043 = vadd.f32 %v995, 0.0
      %v1044 = vadd.f32 %v996, 0.0
      %v1045 = vlaneseq
      %v1046 = vshrl.u32 %v1045, 7
      %v1047 = vsub.s32 1, %v1046
      %v1048 = vrot.slane %v943, %v1047
      %v1049 = vmul.f32 %v872, %v1048
      %v1050 = vmul.f32 %v873, %v1048
      %v1051 = vmul.f32 %v876, %v1048
      %v1052 = vmul.f32 %v877, %v1048
      %v1053 = vmul.f32 %v880, %v1048
      %v1054 = vmul.f32 %v881, %v1048
      %v1055 = vmul.f32 %v884, %v1048
      %v1056 = vmul.f32 %v885, %v1048
      %v1057 = vmul.f32 %v888, %v1048
      %v1058 = vmul.f32 %v889, %v1048
      %v1059 = vmul.f32 %v892, %v1048
      %v1060 = vmul.f32 %v893, %v1048
      %v1061 = vmul.f32 %v896, %v1048
      %v1062 = vmul.f32 %v897, %v1048
      %v1063 = vmul.f32 %v900, %v1048
      %v1064 = vmul.f32 %v901, %v1048
      %v1065 = vmul.f32 %v904, %v1048
      %v1066 = vmul.f32 %v905, %v1048
      %v1067 = vmul.f32 %v908, %v1048
      %v1068 = vmul.f32 %v909, %v1048
      %v1069 = vmul.f32 %v912, %v1048
      %v1070 = vmul.f32 %v913, %v1048
      %v1071 = vmul.f32 %v916, %v1048
      %v1072 = vmul.f32 %v917, %v1048
      %v1073 = vmul.f32 %v920, %v1048
      %v1074 = vmul.f32 %v921, %v1048
      %v1075 = vmul.f32 %v924, %v1048
      %v1076 = vmul.f32 %v925, %v1048
      %v1077 = vmul.f32 %v928, %v1048
      %v1078 = vmul.f32 %v929, %v1048
      %v1079 = vmul.f32 %v932, %v1048
      %v1080 = vmul.f32 %v933, %v1048
      %vm1113 = vcmask 1046528
      %v1114 = vrot.slane %v1049, 1
      %v1115 = vrot.slane %v1050, 1
      %v1116 = vsel %vm1113, %v1114, %v1115
      %v1117 = vrot.slane %v1051, 1
      %v1118 = vrot.slane %v1052, 1
      %v1119 = vsel %vm1113, %v1117, %v1118
      %v1120 = vrot.slane %v1053, 1
      %v1121 = vrot.slane %v1054, 1
      %v1122 = vsel %vm1113, %v1120, %v1121
      %v1123 = vrot.slane %v1055, 1
      %v1124 = vrot.slane %v1056, 1
      %v1125 = vsel %vm1113, %v1123, %v1124
      %v1126 = vrot.slane %v1057, 1
      %v1127 = vrot.slane %v1058, 1
      %v1128 = vsel %vm1113, %v1126, %v1127
      %v1129 = vrot.slane %v1059, 1
      %v1130 = vrot.slane %v1060, 1
      %v1131 = vsel %vm1113, %v1129, %v1130
      %v1132 = vrot.slane %v1061, 1
      %v1133 = vrot.slane %v1062, 1
      %v1134 = vsel %vm1113, %v1132, %v1133
      %v1135 = vrot.slane %v1063, 1
      %v1136 = vrot.slane %v1064, 1
      %v1137 = vsel %vm1113, %v1135, %v1136
      %v1138 = vrot.slane %v1065, 1
      %v1139 = vrot.slane %v1066, 1
      %v1140 = vsel %vm1113, %v1138, %v1139
      %v1141 = vrot.slane %v1067, 1
      %v1142 = vrot.slane %v1068, 1
      %v1143 = vsel %vm1113, %v1141, %v1142
      %v1144 = vrot.slane %v1069, 1
      %v1145 = vrot.slane %v1070, 1
      %v1146 = vsel %vm1113, %v1144, %v1145
      %v1147 = vrot.slane %v1071, 1
      %v1148 = vrot.slane %v1072, 1
      %v1149 = vsel %vm1113, %v1147, %v1148
      %v1150 = vrot.slane %v1073, 1
      %v1151 = vrot.slane %v1074, 1
      %v1152 = vsel %vm1113, %v1150, %v1151
      %v1153 = vrot.slane %v1075, 1
      %v1154 = vrot.slane %v1076, 1
      %v1155 = vsel %vm1113, %v1153, %v1154
      %v1156 = vrot.slane %v1077, 1
      %v1157 = vrot.slane %v1078, 1
      %v1158 = vsel %vm1113, %v1156, %v1157
      %v1159 = vrot.slane %v1079, 1
      %v1160 = vrot.slane %v1080, 1
      %v1161 = vsel %vm1113, %v1159, %v1160
      %v1210 = vadd.f32 %v997, %v1114
      %v1211 = vadd.f32 %v998, %v1116
      %v1212 = vadd.f32 %v999, %v1115
      %v1213 = vadd.f32 %v1000, %v1117
      %v1214 = vadd.f32 %v1001, %v1119
      %v1215 = vadd.f32 %v1002, %v1118
      %v1216 = vadd.f32 %v1003, %v1120
      %v1217 = vadd.f32 %v1004, %v1122
      %v1218 = vadd.f32 %v1005, %v1121
      %v1219 = vadd.f32 %v1006, %v1123
      %v1220 = vadd.f32 %v1007, %v1125
      %v1221 = vadd.f32 %v1008, %v1124
      %v1222 = vadd.f32 %v1009, %v1126
      %v1223 = vadd.f32 %v1010, %v1128
      %v1224 = vadd.f32 %v1011, %v1127
      %v1225 = vadd.f32 %v1012, %v1129
      %v1226 = vadd.f32 %v1013, %v1131
      %v1227 = vadd.f32 %v1014, %v1130
      %v1228 = vadd.f32 %v1015, %v1132
      %v1229 = vadd.f32 %v1016, %v1134
      %v1230 = vadd.f32 %v1017, %v1133
      %v1231 = vadd.f32 %v1018, %v1135
      %v1232 = vadd.f32 %v1019, %v1137
      %v1233 = vadd.f32 %v1020, %v1136
      %v1234 = vadd.f32 %v1021, %v1138
      %v1235 = vadd.f32 %v1022, %v1140
      %v1236 = vadd.f32 %v1023, %v1139
      %v1237 = vadd.f32 %v1024, %v1141
      %v1238 = vadd.f32 %v1025, %v1143
      %v1239 = vadd.f32 %v1026, %v1142
      %v1240 = vadd.f32 %v1027, %v1144
      %v1241 = vadd.f32 %v1028, %v1146
      %v1242 = vadd.f32 %v1029, %v1145
      %v1243 = vadd.f32 %v1030, %v1147
      %v1244 = vadd.f32 %v1031, %v1149
      %v1245 = vadd.f32 %v1032, %v1148
      %v1246 = vadd.f32 %v1033, %v1150
      %v1247 = vadd.f32 %v1034, %v1152
      %v1248 = vadd.f32 %v1035, %v1151
      %v1249 = vadd.f32 %v1036, %v1153
      %v1250 = vadd.f32 %v1037, %v1155
      %v1251 = vadd.f32 %v1038, %v1154
      %v1252 = vadd.f32 %v1039, %v1156
      %v1253 = vadd.f32 %v1040, %v1158
      %v1254 = vadd.f32 %v1041, %v1157
      %v1255 = vadd.f32 %v1042, %v1159
      %v1256 = vadd.f32 %v1043, %v1161
      %v1257 = vadd.f32 %v1044, %v1160
      %v1258 = vlaneseq
      %v1259 = vshrl.u32 %v1258, 7
      %v1260 = vsub.s32 2, %v1259
      %v1261 = vrot.slane %v943, %v1260
      %v1262 = vmul.f32 %v872, %v1261
      %v1263 = vmul.f32 %v873, %v1261
      %v1264 = vmul.f32 %v874, %v1261
      %v1265 = vmul.f32 %v876, %v1261
      %v1266 = vmul.f32 %v877, %v1261
      %v1267 = vmul.f32 %v878, %v1261
      %v1268 = vmul.f32 %v880, %v1261
      %v1269 = vmul.f32 %v881, %v1261
      %v1270 = vmul.f32 %v882, %v1261
      %v1271 = vmul.f32 %v884, %v1261
      %v1272 = vmul.f32 %v885, %v1261
      %v1273 = vmul.f32 %v886, %v1261
      %v1274 = vmul.f32 %v888, %v1261
      %v1275 = vmul.f32 %v889, %v1261
      %v1276 = vmul.f32 %v890, %v1261
      %v1277 = vmul.f32 %v892, %v1261
      %v1278 = vmul.f32 %v893, %v1261
      %v1279 = vmul.f32 %v894, %v1261
      %v1280 = vmul.f32 %v896, %v1261
      %v1281 = vmul.f32 %v897, %v1261
      %v1282 = vmul.f32 %v898, %v1261
      %v1283 = vmul.f32 %v900, %v1261
      %v1284 = vmul.f32 %v901, %v1261
      %v1285 = vmul.f32 %v902, %v1261
      %v1286 = vmul.f32 %v904, %v1261
      %v1287 = vmul.f32 %v905, %v1261
      %v1288 = vmul.f32 %v906, %v1261
      %v1289 = vmul.f32 %v908, %v1261
      %v1290 = vmul.f32 %v909, %v1261
      %v1291 = vmul.f32 %v910, %v1261
      %v1292 = vmul.f32 %v912, %v1261
      %v1293 = vmul.f32 %v913, %v1261
      %v1294 = vmul.f32 %v914, %v1261
      %v1295 = vmul.f32 %v916, %v1261
      %v1296 = vmul.f32 %v917, %v1261
      %v1297 = vmul.f32 %v918, %v1261
      %v1298 = vmul.f32 %v920, %v1261
      %v1299 = vmul.f32 %v921, %v1261
      %v1300 = vmul.f32 %v922, %v1261
      %v1301 = vmul.f32 %v924, %v1261
      %v1302 = vmul.f32 %v925, %v1261
      %v1303 = vmul.f32 %v926, %v1261
      %v1304 = vmul.f32 %v928, %v1261
      %v1305 = vmul.f32 %v929, %v1261
      %v1306 = vmul.f32 %v930, %v1261
      %v1307 = vmul.f32 %v932, %v1261
      %v1308 = vmul.f32 %v933, %v1261
      %v1309 = vmul.f32 %v934, %v1261
      %vm1358 = vcmask 1045504
      %v1359 = vrot.slane %v1262, 2
      %v1360 = vrot.slane %v1263, 2
      %v1361 = vsel %vm1358, %v1359, %v1360
      %v1362 = vrot.slane %v1264, 2
      %v1363 = vsel %vm1358, %v1360, %v1362
      %v1364 = vrot.slane %v1265, 2
      %v1365 = vrot.slane %v1266, 2
      %v1366 = vsel %vm1358, %v1364, %v1365
      %v1367 = vrot.slane %v1267, 2
      %v1368 = vsel %vm1358, %v1365, %v1367
      %v1369 = vrot.slane %v1268, 2
      %v1370 = vrot.slane %v1269, 2
      %v1371 = vsel %vm1358, %v1369, %v1370
      %v1372 = vrot.slane %v1270, 2
      %v1373 = vsel %vm1358, %v1370, %v1372
      %v1374 = vrot.slane %v1271, 2
      %v1375 = vrot.slane %v1272, 2
      %v1376 = vsel %vm1358, %v1374, %v1375
      %v1377 = vrot.slane %v1273, 2
      %v1378 = vsel %vm1358, %v1375, %v1377
      %v1379 = vrot.slane %v1274, 2
      %v1380 = vrot.slane %v1275, 2
      %v1381 = vsel %vm1358, %v1379, %v1380
      %v1382 = vrot.slane %v1276, 2
      %v1383 = vsel %vm1358, %v1380, %v1382
      %v1384 = vrot.slane %v1277, 2
      %v1385 = vrot.slane %v1278, 2
      %v1386 = vsel %vm1358, %v1384, %v1385
      %v1387 = vrot.slane %v1279, 2
      %v1388 = vsel %vm1358, %v1385, %v1387
      %v1389 = vrot.slane %v1280, 2
      %v1390 = vrot.slane %v1281, 2
      %v1391 = vsel %vm1358, %v1389, %v1390
      %v1392 = vrot.slane %v1282, 2
      %v1393 = vsel %vm1358, %v1390, %v1392
      %v1394 = vrot.slane %v1283, 2
      %v1395 = vrot.slane %v1284, 2
      %v1396 = vsel %vm1358, %v1394, %v1395
      %v1397 = vrot.slane %v1285, 2
      %v1398 = vsel %vm1358, %v1395, %v1397
      %v1399 = vrot.slane %v1286, 2
      %v1400 = vrot.slane %v1287, 2
      %v1401 = vsel %vm1358, %v1399, %v1400
      %v1402 = vrot.slane %v1288, 2
      %v1403 = vsel %vm1358, %v1400, %v1402
      %v1404 = vrot.slane %v1289, 2
      %v1405 = vrot.slane %v1290, 2
      %v1406 = vsel %vm1358, %v1404, %v1405
      %v1407 = vrot.slane %v1291, 2
      %v1408 = vsel %vm1358, %v1405, %v1407
      %v1409 = vrot.slane %v1292, 2
      %v1410 = vrot.slane %v1293, 2
      %v1411 = vsel %vm1358, %v1409, %v1410
      %v1412 = vrot.slane %v1294, 2
      %v1413 = vsel %vm1358, %v1410, %v1412
      %v1414 = vrot.slane %v1295, 2
      %v1415 = vrot.slane %v1296, 2
      %v1416 = vsel %vm1358, %v1414, %v1415
      %v1417 = vrot.slane %v1297, 2
      %v1418 = vsel %vm1358, %v1415, %v1417
      %v1419 = vrot.slane %v1298, 2
      %v1420 = vrot.slane %v1299, 2
      %v1421 = vsel %vm1358, %v1419, %v1420
      %v1422 = vrot.slane %v1300, 2
      %v1423 = vsel %vm1358, %v1420, %v1422
      %v1424 = vrot.slane %v1301, 2
      %v1425 = vrot.slane %v1302, 2
      %v1426 = vsel %vm1358, %v1424, %v1425
      %v1427 = vrot.slane %v1303, 2
      %v1428 = vsel %vm1358, %v1425, %v1427
      %v1429 = vrot.slane %v1304, 2
      %v1430 = vrot.slane %v1305, 2
      %v1431 = vsel %vm1358, %v1429, %v1430
      %v1432 = vrot.slane %v1306, 2
      %v1433 = vsel %vm1358, %v1430, %v1432
      %v1434 = vrot.slane %v1307, 2
      %v1435 = vrot.slane %v1308, 2
      %v1436 = vsel %vm1358, %v1434, %v1435
      %v1437 = vrot.slane %v1309, 2
      %v1438 = vsel %vm1358, %v1435, %v1437
      %v1487 = vadd.f32 %v1210, %v1359
      %v1488 = vadd.f32 %v1211, %v1361
      %v1489 = vadd.f32 %v1212, %v1363
      %v1490 = vadd.f32 %v1213, %v1364
      %v1491 = vadd.f32 %v1214, %v1366
      %v1492 = vadd.f32 %v1215, %v1368
      %v1493 = vadd.f32 %v1216, %v1369
      %v1494 = vadd.f32 %v1217, %v1371
      %v1495 = vadd.f32 %v1218, %v1373
      %v1496 = vadd.f32 %v1219, %v1374
      %v1497 = vadd.f32 %v1220, %v1376
      %v1498 = vadd.f32 %v1221, %v1378
      %v1499 = vadd.f32 %v1222, %v1379
      %v1500 = vadd.f32 %v1223, %v1381
      %v1501 = vadd.f32 %v1224, %v1383
      %v1502 = vadd.f32 %v1225, %v1384
      %v1503 = vadd.f32 %v1226, %v1386
      %v1504 = vadd.f32 %v1227, %v1388
      %v1505 = vadd.f32 %v1228, %v1389
      %v1506 = vadd.f32 %v1229, %v1391
      %v1507 = vadd.f32 %v1230, %v1393
      %v1508 = vadd.f32 %v1231, %v1394
      %v1509 = vadd.f32 %v1232, %v1396
      %v1510 = vadd.f32 %v1233, %v1398
      %v1511 = vadd.f32 %v1234, %v1399
      %v1512 = vadd.f32 %v1235, %v1401
      %v1513 = vadd.f32 %v1236, %v1403
      %v1514 = vadd.f32 %v1237, %v1404
      %v1515 = vadd.f32 %v1238, %v1406
      %v1516 = vadd.f32 %v1239, %v1408
      %v1517 = vadd.f32 %v1240, %v1409
      %v1518 = vadd.f32 %v1241, %v1411
      %v1519 = vadd.f32 %v1242, %v1413
      %v1520 = vadd.f32 %v1243, %v1414
      %v1521 = vadd.f32 %v1244, %v1416
      %v1522 = vadd.f32 %v1245, %v1418
      %v1523 = vadd.f32 %v1246, %v1419
      %v1524 = vadd.f32 %v1247, %v1421
      %v1525 = vadd.f32 %v1248, %v1423
      %v1526 = vadd.f32 %v1249, %v1424
      %v1527 = vadd.f32 %v1250, %v1426
      %v1528 = vadd.f32 %v1251, %v1428
      %v1529 = vadd.f32 %v1252, %v1429
      %v1530 = vadd.f32 %v1253, %v1431
      %v1531 = vadd.f32 %v1254, %v1433
      %v1532 = vadd.f32 %v1255, %v1434
      %v1533 = vadd.f32 %v1256, %v1436
      %v1534 = vadd.f32 %v1257, %v1438
      %v1535 = vlaneseq
      %v1536 = vshrl.u32 %v1535, 7
      %v1537 = vsub.s32 3, %v1536
      %v1538 = vrot.slane %v943, %v1537
      %v1539 = vmul.f32 %v875, %v1538
      %v1540 = vmul.f32 %v876, %v1538
      %v1541 = vmul.f32 %v877, %v1538
      %v1542 = vmul.f32 %v879, %v1538
      %v1543 = vmul.f32 %v880, %v1538
      %v1544 = vmul.f32 %v881, %v1538
      %v1545 = vmul.f32 %v883, %v1538
      %v1546 = vmul.f32 %v884, %v1538
      %v1547 = vmul.f32 %v885, %v1538
      %v1548 = vmul.f32 %v887, %v1538
      %v1549 = vmul.f32 %v888, %v1538
      %v1550 = vmul.f32 %v889, %v1538
      %v1551 = vmul.f32 %v891, %v1538
      %v1552 = vmul.f32 %v892, %v1538
      %v1553 = vmul.f32 %v893, %v1538
      %v1554 = vmul.f32 %v895, %v1538
      %v1555 = vmul.f32 %v896, %v1538
      %v1556 = vmul.f32 %v897, %v1538
      %v1557 = vmul.f32 %v899, %v1538
      %v1558 = vmul.f32 %v900, %v1538
      %v1559 = vmul.f32 %v901, %v1538
      %v1560 = vmul.f32 %v903, %v1538
      %v1561 = vmul.f32 %v904, %v1538
      %v1562 = vmul.f32 %v905, %v1538
      %v1563 = vmul.f32 %v907, %v1538
      %v1564 = vmul.f32 %v908, %v1538
      %v1565 = vmul.f32 %v909, %v1538
      %v1566 = vmul.f32 %v911, %v1538
      %v1567 = vmul.f32 %v912, %v1538
      %v1568 = vmul.f32 %v913, %v1538
      %v1569 = vmul.f32 %v915, %v1538
      %v1570 = vmul.f32 %v916, %v1538
      %v1571 = vmul.f32 %v917, %v1538
      %v1572 = vmul.f32 %v919, %v1538
      %v1573 = vmul.f32 %v920, %v1538
      %v1574 = vmul.f32 %v921, %v1538
      %v1575 = vmul.f32 %v923, %v1538
      %v1576 = vmul.f32 %v924, %v1538
      %v1577 = vmul.f32 %v925, %v1538
      %v1578 = vmul.f32 %v927, %v1538
      %v1579 = vmul.f32 %v928, %v1538
      %v1580 = vmul.f32 %v929, %v1538
      %v1581 = vmul.f32 %v931, %v1538
      %v1582 = vmul.f32 %v932, %v1538
      %v1583 = vmul.f32 %v933, %v1538
      %v1584 = vmul.f32 %v935, %v1538
      %v1585 = vmul.f32 %v936, %v1538
      %v1586 = vmul.f32 %v937, %v1538
      %v1587 = vadd.f32 %v1487, %v1539
      %v1588 = vadd.f32 %v1488, %v1540
      %v1589 = vadd.f32 %v1489, %v1541
      %v1590 = vadd.f32 %v1490, %v1542
      %v1591 = vadd.f32 %v1491, %v1543
      %v1592 = vadd.f32 %v1492, %v1544
      %v1593 = vadd.f32 %v1493, %v1545
      %v1594 = vadd.f32 %v1494, %v1546
      %v1595 = vadd.f32 %v1495, %v1547
      %v1596 = vadd.f32 %v1496, %v1548
      %v1597 = vadd.f32 %v1497, %v1549
      %v1598 = vadd.f32 %v1498, %v1550
      %v1599 = vadd.f32 %v1499, %v1551
      %v1600 = vadd.f32 %v1500, %v1552
      %v1601 = vadd.f32 %v1501, %v1553
      %v1602 = vadd.f32 %v1502, %v1554
      %v1603 = vadd.f32 %v1503, %v1555
      %v1604 = vadd.f32 %v1504, %v1556
      %v1605 = vadd.f32 %v1505, %v1557
      %v1606 = vadd.f32 %v1506, %v1558
      %v1607 = vadd.f32 %v1507, %v1559
      %v1608 = vadd.f32 %v1508, %v1560
      %v1609 = vadd.f32 %v1509, %v1561
      %v1610 = vadd.f32 %v1510, %v1562
      %v1611 = vadd.f32 %v1511, %v1563
      %v1612 = vadd.f32 %v1512, %v1564
      %v1613 = vadd.f32 %v1513, %v1565
      %v1614 = vadd.f32 %v1514, %v1566
      %v1615 = vadd.f32 %v1515, %v1567
      %v1616 = vadd.f32 %v1516, %v1568
      %v1617 = vadd.f32 %v1517, %v1569
      %v1618 = vadd.f32 %v1518, %v1570
      %v1619 = vadd.f32 %v1519, %v1571
      %v1620 = vadd.f32 %v1520, %v1572
      %v1621 = vadd.f32 %v1521, %v1573
      %v1622 = vadd.f32 %v1522, %v1574
      %v1623 = vadd.f32 %v1523, %v1575
      %v1624 = vadd.f32 %v1524, %v1576
      %v1625 = vadd.f32 %v1525, %v1577
      %v1626 = vadd.f32 %v1526, %v1578
      %v1627 = vadd.f32 %v1527, %v1579
      %v1628 = vadd.f32 %v1528, %v1580
      %v1629 = vadd.f32 %v1529, %v1581
      %v1630 = vadd.f32 %v1530, %v1582
      %v1631 = vadd.f32 %v1531, %v1583
      %v1632 = vadd.f32 %v1532, %v1584
      %v1633 = vadd.f32 %v1533, %v1585
      %v1634 = vadd.f32 %v1534, %v1586
      %v1635 = vlaneseq
      %v1636 = vshrl.u32 %v1635, 7
      %v1637 = vsub.s32 4, %v1636
      %v1638 = vrot.slane %v943, %v1637
      %v1639 = vmul.f32 %v876, %v1638
      %v1640 = vmul.f32 %v877, %v1638
      %v1641 = vmul.f32 %v880, %v1638
      %v1642 = vmul.f32 %v881, %v1638
      %v1643 = vmul.f32 %v884, %v1638
      %v1644 = vmul.f32 %v885, %v1638
      %v1645 = vmul.f32 %v888, %v1638
      %v1646 = vmul.f32 %v889, %v1638
      %v1647 = vmul.f32 %v892, %v1638
      %v1648 = vmul.f32 %v893, %v1638
      %v1649 = vmul.f32 %v896, %v1638
      %v1650 = vmul.f32 %v897, %v1638
      %v1651 = vmul.f32 %v900, %v1638
      %v1652 = vmul.f32 %v901, %v1638
      %v1653 = vmul.f32 %v904, %v1638
      %v1654 = vmul.f32 %v905, %v1638
      %v1655 = vmul.f32 %v908, %v1638
      %v1656 = vmul.f32 %v909, %v1638
      %v1657 = vmul.f32 %v912, %v1638
      %v1658 = vmul.f32 %v913, %v1638
      %v1659 = vmul.f32 %v916, %v1638
      %v1660 = vmul.f32 %v917, %v1638
      %v1661 = vmul.f32 %v920, %v1638
      %v1662 = vmul.f32 %v921, %v1638
      %v1663 = vmul.f32 %v924, %v1638
      %v1664 = vmul.f32 %v925, %v1638
      %v1665 = vmul.f32 %v928, %v1638
      %v1666 = vmul.f32 %v929, %v1638
      %v1667 = vmul.f32 %v932, %v1638
      %v1668 = vmul.f32 %v933, %v1638
      %v1669 = vmul.f32 %v936, %v1638
      %v1670 = vmul.f32 %v937, %v1638
      %v1703 = vrot.slane %v1639, 1
      %v1704 = vrot.slane %v1640, 1
      %v1705 = vsel %vm1113, %v1703, %v1704
      %v1706 = vrot.slane %v1641, 1
      %v1707 = vrot.slane %v1642, 1
      %v1708 = vsel %vm1113, %v1706, %v1707
      %v1709 = vrot.slane %v1643, 1
      %v1710 = vrot.slane %v1644, 1
      %v1711 = vsel %vm1113, %v1709, %v1710
      %v1712 = vrot.slane %v1645, 1
      %v1713 = vrot.slane %v1646, 1
      %v1714 = vsel %vm1113, %v1712, %v1713
      %v1715 = vrot.slane %v1647, 1
      %v1716 = vrot.slane %v1648, 1
      %v1717 = vsel %vm1113, %v1715, %v1716
      %v1718 = vrot.slane %v1649, 1
      %v1719 = vrot.slane %v1650, 1
      %v1720 = vsel %vm1113, %v1718, %v1719
      %v1721 = vrot.slane %v1651, 1
      %v1722 = vrot.slane %v1652, 1
      %v1723 = vsel %vm1113, %v1721, %v1722
      %v1724 = vrot.slane %v1653, 1
      %v1725 = vrot.slane %v1654, 1
      %v1726 = vsel %vm1113, %v1724, %v1725
      %v1727 = vrot.slane %v1655, 1
      %v1728 = vrot.slane %v1656, 1
      %v1729 = vsel %vm1113, %v1727, %v1728
      %v1730 = vrot.slane %v1657, 1
      %v1731 = vrot.slane %v1658, 1
      %v1732 = vsel %vm1113, %v1730, %v1731
      %v1733 = vrot.slane %v1659, 1
      %v1734 = vrot.slane %v1660, 1
      %v1735 = vsel %vm1113, %v1733, %v1734
      %v1736 = vrot.slane %v1661, 1
      %v1737 = vrot.slane %v1662, 1
      %v1738 = vsel %vm1113, %v1736, %v1737
      %v1739 = vrot.slane %v1663, 1
      %v1740 = vrot.slane %v1664, 1
      %v1741 = vsel %vm1113, %v1739, %v1740
      %v1742 = vrot.slane %v1665, 1
      %v1743 = vrot.slane %v1666, 1
      %v1744 = vsel %vm1113, %v1742, %v1743
      %v1745 = vrot.slane %v1667, 1
      %v1746 = vrot.slane %v1668, 1
      %v1747 = vsel %vm1113, %v1745, %v1746
      %v1748 = vrot.slane %v1669, 1
      %v1749 = vrot.slane %v1670, 1
      %v1750 = vsel %vm1113, %v1748, %v1749
      %v1799 = vadd.f32 %v1587, %v1703
      %v1800 = vadd.f32 %v1588, %v1705
      %v1801 = vadd.f32 %v1589, %v1704
      %v1802 = vadd.f32 %v1590, %v1706
      %v1803 = vadd.f32 %v1591, %v1708
      %v1804 = vadd.f32 %v1592, %v1707
      %v1805 = vadd.f32 %v1593, %v1709
      %v1806 = vadd.f32 %v1594, %v1711
      %v1807 = vadd.f32 %v1595, %v1710
      %v1808 = vadd.f32 %v1596, %v1712
      %v1809 = vadd.f32 %v1597, %v1714
      %v1810 = vadd.f32 %v1598, %v1713
      %v1811 = vadd.f32 %v1599, %v1715
      %v1812 = vadd.f32 %v1600, %v1717
      %v1813 = vadd.f32 %v1601, %v1716
      %v1814 = vadd.f32 %v1602, %v1718
      %v1815 = vadd.f32 %v1603, %v1720
      %v1816 = vadd.f32 %v1604, %v1719
      %v1817 = vadd.f32 %v1605, %v1721
      %v1818 = vadd.f32 %v1606, %v1723
      %v1819 = vadd.f32 %v1607, %v1722
      %v1820 = vadd.f32 %v1608, %v1724
      %v1821 = vadd.f32 %v1609, %v1726
      %v1822 = vadd.f32 %v1610, %v1725
      %v1823 = vadd.f32 %v1611, %v1727
      %v1824 = vadd.f32 %v1612, %v1729
      %v1825 = vadd.f32 %v1613, %v1728
      %v1826 = vadd.f32 %v1614, %v1730
      %v1827 = vadd.f32 %v1615, %v1732
      %v1828 = vadd.f32 %v1616, %v1731
      %v1829 = vadd.f32 %v1617, %v1733
      %v1830 = vadd.f32 %v1618, %v1735
      %v1831 = vadd.f32 %v1619, %v1734
      %v1832 = vadd.f32 %v1620, %v1736
      %v1833 = vadd.f32 %v1621, %v1738
      %v1834 = vadd.f32 %v1622, %v1737
      %v1835 = vadd.f32 %v1623, %v1739
      %v1836 = vadd.f32 %v1624, %v1741
      %v1837 = vadd.f32 %v1625, %v1740
      %v1838 = vadd.f32 %v1626, %v1742
      %v1839 = vadd.f32 %v1627, %v1744
      %v1840 = vadd.f32 %v1628, %v1743
      %v1841 = vadd.f32 %v1629, %v1745
      %v1842 = vadd.f32 %v1630, %v1747
      %v1843 = vadd.f32 %v1631, %v1746
      %v1844 = vadd.f32 %v1632, %v1748
      %v1845 = vadd.f32 %v1633, %v1750
      %v1846 = vadd.f32 %v1634, %v1749
      %v1847 = vlaneseq
      %v1848 = vshrl.u32 %v1847, 7
      %v1849 = vsub.s32 5, %v1848
      %v1850 = vrot.slane %v943, %v1849
      %v1851 = vmul.f32 %v876, %v1850
      %v1852 = vmul.f32 %v877, %v1850
      %v1853 = vmul.f32 %v878, %v1850
      %v1854 = vmul.f32 %v880, %v1850
      %v1855 = vmul.f32 %v881, %v1850
      %v1856 = vmul.f32 %v882, %v1850
      %v1857 = vmul.f32 %v884, %v1850
      %v1858 = vmul.f32 %v885, %v1850
      %v1859 = vmul.f32 %v886, %v1850
      %v1860 = vmul.f32 %v888, %v1850
      %v1861 = vmul.f32 %v889, %v1850
      %v1862 = vmul.f32 %v890, %v1850
      %v1863 = vmul.f32 %v892, %v1850
      %v1864 = vmul.f32 %v893, %v1850
      %v1865 = vmul.f32 %v894, %v1850
      %v1866 = vmul.f32 %v896, %v1850
      %v1867 = vmul.f32 %v897, %v1850
      %v1868 = vmul.f32 %v898, %v1850
      %v1869 = vmul.f32 %v900, %v1850
      %v1870 = vmul.f32 %v901, %v1850
      %v1871 = vmul.f32 %v902, %v1850
      %v1872 = vmul.f32 %v904, %v1850
      %v1873 = vmul.f32 %v905, %v1850
      %v1874 = vmul.f32 %v906, %v1850
      %v1875 = vmul.f32 %v908, %v1850
      %v1876 = vmul.f32 %v909, %v1850
      %v1877 = vmul.f32 %v910, %v1850
      %v1878 = vmul.f32 %v912, %v1850
      %v1879 = vmul.f32 %v913, %v1850
      %v1880 = vmul.f32 %v914, %v1850
      %v1881 = vmul.f32 %v916, %v1850
      %v1882 = vmul.f32 %v917, %v1850
      %v1883 = vmul.f32 %v918, %v1850
      %v1884 = vmul.f32 %v920, %v1850
      %v1885 = vmul.f32 %v921, %v1850
      %v1886 = vmul.f32 %v922, %v1850
      %v1887 = vmul.f32 %v924, %v1850
      %v1888 = vmul.f32 %v925, %v1850
      %v1889 = vmul.f32 %v926, %v1850
      %v1890 = vmul.f32 %v928, %v1850
      %v1891 = vmul.f32 %v929, %v1850
      %v1892 = vmul.f32 %v930, %v1850
      %v1893 = vmul.f32 %v932, %v1850
      %v1894 = vmul.f32 %v933, %v1850
      %v1895 = vmul.f32 %v934, %v1850
      %v1896 = vmul.f32 %v936, %v1850
      %v1897 = vmul.f32 %v937, %v1850
      %v1898 = vmul.f32 %v938, %v1850
      %v1947 = vrot.slane %v1851, 2
      %v1948 = vrot.slane %v1852, 2
      %v1949 = vsel %vm1358, %v1947, %v1948
      %v1950 = vrot.slane %v1853, 2
      %v1951 = vsel %vm1358, %v1948, %v1950
      %v1952 = vrot.slane %v1854, 2
      %v1953 = vrot.slane %v1855, 2
      %v1954 = vsel %vm1358, %v1952, %v1953
      %v1955 = vrot.slane %v1856, 2
      %v1956 = vsel %vm1358, %v1953, %v1955
      %v1957 = vrot.slane %v1857, 2
      %v1958 = vrot.slane %v1858, 2
      %v1959 = vsel %vm1358, %v1957, %v1958
      %v1960 = vrot.slane %v1859, 2
      %v1961 = vsel %vm1358, %v1958, %v1960
      %v1962 = vrot.slane %v1860, 2
      %v1963 = vrot.slane %v1861, 2
      %v1964 = vsel %vm1358, %v1962, %v1963
      %v1965 = vrot.slane %v1862, 2
      %v1966 = vsel %vm1358, %v1963, %v1965
      %v1967 = vrot.slane %v1863, 2
      %v1968 = vrot.slane %v1864, 2
      %v1969 = vsel %vm1358, %v1967, %v1968
      %v1970 = vrot.slane %v1865, 2
      %v1971 = vsel %vm1358, %v1968, %v1970
      %v1972 = vrot.slane %v1866, 2
      %v1973 = vrot.slane %v1867, 2
      %v1974 = vsel %vm1358, %v1972, %v1973
      %v1975 = vrot.slane %v1868, 2
      %v1976 = vsel %vm1358, %v1973, %v1975
      %v1977 = vrot.slane %v1869, 2
      %v1978 = vrot.slane %v1870, 2
      %v1979 = vsel %vm1358, %v1977, %v1978
      %v1980 = vrot.slane %v1871, 2
      %v1981 = vsel %vm1358, %v1978, %v1980
      %v1982 = vrot.slane %v1872, 2
      %v1983 = vrot.slane %v1873, 2
      %v1984 = vsel %vm1358, %v1982, %v1983
      %v1985 = vrot.slane %v1874, 2
      %v1986 = vsel %vm1358, %v1983, %v1985
      %v1987 = vrot.slane %v1875, 2
      %v1988 = vrot.slane %v1876, 2
      %v1989 = vsel %vm1358, %v1987, %v1988
      %v1990 = vrot.slane %v1877, 2
      %v1991 = vsel %vm1358, %v1988, %v1990
      %v1992 = vrot.slane %v1878, 2
      %v1993 = vrot.slane %v1879, 2
      %v1994 = vsel %vm1358, %v1992, %v1993
      %v1995 = vrot.slane %v1880, 2
      %v1996 = vsel %vm1358, %v1993, %v1995
      %v1997 = vrot.slane %v1881, 2
      %v1998 = vrot.slane %v1882, 2
      %v1999 = vsel %vm1358, %v1997, %v1998
      %v2000 = vrot.slane %v1883, 2
      %v2001 = vsel %vm1358, %v1998, %v2000
      %v2002 = vrot.slane %v1884, 2
      %v2003 = vrot.slane %v1885, 2
      %v2004 = vsel %vm1358, %v2002, %v2003
      %v2005 = vrot.slane %v1886, 2
      %v2006 = vsel %vm1358, %v2003, %v2005
      %v2007 = vrot.slane %v1887, 2
      %v2008 = vrot.slane %v1888, 2
      %v2009 = vsel %vm1358, %v2007, %v2008
      %v2010 = vrot.slane %v1889, 2
      %v2011 = vsel %vm1358, %v2008, %v2010
      %v2012 = vrot.slane %v1890, 2
      %v2013 = vrot.slane %v1891, 2
      %v2014 = vsel %vm1358, %v2012, %v2013
      %v2015 = vrot.slane %v1892, 2
      %v2016 = vsel %vm1358, %v2013, %v2015
      %v2017 = vrot.slane %v1893, 2
      %v2018 = vrot.slane %v1894, 2
      %v2019 = vsel %vm1358, %v2017, %v2018
      %v2020 = vrot.slane %v1895, 2
      %v2021 = vsel %vm1358, %v2018, %v2020
      %v2022 = vrot.slane %v1896, 2
      %v2023 = vrot.slane %v1897, 2
      %v2024 = vsel %vm1358, %v2022, %v2023
      %v2025 = vrot.slane %v1898, 2
      %v2026 = vsel %vm1358, %v2023, %v2025
      %v2075 = vadd.f32 %v1799, %v1947
      %v2076 = vadd.f32 %v1800, %v1949
      %v2077 = vadd.f32 %v1801, %v1951
      %v2078 = vadd.f32 %v1802, %v1952
      %v2079 = vadd.f32 %v1803, %v1954
      %v2080 = vadd.f32 %v1804, %v1956
      %v2081 = vadd.f32 %v1805, %v1957
      %v2082 = vadd.f32 %v1806, %v1959
      %v2083 = vadd.f32 %v1807, %v1961
      %v2084 = vadd.f32 %v1808, %v1962
      %v2085 = vadd.f32 %v1809, %v1964
      %v2086 = vadd.f32 %v1810, %v1966
      %v2087 = vadd.f32 %v1811, %v1967
      %v2088 = vadd.f32 %v1812, %v1969
      %v2089 = vadd.f32 %v1813, %v1971
      %v2090 = vadd.f32 %v1814, %v1972
      %v2091 = vadd.f32 %v1815, %v1974
      %v2092 = vadd.f32 %v1816, %v1976
      %v2093 = vadd.f32 %v1817, %v1977
      %v2094 = vadd.f32 %v1818, %v1979
      %v2095 = vadd.f32 %v1819, %v1981
      %v2096 = vadd.f32 %v1820, %v1982
      %v2097 = vadd.f32 %v1821, %v1984
      %v2098 = vadd.f32 %v1822, %v1986
      %v2099 = vadd.f32 %v1823, %v1987
      %v2100 = vadd.f32 %v1824, %v1989
      %v2101 = vadd.f32 %v1825, %v1991
      %v2102 = vadd.f32 %v1826, %v1992
      %v2103 = vadd.f32 %v1827, %v1994
      %v2104 = vadd.f32 %v1828, %v1996
      %v2105 = vadd.f32 %v1829, %v1997
      %v2106 = vadd.f32 %v1830, %v1999
      %v2107 = vadd.f32 %v1831, %v2001
      %v2108 = vadd.f32 %v1832, %v2002
      %v2109 = vadd.f32 %v1833, %v2004
      %v2110 = vadd.f32 %v1834, %v2006
      %v2111 = vadd.f32 %v1835, %v2007
      %v2112 = vadd.f32 %v1836, %v2009
      %v2113 = vadd.f32 %v1837, %v2011
      %v2114 = vadd.f32 %v1838, %v2012
      %v2115 = vadd.f32 %v1839, %v2014
      %v2116 = vadd.f32 %v1840, %v2016
      %v2117 = vadd.f32 %v1841, %v2017
      %v2118 = vadd.f32 %v1842, %v2019
      %v2119 = vadd.f32 %v1843, %v2021
      %v2120 = vadd.f32 %v1844, %v2022
      %v2121 = vadd.f32 %v1845, %v2024
      %v2122 = vadd.f32 %v1846, %v2026
      %v2123 = vlaneseq
      %v2124 = vshrl.u32 %v2123, 7
      %v2125 = vsub.s32 6, %v2124
      %v2126 = vrot.slane %v943, %v2125
      %v2127 = vmul.f32 %v879, %v2126
      %v2128 = vmul.f32 %v880, %v2126
      %v2129 = vmul.f32 %v881, %v2126
      %v2130 = vmul.f32 %v883, %v2126
      %v2131 = vmul.f32 %v884, %v2126
      %v2132 = vmul.f32 %v885, %v2126
      %v2133 = vmul.f32 %v887, %v2126
      %v2134 = vmul.f32 %v888, %v2126
      %v2135 = vmul.f32 %v889, %v2126
      %v2136 = vmul.f32 %v891, %v2126
      %v2137 = vmul.f32 %v892, %v2126
      %v2138 = vmul.f32 %v893, %v2126
      %v2139 = vmul.f32 %v895, %v2126
      %v2140 = vmul.f32 %v896, %v2126
      %v2141 = vmul.f32 %v897, %v2126
      %v2142 = vmul.f32 %v899, %v2126
      %v2143 = vmul.f32 %v900, %v2126
      %v2144 = vmul.f32 %v901, %v2126
      %v2145 = vmul.f32 %v903, %v2126
      %v2146 = vmul.f32 %v904, %v2126
      %v2147 = vmul.f32 %v905, %v2126
      %v2148 = vmul.f32 %v907, %v2126
      %v2149 = vmul.f32 %v908, %v2126
      %v2150 = vmul.f32 %v909, %v2126
      %v2151 = vmul.f32 %v911, %v2126
      %v2152 = vmul.f32 %v912, %v2126
      %v2153 = vmul.f32 %v913, %v2126
      %v2154 = vmul.f32 %v915, %v2126
      %v2155 = vmul.f32 %v916, %v2126
      %v2156 = vmul.f32 %v917, %v2126
      %v2157 = vmul.f32 %v919, %v2126
      %v2158 = vmul.f32 %v920, %v2126
      %v2159 = vmul.f32 %v921, %v2126
      %v2160 = vmul.f32 %v923, %v2126
      %v2161 = vmul.f32 %v924, %v2126
      %v2162 = vmul.f32 %v925, %v2126
      %v2163 = vmul.f32 %v927, %v2126
      %v2164 = vmul.f32 %v928, %v2126
      %v2165 = vmul.f32 %v929, %v2126
      %v2166 = vmul.f32 %v931, %v2126
      %v2167 = vmul.f32 %v932, %v2126
      %v2168 = vmul.f32 %v933, %v2126
      %v2169 = vmul.f32 %v935, %v2126
      %v2170 = vmul.f32 %v936, %v2126
      %v2171 = vmul.f32 %v937, %v2126
      %v2172 = vmul.f32 %v939, %v2126
      %v2173 = vmul.f32 %v940, %v2126
      %v2174 = vmul.f32 %v941, %v2126
      %v2175 = vadd.f32 %v2075, %v2127
      %v2176 = vadd.f32 %v2076, %v2128
      %v2177 = vadd.f32 %v2077, %v2129
      %v2178 = vadd.f32 %v2078, %v2130
      %v2179 = vadd.f32 %v2079, %v2131
      %v2180 = vadd.f32 %v2080, %v2132
      %v2181 = vadd.f32 %v2081, %v2133
      %v2182 = vadd.f32 %v2082, %v2134
      %v2183 = vadd.f32 %v2083, %v2135
      %v2184 = vadd.f32 %v2084, %v2136
      %v2185 = vadd.f32 %v2085, %v2137
      %v2186 = vadd.f32 %v2086, %v2138
      %v2187 = vadd.f32 %v2087, %v2139
      %v2188 = vadd.f32 %v2088, %v2140
      %v2189 = vadd.f32 %v2089, %v2141
      %v2190 = vadd.f32 %v2090, %v2142
      %v2191 = vadd.f32 %v2091, %v2143
      %v2192 = vadd.f32 %v2092, %v2144
      %v2193 = vadd.f32 %v2093, %v2145
      %v2194 = vadd.f32 %v2094, %v2146
      %v2195 = vadd.f32 %v2095, %v2147
      %v2196 = vadd.f32 %v2096, %v2148
      %v2197 = vadd.f32 %v2097, %v2149
      %v2198 = vadd.f32 %v2098, %v2150
      %v2199 = vadd.f32 %v2099, %v2151
      %v2200 = vadd.f32 %v2100, %v2152
      %v2201 = vadd.f32 %v2101, %v2153
      %v2202 = vadd.f32 %v2102, %v2154
      %v2203 = vadd.f32 %v2103, %v2155
      %v2204 = vadd.f32 %v2104, %v2156
      %v2205 = vadd.f32 %v2105, %v2157
      %v2206 = vadd.f32 %v2106, %v2158
      %v2207 = vadd.f32 %v2107, %v2159
      %v2208 = vadd.f32 %v2108, %v2160
      %v2209 = vadd.f32 %v2109, %v2161
      %v2210 = vadd.f32 %v2110, %v2162
      %v2211 = vadd.f32 %v2111, %v2163
      %v2212 = vadd.f32 %v2112, %v2164
      %v2213 = vadd.f32 %v2113, %v2165
      %v2214 = vadd.f32 %v2114, %v2166
      %v2215 = vadd.f32 %v2115, %v2167
      %v2216 = vadd.f32 %v2116, %v2168
      %v2217 = vadd.f32 %v2117, %v2169
      %v2218 = vadd.f32 %v2118, %v2170
      %v2219 = vadd.f32 %v2119, %v2171
      %v2220 = vadd.f32 %v2120, %v2172
      %v2221 = vadd.f32 %v2121, %v2173
      %v2222 = vadd.f32 %v2122, %v2174
      %v2223 = vlaneseq
      %v2224 = vshrl.u32 %v2223, 7
      %v2225 = vsub.s32 7, %v2224
      %v2226 = vrot.slane %v943, %v2225
      %v2227 = vmul.f32 %v880, %v2226
      %v2228 = vmul.f32 %v881, %v2226
      %v2229 = vmul.f32 %v884, %v2226
      %v2230 = vmul.f32 %v885, %v2226
      %v2231 = vmul.f32 %v888, %v2226
      %v2232 = vmul.f32 %v889, %v2226
      %v2233 = vmul.f32 %v892, %v2226
      %v2234 = vmul.f32 %v893, %v2226
      %v2235 = vmul.f32 %v896, %v2226
      %v2236 = vmul.f32 %v897, %v2226
      %v2237 = vmul.f32 %v900, %v2226
      %v2238 = vmul.f32 %v901, %v2226
      %v2239 = vmul.f32 %v904, %v2226
      %v2240 = vmul.f32 %v905, %v2226
      %v2241 = vmul.f32 %v908, %v2226
      %v2242 = vmul.f32 %v909, %v2226
      %v2243 = vmul.f32 %v912, %v2226
      %v2244 = vmul.f32 %v913, %v2226
      %v2245 = vmul.f32 %v916, %v2226
      %v2246 = vmul.f32 %v917, %v2226
      %v2247 = vmul.f32 %v920, %v2226
      %v2248 = vmul.f32 %v921, %v2226
      %v2249 = vmul.f32 %v924, %v2226
      %v2250 = vmul.f32 %v925, %v2226
      %v2251 = vmul.f32 %v928, %v2226
      %v2252 = vmul.f32 %v929, %v2226
      %v2253 = vmul.f32 %v932, %v2226
      %v2254 = vmul.f32 %v933, %v2226
      %v2255 = vmul.f32 %v936, %v2226
      %v2256 = vmul.f32 %v937, %v2226
      %v2257 = vmul.f32 %v940, %v2226
      %v2258 = vmul.f32 %v941, %v2226
      %v2291 = vrot.slane %v2227, 1
      %v2292 = vrot.slane %v2228, 1
      %v2293 = vsel %vm1113, %v2291, %v2292
      %v2294 = vrot.slane %v2229, 1
      %v2295 = vrot.slane %v2230, 1
      %v2296 = vsel %vm1113, %v2294, %v2295
      %v2297 = vrot.slane %v2231, 1
      %v2298 = vrot.slane %v2232, 1
      %v2299 = vsel %vm1113, %v2297, %v2298
      %v2300 = vrot.slane %v2233, 1
      %v2301 = vrot.slane %v2234, 1
      %v2302 = vsel %vm1113, %v2300, %v2301
      %v2303 = vrot.slane %v2235, 1
      %v2304 = vrot.slane %v2236, 1
      %v2305 = vsel %vm1113, %v2303, %v2304
      %v2306 = vrot.slane %v2237, 1
      %v2307 = vrot.slane %v2238, 1
      %v2308 = vsel %vm1113, %v2306, %v2307
      %v2309 = vrot.slane %v2239, 1
      %v2310 = vrot.slane %v2240, 1
      %v2311 = vsel %vm1113, %v2309, %v2310
      %v2312 = vrot.slane %v2241, 1
      %v2313 = vrot.slane %v2242, 1
      %v2314 = vsel %vm1113, %v2312, %v2313
      %v2315 = vrot.slane %v2243, 1
      %v2316 = vrot.slane %v2244, 1
      %v2317 = vsel %vm1113, %v2315, %v2316
      %v2318 = vrot.slane %v2245, 1
      %v2319 = vrot.slane %v2246, 1
      %v2320 = vsel %vm1113, %v2318, %v2319
      %v2321 = vrot.slane %v2247, 1
      %v2322 = vrot.slane %v2248, 1
      %v2323 = vsel %vm1113, %v2321, %v2322
      %v2324 = vrot.slane %v2249, 1
      %v2325 = vrot.slane %v2250, 1
      %v2326 = vsel %vm1113, %v2324, %v2325
      %v2327 = vrot.slane %v2251, 1
      %v2328 = vrot.slane %v2252, 1
      %v2329 = vsel %vm1113, %v2327, %v2328
      %v2330 = vrot.slane %v2253, 1
      %v2331 = vrot.slane %v2254, 1
      %v2332 = vsel %vm1113, %v2330, %v2331
      %v2333 = vrot.slane %v2255, 1
      %v2334 = vrot.slane %v2256, 1
      %v2335 = vsel %vm1113, %v2333, %v2334
      %v2336 = vrot.slane %v2257, 1
      %v2337 = vrot.slane %v2258, 1
      %v2338 = vsel %vm1113, %v2336, %v2337
      %v2387 = vadd.f32 %v2175, %v2291
      %v2388 = vadd.f32 %v2176, %v2293
      %v2389 = vadd.f32 %v2177, %v2292
      %v2390 = vadd.f32 %v2178, %v2294
      %v2391 = vadd.f32 %v2179, %v2296
      %v2392 = vadd.f32 %v2180, %v2295
      %v2393 = vadd.f32 %v2181, %v2297
      %v2394 = vadd.f32 %v2182, %v2299
      %v2395 = vadd.f32 %v2183, %v2298
      %v2396 = vadd.f32 %v2184, %v2300
      %v2397 = vadd.f32 %v2185, %v2302
      %v2398 = vadd.f32 %v2186, %v2301
      %v2399 = vadd.f32 %v2187, %v2303
      %v2400 = vadd.f32 %v2188, %v2305
      %v2401 = vadd.f32 %v2189, %v2304
      %v2402 = vadd.f32 %v2190, %v2306
      %v2403 = vadd.f32 %v2191, %v2308
      %v2404 = vadd.f32 %v2192, %v2307
      %v2405 = vadd.f32 %v2193, %v2309
      %v2406 = vadd.f32 %v2194, %v2311
      %v2407 = vadd.f32 %v2195, %v2310
      %v2408 = vadd.f32 %v2196, %v2312
      %v2409 = vadd.f32 %v2197, %v2314
      %v2410 = vadd.f32 %v2198, %v2313
      %v2411 = vadd.f32 %v2199, %v2315
      %v2412 = vadd.f32 %v2200, %v2317
      %v2413 = vadd.f32 %v2201, %v2316
      %v2414 = vadd.f32 %v2202, %v2318
      %v2415 = vadd.f32 %v2203, %v2320
      %v2416 = vadd.f32 %v2204, %v2319
      %v2417 = vadd.f32 %v2205, %v2321
      %v2418 = vadd.f32 %v2206, %v2323
      %v2419 = vadd.f32 %v2207, %v2322
      %v2420 = vadd.f32 %v2208, %v2324
      %v2421 = vadd.f32 %v2209, %v2326
      %v2422 = vadd.f32 %v2210, %v2325
      %v2423 = vadd.f32 %v2211, %v2327
      %v2424 = vadd.f32 %v2212, %v2329
      %v2425 = vadd.f32 %v2213, %v2328
      %v2426 = vadd.f32 %v2214, %v2330
      %v2427 = vadd.f32 %v2215, %v2332
      %v2428 = vadd.f32 %v2216, %v2331
      %v2429 = vadd.f32 %v2217, %v2333
      %v2430 = vadd.f32 %v2218, %v2335
      %v2431 = vadd.f32 %v2219, %v2334
      %v2432 = vadd.f32 %v2220, %v2336
      %v2433 = vadd.f32 %v2221, %v2338
      %v2434 = vadd.f32 %v2222, %v2337
      %v2435 = vlaneseq
      %v2436 = vshrl.u32 %v2435, 7
      %v2437 = vsub.s32 0, %v2436
      %v2438 = vrot.slane %v944, %v2437
      %v2439 = vmul.f32 %v880, %v2438
      %v2440 = vmul.f32 %v881, %v2438
      %v2441 = vmul.f32 %v882, %v2438
      %v2442 = vmul.f32 %v884, %v2438
      %v2443 = vmul.f32 %v885, %v2438
      %v2444 = vmul.f32 %v886, %v2438
      %v2445 = vmul.f32 %v888, %v2438
      %v2446 = vmul.f32 %v889, %v2438
      %v2447 = vmul.f32 %v890, %v2438
      %v2448 = vmul.f32 %v892, %v2438
      %v2449 = vmul.f32 %v893, %v2438
      %v2450 = vmul.f32 %v894, %v2438
      %v2451 = vmul.f32 %v896, %v2438
      %v2452 = vmul.f32 %v897, %v2438
      %v2453 = vmul.f32 %v898, %v2438
      %v2454 = vmul.f32 %v900, %v2438
      %v2455 = vmul.f32 %v901, %v2438
      %v2456 = vmul.f32 %v902, %v2438
      %v2457 = vmul.f32 %v904, %v2438
      %v2458 = vmul.f32 %v905, %v2438
      %v2459 = vmul.f32 %v906, %v2438
      %v2460 = vmul.f32 %v908, %v2438
      %v2461 = vmul.f32 %v909, %v2438
      %v2462 = vmul.f32 %v910, %v2438
      %v2463 = vmul.f32 %v912, %v2438
      %v2464 = vmul.f32 %v913, %v2438
      %v2465 = vmul.f32 %v914, %v2438
      %v2466 = vmul.f32 %v916, %v2438
      %v2467 = vmul.f32 %v917, %v2438
      %v2468 = vmul.f32 %v918, %v2438
      %v2469 = vmul.f32 %v920, %v2438
      %v2470 = vmul.f32 %v921, %v2438
      %v2471 = vmul.f32 %v922, %v2438
      %v2472 = vmul.f32 %v924, %v2438
      %v2473 = vmul.f32 %v925, %v2438
      %v2474 = vmul.f32 %v926, %v2438
      %v2475 = vmul.f32 %v928, %v2438
      %v2476 = vmul.f32 %v929, %v2438
      %v2477 = vmul.f32 %v930, %v2438
      %v2478 = vmul.f32 %v932, %v2438
      %v2479 = vmul.f32 %v933, %v2438
      %v2480 = vmul.f32 %v934, %v2438
      %v2481 = vmul.f32 %v936, %v2438
      %v2482 = vmul.f32 %v937, %v2438
      %v2483 = vmul.f32 %v938, %v2438
      %v2484 = vmul.f32 %v940, %v2438
      %v2485 = vmul.f32 %v941, %v2438
      %v2486 = vmul.f32 %v942, %v2438
      %v2535 = vrot.slane %v2439, 2
      %v2536 = vrot.slane %v2440, 2
      %v2537 = vsel %vm1358, %v2535, %v2536
      %v2538 = vrot.slane %v2441, 2
      %v2539 = vsel %vm1358, %v2536, %v2538
      %v2540 = vrot.slane %v2442, 2
      %v2541 = vrot.slane %v2443, 2
      %v2542 = vsel %vm1358, %v2540, %v2541
      %v2543 = vrot.slane %v2444, 2
      %v2544 = vsel %vm1358, %v2541, %v2543
      %v2545 = vrot.slane %v2445, 2
      %v2546 = vrot.slane %v2446, 2
      %v2547 = vsel %vm1358, %v2545, %v2546
      %v2548 = vrot.slane %v2447, 2
      %v2549 = vsel %vm1358, %v2546, %v2548
      %v2550 = vrot.slane %v2448, 2
      %v2551 = vrot.slane %v2449, 2
      %v2552 = vsel %vm1358, %v2550, %v2551
      %v2553 = vrot.slane %v2450, 2
      %v2554 = vsel %vm1358, %v2551, %v2553
      %v2555 = vrot.slane %v2451, 2
      %v2556 = vrot.slane %v2452, 2
      %v2557 = vsel %vm1358, %v2555, %v2556
      %v2558 = vrot.slane %v2453, 2
      %v2559 = vsel %vm1358, %v2556, %v2558
      %v2560 = vrot.slane %v2454, 2
      %v2561 = vrot.slane %v2455, 2
      %v2562 = vsel %vm1358, %v2560, %v2561
      %v2563 = vrot.slane %v2456, 2
      %v2564 = vsel %vm1358, %v2561, %v2563
      %v2565 = vrot.slane %v2457, 2
      %v2566 = vrot.slane %v2458, 2
      %v2567 = vsel %vm1358, %v2565, %v2566
      %v2568 = vrot.slane %v2459, 2
      %v2569 = vsel %vm1358, %v2566, %v2568
      %v2570 = vrot.slane %v2460, 2
      %v2571 = vrot.slane %v2461, 2
      %v2572 = vsel %vm1358, %v2570, %v2571
      %v2573 = vrot.slane %v2462, 2
      %v2574 = vsel %vm1358, %v2571, %v2573
      %v2575 = vrot.slane %v2463, 2
      %v2576 = vrot.slane %v2464, 2
      %v2577 = vsel %vm1358, %v2575, %v2576
      %v2578 = vrot.slane %v2465, 2
      %v2579 = vsel %vm1358, %v2576, %v2578
      %v2580 = vrot.slane %v2466, 2
      %v2581 = vrot.slane %v2467, 2
      %v2582 = vsel %vm1358, %v2580, %v2581
      %v2583 = vrot.slane %v2468, 2
      %v2584 = vsel %vm1358, %v2581, %v2583
      %v2585 = vrot.slane %v2469, 2
      %v2586 = vrot.slane %v2470, 2
      %v2587 = vsel %vm1358, %v2585, %v2586
      %v2588 = vrot.slane %v2471, 2
      %v2589 = vsel %vm1358, %v2586, %v2588
      %v2590 = vrot.slane %v2472, 2
      %v2591 = vrot.slane %v2473, 2
      %v2592 = vsel %vm1358, %v2590, %v2591
      %v2593 = vrot.slane %v2474, 2
      %v2594 = vsel %vm1358, %v2591, %v2593
      %v2595 = vrot.slane %v2475, 2
      %v2596 = vrot.slane %v2476, 2
      %v2597 = vsel %vm1358, %v2595, %v2596
      %v2598 = vrot.slane %v2477, 2
      %v2599 = vsel %vm1358, %v2596, %v2598
      %v2600 = vrot.slane %v2478, 2
      %v2601 = vrot.slane %v2479, 2
      %v2602 = vsel %vm1358, %v2600, %v2601
      %v2603 = vrot.slane %v2480, 2
      %v2604 = vsel %vm1358, %v2601, %v2603
      %v2605 = vrot.slane %v2481, 2
      %v2606 = vrot.slane %v2482, 2
      %v2607 = vsel %vm1358, %v2605, %v2606
      %v2608 = vrot.slane %v2483, 2
      %v2609 = vsel %vm1358, %v2606, %v2608
      %v2610 = vrot.slane %v2484, 2
      %v2611 = vrot.slane %v2485, 2
      %v2612 = vsel %vm1358, %v2610, %v2611
      %v2613 = vrot.slane %v2486, 2
      %v2614 = vsel %vm1358, %v2611, %v2613
      %v2663 = vadd.f32 %v2387, %v2535
      %v2664 = vadd.f32 %v2388, %v2537
      %v2665 = vadd.f32 %v2389, %v2539
      %v2666 = vadd.f32 %v2390, %v2540
      %v2667 = vadd.f32 %v2391, %v2542
      %v2668 = vadd.f32 %v2392, %v2544
      %v2669 = vadd.f32 %v2393, %v2545
      %v2670 = vadd.f32 %v2394, %v2547
      %v2671 = vadd.f32 %v2395, %v2549
      %v2672 = vadd.f32 %v2396, %v2550
      %v2673 = vadd.f32 %v2397, %v2552
      %v2674 = vadd.f32 %v2398, %v2554
      %v2675 = vadd.f32 %v2399, %v2555
      %v2676 = vadd.f32 %v2400, %v2557
      %v2677 = vadd.f32 %v2401, %v2559
      %v2678 = vadd.f32 %v2402, %v2560
      %v2679 = vadd.f32 %v2403, %v2562
      %v2680 = vadd.f32 %v2404, %v2564
      %v2681 = vadd.f32 %v2405, %v2565
      %v2682 = vadd.f32 %v2406, %v2567
      %v2683 = vadd.f32 %v2407, %v2569
      %v2684 = vadd.f32 %v2408, %v2570
      %v2685 = vadd.f32 %v2409, %v2572
      %v2686 = vadd.f32 %v2410, %v2574
      %v2687 = vadd.f32 %v2411, %v2575
      %v2688 = vadd.f32 %v2412, %v2577
      %v2689 = vadd.f32 %v2413, %v2579
      %v2690 = vadd.f32 %v2414, %v2580
      %v2691 = vadd.f32 %v2415, %v2582
      %v2692 = vadd.f32 %v2416, %v2584
      %v2693 = vadd.f32 %v2417, %v2585
      %v2694 = vadd.f32 %v2418, %v2587
      %v2695 = vadd.f32 %v2419, %v2589
      %v2696 = vadd.f32 %v2420, %v2590
      %v2697 = vadd.f32 %v2421, %v2592
      %v2698 = vadd.f32 %v2422, %v2594
      %v2699 = vadd.f32 %v2423, %v2595
      %v2700 = vadd.f32 %v2424, %v2597
      %v2701 = vadd.f32 %v2425, %v2599
      %v2702 = vadd.f32 %v2426, %v2600
      %v2703 = vadd.f32 %v2427, %v2602
      %v2704 = vadd.f32 %v2428, %v2604
      %v2705 = vadd.f32 %v2429, %v2605
      %v2706 = vadd.f32 %v2430, %v2607
      %v2707 = vadd.f32 %v2431, %v2609
      %v2708 = vadd.f32 %v2432, %v2610
      %v2709 = vadd.f32 %v2433, %v2612
      %v2710 = vadd.f32 %v2434, %v2614
      %v2711 = vld [vmem:[%s5] sm:$0x1]
      %v2713 = vlaneseq
      %v2714 = vshrl.u32 %v2713, 7
      %v2715 = vsub.s32 0, %v2714
      %v2716 = vrot.slane %v2711, %v2715
      %v2718 = vmul.f32 %v2663, %v2716
      %v2719 = vmul.f32 %v2664, %v2716
      %v2720 = vmul.f32 %v2665, %v2716
      %v2721 = vmul.f32 %v2666, %v2716
      %v2722 = vmul.f32 %v2667, %v2716
      %v2723 = vmul.f32 %v2668, %v2716
      %v2724 = vmul.f32 %v2669, %v2716
      %v2725 = vmul.f32 %v2670, %v2716
      %v2726 = vmul.f32 %v2671, %v2716
      %v2727 = vmul.f32 %v2672, %v2716
      %v2728 = vmul.f32 %v2673, %v2716
      %v2729 = vmul.f32 %v2674, %v2716
      %v2730 = vmul.f32 %v2675, %v2716
      %v2731 = vmul.f32 %v2676, %v2716
      %v2732 = vmul.f32 %v2677, %v2716
      %v2733 = vmul.f32 %v2678, %v2716
      %v2734 = vmul.f32 %v2679, %v2716
      %v2735 = vmul.f32 %v2680, %v2716
      %v2736 = vmul.f32 %v2681, %v2716
      %v2737 = vmul.f32 %v2682, %v2716
      %v2738 = vmul.f32 %v2683, %v2716
      %v2739 = vmul.f32 %v2684, %v2716
      %v2740 = vmul.f32 %v2685, %v2716
      %v2741 = vmul.f32 %v2686, %v2716
      %v2742 = vmul.f32 %v2687, %v2716
      %v2743 = vmul.f32 %v2688, %v2716
      %v2744 = vmul.f32 %v2689, %v2716
      %v2745 = vmul.f32 %v2690, %v2716
      %v2746 = vmul.f32 %v2691, %v2716
      %v2747 = vmul.f32 %v2692, %v2716
      %v2748 = vmul.f32 %v2693, %v2716
      %v2749 = vmul.f32 %v2694, %v2716
      %v2750 = vmul.f32 %v2695, %v2716
      %v2751 = vmul.f32 %v2696, %v2716
      %v2752 = vmul.f32 %v2697, %v2716
      %v2753 = vmul.f32 %v2698, %v2716
      %v2754 = vmul.f32 %v2699, %v2716
      %v2755 = vmul.f32 %v2700, %v2716
      %v2756 = vmul.f32 %v2701, %v2716
      %v2757 = vmul.f32 %v2702, %v2716
      %v2758 = vmul.f32 %v2703, %v2716
      %v2759 = vmul.f32 %v2704, %v2716
      %v2760 = vmul.f32 %v2705, %v2716
      %v2761 = vmul.f32 %v2706, %v2716
      %v2762 = vmul.f32 %v2707, %v2716
      %v2763 = vmul.f32 %v2708, %v2716
      %v2764 = vmul.f32 %v2709, %v2716
      %v2765 = vmul.f32 %v2710, %v2716
      %v2766 = vld [vmem:[%s6] sm:$0x1]
      %v2768 = vlaneseq
      %v2769 = vshrl.u32 %v2768, 7
      %v2770 = vsub.s32 0, %v2769
      %v2771 = vrot.slane %v2766, %v2770
      %v2773 = vadd.f32 %v2718, %v2771
      %v2774 = vadd.f32 %v2719, %v2771
      %v2775 = vadd.f32 %v2720, %v2771
      %v2776 = vadd.f32 %v2721, %v2771
      %v2777 = vadd.f32 %v2722, %v2771
      %v2778 = vadd.f32 %v2723, %v2771
      %v2779 = vadd.f32 %v2724, %v2771
      %v2780 = vadd.f32 %v2725, %v2771
      %v2781 = vadd.f32 %v2726, %v2771
      %v2782 = vadd.f32 %v2727, %v2771
      %v2783 = vadd.f32 %v2728, %v2771
      %v2784 = vadd.f32 %v2729, %v2771
      %v2785 = vadd.f32 %v2730, %v2771
      %v2786 = vadd.f32 %v2731, %v2771
      %v2787 = vadd.f32 %v2732, %v2771
      %v2788 = vadd.f32 %v2733, %v2771
      %v2789 = vadd.f32 %v2734, %v2771
      %v2790 = vadd.f32 %v2735, %v2771
      %v2791 = vadd.f32 %v2736, %v2771
      %v2792 = vadd.f32 %v2737, %v2771
      %v2793 = vadd.f32 %v2738, %v2771
      %v2794 = vadd.f32 %v2739, %v2771
      %v2795 = vadd.f32 %v2740, %v2771
      %v2796 = vadd.f32 %v2741, %v2771
      %v2797 = vadd.f32 %v2742, %v2771
      %v2798 = vadd.f32 %v2743, %v2771
      %v2799 = vadd.f32 %v2744, %v2771
      %v2800 = vadd.f32 %v2745, %v2771
      %v2801 = vadd.f32 %v2746, %v2771
      %v2802 = vadd.f32 %v2747, %v2771
      %v2803 = vadd.f32 %v2748, %v2771
      %v2804 = vadd.f32 %v2749, %v2771
      %v2805 = vadd.f32 %v2750, %v2771
      %v2806 = vadd.f32 %v2751, %v2771
      %v2807 = vadd.f32 %v2752, %v2771
      %v2808 = vadd.f32 %v2753, %v2771
      %v2809 = vadd.f32 %v2754, %v2771
      %v2810 = vadd.f32 %v2755, %v2771
      %v2811 = vadd.f32 %v2756, %v2771
      %v2812 = vadd.f32 %v2757, %v2771
      %v2813 = vadd.f32 %v2758, %v2771
      %v2814 = vadd.f32 %v2759, %v2771
      %v2815 = vadd.f32 %v2760, %v2771
      %v2816 = vadd.f32 %v2761, %v2771
      %v2817 = vadd.f32 %v2762, %v2771
      %v2818 = vadd.f32 %v2763, %v2771
      %v2819 = vadd.f32 %v2764, %v2771
      %v2820 = vadd.f32 %v2765, %v2771
      %v2821 = vmax.f32 %v2773, 0.0
      %v2822 = vmax.f32 %v2774, 0.0
      %v2823 = vmax.f32 %v2775, 0.0
      %v2824 = vmax.f32 %v2776, 0.0
      %v2825 = vmax.f32 %v2777, 0.0
      %v2826 = vmax.f32 %v2778, 0.0
      %v2827 = vmax.f32 %v2779, 0.0
      %v2828 = vmax.f32 %v2780, 0.0
      %v2829 = vmax.f32 %v2781, 0.0
      %v2830 = vmax.f32 %v2782, 0.0
      %v2831 = vmax.f32 %v2783, 0.0
      %v2832 = vmax.f32 %v2784, 0.0
      %v2833 = vmax.f32 %v2785, 0.0
      %v2834 = vmax.f32 %v2786, 0.0
      %v2835 = vmax.f32 %v2787, 0.0
      %v2836 = vmax.f32 %v2788, 0.0
      %v2837 = vmax.f32 %v2789, 0.0
      %v2838 = vmax.f32 %v2790, 0.0
      %v2839 = vmax.f32 %v2791, 0.0
      %v2840 = vmax.f32 %v2792, 0.0
      %v2841 = vmax.f32 %v2793, 0.0
      %v2842 = vmax.f32 %v2794, 0.0
      %v2843 = vmax.f32 %v2795, 0.0
      %v2844 = vmax.f32 %v2796, 0.0
      %v2845 = vmax.f32 %v2797, 0.0
      %v2846 = vmax.f32 %v2798, 0.0
      %v2847 = vmax.f32 %v2799, 0.0
      %v2848 = vmax.f32 %v2800, 0.0
      %v2849 = vmax.f32 %v2801, 0.0
      %v2850 = vmax.f32 %v2802, 0.0
      %v2851 = vmax.f32 %v2803, 0.0
      %v2852 = vmax.f32 %v2804, 0.0
      %v2853 = vmax.f32 %v2805, 0.0
      %v2854 = vmax.f32 %v2806, 0.0
      %v2855 = vmax.f32 %v2807, 0.0
      %v2856 = vmax.f32 %v2808, 0.0
      %v2857 = vmax.f32 %v2809, 0.0
      %v2858 = vmax.f32 %v2810, 0.0
      %v2859 = vmax.f32 %v2811, 0.0
      %v2860 = vmax.f32 %v2812, 0.0
      %v2861 = vmax.f32 %v2813, 0.0
      %v2862 = vmax.f32 %v2814, 0.0
      %v2863 = vmax.f32 %v2815, 0.0
      %v2864 = vmax.f32 %v2816, 0.0
      %v2865 = vmax.f32 %v2817, 0.0
      %v2866 = vmax.f32 %v2818, 0.0
      %v2867 = vmax.f32 %v2819, 0.0
      %v2868 = vmax.f32 %v2820, 0.0
      %v2869 = vmin.f32 %v2821, 6.0
      %v2870 = vmin.f32 %v2822, 6.0
      %v2871 = vmin.f32 %v2823, 6.0
      %v2872 = vmin.f32 %v2824, 6.0
      %v2873 = vmin.f32 %v2825, 6.0
      %v2874 = vmin.f32 %v2826, 6.0
      %v2875 = vmin.f32 %v2827, 6.0
      %v2876 = vmin.f32 %v2828, 6.0
      %v2877 = vmin.f32 %v2829, 6.0
      %v2878 = vmin.f32 %v2830, 6.0
      %v2879 = vmin.f32 %v2831, 6.0
      %v2880 = vmin.f32 %v2832, 6.0
      %v2881 = vmin.f32 %v2833, 6.0
      %v2882 = vmin.f32 %v2834, 6.0
      %v2883 = vmin.f32 %v2835, 6.0
      %v2884 = vmin.f32 %v2836, 6.0
      %v2885 = vmin.f32 %v2837, 6.0
      %v2886 = vmin.f32 %v2838, 6.0
      %v2887 = vmin.f32 %v2839, 6.0
      %v2888 = vmin.f32 %v2840, 6.0
      %v2889 = vmin.f32 %v2841, 6.0
      %v2890 = vmin.f32 %v2842, 6.0
      %v2891 = vmin.f32 %v2843, 6.0
      %v2892 = vmin.f32 %v2844, 6.0
      %v2893 = vmin.f32 %v2845, 6.0
      %v2894 = vmin.f32 %v2846, 6.0
      %v2895 = vmin.f32 %v2847, 6.0
      %v2896 = vmin.f32 %v2848, 6.0
      %v2897 = vmin.f32 %v2849, 6.0
      %v2898 = vmin.f32 %v2850, 6.0
      %v2899 = vmin.f32 %v2851, 6.0
      %v2900 = vmin.f32 %v2852, 6.0
      %v2901 = vmin.f32 %v2853, 6.0
      %v2902 = vmin.f32 %v2854, 6.0
      %v2903 = vmin.f32 %v2855, 6.0
      %v2904 = vmin.f32 %v2856, 6.0
      %v2905 = vmin.f32 %v2857, 6.0
      %v2906 = vmin.f32 %v2858, 6.0
      %v2907 = vmin.f32 %v2859, 6.0
      %v2908 = vmin.f32 %v2860, 6.0
      %v2909 = vmin.f32 %v2861, 6.0
      %v2910 = vmin.f32 %v2862, 6.0
      %v2911 = vmin.f32 %v2863, 6.0
      %v2912 = vmin.f32 %v2864, 6.0
      %v2913 = vmin.f32 %v2865, 6.0
      %v2914 = vmin.f32 %v2866, 6.0
      %v2915 = vmin.f32 %v2867, 6.0
      %v2916 = vmin.f32 %v2868, 6.0
      %vm2965 = vcmask 1040384
      %v2966 = vrot.slane %v2869, 7
      %v2967 = vrot.slane %v2870, 7
      %v2968 = vsel %vm2965, %v2966, %v2967
      %v2969 = vrot.slane %v2871, 7
      %v2970 = vsel %vm2965, %v2967, %v2969
      %v2971 = vrot.slane %v2872, 7
      %v2972 = vrot.slane %v2873, 7
      %v2973 = vsel %vm2965, %v2971, %v2972
      %v2974 = vrot.slane %v2874, 7
      %v2975 = vsel %vm2965, %v2972, %v2974
      %v2976 = vrot.slane %v2875, 7
      %v2977 = vrot.slane %v2876, 7
      %v2978 = vsel %vm2965, %v2976, %v2977
      %v2979 = vrot.slane %v2877, 7
      %v2980 = vsel %vm2965, %v2977, %v2979
      %v2981 = vrot.slane %v2878, 7
      %v2982 = vrot.slane %v2879, 7
      %v2983 = vsel %vm2965, %v2981, %v2982
      %v2984 = vrot.slane %v2880, 7
      %v2985 = vsel %vm2965, %v2982, %v2984
      %v2986 = vrot.slane %v2881, 7
      %v2987 = vrot.slane %v2882, 7
      %v2988 = vsel %vm2965, %v2986, %v2987
      %v2989 = vrot.slane %v2883, 7
      %v2990 = vsel %vm2965, %v2987, %v2989
      %v2991 = vrot.slane %v2884, 7
      %v2992 = vrot.slane %v2885, 7
      %v2993 = vsel %vm2965, %v2991, %v2992
      %v2994 = vrot.slane %v2886, 7
      %v2995 = vsel %vm2965, %v2992, %v2994
      %v2996 = vrot.slane %v2887, 7
      %v2997 = vrot.slane %v2888, 7
      %v2998 = vsel %vm2965, %v2996, %v2997
      %v2999 = vrot.slane %v2889, 7
      %v3000 = vsel %vm2965, %v2997, %v2999
      %v3001 = vrot.slane %v2890, 7
      %v3002 = vrot.slane %v2891, 7
      %v3003 = vsel %vm2965, %v3001, %v3002
      %v3004 = vrot.slane %v2892, 7
      %v3005 = vsel %vm2965, %v3002, %v3004
      %v3006 = vrot.slane %v2893, 7
      %v3007 = vrot.slane %v2894, 7
      %v3008 = vsel %vm2965, %v3006, %v3007
      %v3009 = vrot.slane %v2895, 7
      %v3010 = vsel %vm2965, %v3007, %v3009
      %v3011 = vrot.slane %v2896, 7
      %v3012 = vrot.slane %v2897, 7
      %v3013 = vsel %vm2965, %v3011, %v3012
      %v3014 = vrot.slane %v2898, 7
      %v3015 = vsel %vm2965, %v3012, %v3014
      %v3016 = vrot.slane %v2899, 7
      %v3017 = vrot.slane %v2900, 7
      %v3018 = vsel %vm2965, %v3016, %v3017
      %v3019 = vrot.slane %v2901, 7
      %v3020 = vsel %vm2965, %v3017, %v3019
      %v3021 = vrot.slane %v2902, 7
      %v3022 = vrot.slane %v2903, 7
      %v3023 = vsel %vm2965, %v3021, %v3022
      %v3024 = vrot.slane %v2904, 7
      %v3025 = vsel %vm2965, %v3022, %v3024
      %v3026 = vrot.slane %v2905, 7
      %v3027 = vrot.slane %v2906, 7
      %v3028 = vsel %vm2965, %v3026, %v3027
      %v3029 = vrot.slane %v2907, 7
      %v3030 = vsel %vm2965, %v3027, %v3029
      %v3031 = vrot.slane %v2908, 7
      %v3032 = vrot.slane %v2909, 7
      %v3033 = vsel %vm2965, %v3031, %v3032
      %v3034 = vrot.slane %v2910, 7
      %v3035 = vsel %vm2965, %v3032, %v3034
      %v3036 = vrot.slane %v2911, 7
      %v3037 = vrot.slane %v2912, 7
      %v3038 = vsel %vm2965, %v3036, %v3037
      %v3039 = vrot.slane %v2913, 7
      %v3040 = vsel %vm2965, %v3037, %v3039
      %v3041 = vrot.slane %v2914, 7
      %v3042 = vrot.slane %v2915, 7
      %v3043 = vsel %vm2965, %v3041, %v3042
      %v3044 = vrot.slane %v2916, 7
      %v3045 = vsel %vm2965, %v3042, %v3044
      %v3078 = vpack.c.bf16 %v2970, %v2968
      %v3079 = vpack.c.bf16 %v2975, %v2973
      %v3080 = vpack.c.bf16 %v2980, %v2978
      %v3081 = vpack.c.bf16 %v2985, %v2983
      %v3082 = vpack.c.bf16 %v2990, %v2988
      %v3083 = vpack.c.bf16 %v2995, %v2993
      %v3084 = vpack.c.bf16 %v3000, %v2998
      %v3085 = vpack.c.bf16 %v3005, %v3003
      %v3086 = vpack.c.bf16 %v3010, %v3008
      %v3087 = vpack.c.bf16 %v3015, %v3013
      %v3088 = vpack.c.bf16 %v3020, %v3018
      %v3089 = vpack.c.bf16 %v3025, %v3023
      %v3090 = vpack.c.bf16 %v3030, %v3028
      %v3091 = vpack.c.bf16 %v3035, %v3033
      %v3092 = vpack.c.bf16 %v3040, %v3038
      %v3093 = vpack.c.bf16 %v3045, %v3043
      %v3094 = vld [vmem:[%s7] sm:$0xf]
      %v3095 = vld [vmem:[%s7 + $0x4] sm:$0xf]
      %v3096 = vld [vmem:[%s7 + $0x8] sm:$0xf]
      %v3097 = vld [vmem:[%s7 + $0xc] sm:$0xf]
      %v3098 = vld [vmem:[%s7 + $0x10] sm:$0xf]
      %v3099 = vld [vmem:[%s7 + $0x14] sm:$0xf]
      %v3100 = vld [vmem:[%s7 + $0x18] sm:$0xf]
      %v3101 = vld [vmem:[%s7 + $0x1c] sm:$0xf]
      %v3102 = vld [vmem:[%s7 + $0x20] sm:$0xf]
      %v3103 = vld [vmem:[%s7 + $0x24] sm:$0xf]
      %v3104 = vld [vmem:[%s7 + $0x28] sm:$0xf]
      %v3105 = vld [vmem:[%s7 + $0x2c] sm:$0xf]
      %v3106 = vld [vmem:[%s7 + $0x30] sm:$0xf]
      %v3107 = vld [vmem:[%s7 + $0x34] sm:$0xf]
      %v3108 = vld [vmem:[%s7 + $0x38] sm:$0xf]
      %v3109 = vld [vmem:[%s7 + $0x3c] sm:$0xf]
      %v3126 = vunpack.c.l.b16 %v3094
      %v3127 = vunpack.c.l.b16 %v3095
      %v3128 = vunpack.c.l.b16 %v3096
      %v3129 = vunpack.c.l.b16 %v3097
      %v3130 = vunpack.c.l.b16 %v3098
      %v3131 = vunpack.c.l.b16 %v3099
      %v3132 = vunpack.c.l.b16 %v3100
      %v3133 = vunpack.c.l.b16 %v3101
      %v3134 = vunpack.c.l.b16 %v3102
      %v3135 = vunpack.c.l.b16 %v3103
      %v3136 = vunpack.c.l.b16 %v3104
      %v3137 = vunpack.c.l.b16 %v3105
      %v3138 = vunpack.c.l.b16 %v3106
      %v3139 = vunpack.c.l.b16 %v3107
      %v3140 = vunpack.c.l.b16 %v3108
      %v3141 = vunpack.c.l.b16 %v3109
      %v3142 = vpack.c.b16 %v3127, %v3126
      %v3143 = vpack.c.b16 %v3129, %v3128
      %v3144 = vpack.c.b16 %v3131, %v3130
      %v3145 = vpack.c.b16 %v3133, %v3132
      %v3146 = vpack.c.b16 %v3135, %v3134
      %v3147 = vpack.c.b16 %v3137, %v3136
      %v3148 = vpack.c.b16 %v3139, %v3138
      %v3149 = vpack.c.b16 %v3141, %v3140
      %3158 = vmatprep.subr.bf16.mxu0 0
      %3159 = vmatpush1.bf16.msra.mxu0 %v3142
      %3160 = vmatprep.subr.bf16.mxu0 0
      %3161 = vmatpush1.bf16.msra.mxu0 %v3143
      %3162 = vmatprep.subr.bf16.mxu0 0
      %3163 = vmatpush1.bf16.msra.mxu0 %v3144
      %3164 = vmatprep.subr.bf16.mxu0 0
      %3165 = vmatpush1.bf16.msra.mxu0 %v3145
      %3166 = vmatprep.subr.bf16.mxu0 0
      %3167 = vmatpush1.bf16.msra.mxu0 %v3146
      %3168 = vmatprep.subr.bf16.mxu0 0
      %3169 = vmatpush1.bf16.msra.mxu0 %v3147
      %3170 = vmatprep.subr.bf16.mxu0 0
      %3171 = vmatpush1.bf16.msra.mxu0 %v3148
      %3172 = vmatprep.subr.bf16.mxu0 0
      %3173 = vmatpush1.bf16.msra.mxu0 %v3149
      %3174 = vmatprep.subr.bf16.mxu0 0
      %3175 = vmatpush1.bf16.msra.mxu0 0
      %3176 = vmatprep.subr.bf16.mxu0 0
      %3177 = vmatpush1.bf16.msra.mxu0 0
      %3178 = vmatprep.subr.bf16.mxu0 0
      %3179 = vmatpush1.bf16.msra.mxu0 0
      %3180 = vmatprep.subr.bf16.mxu0 0
      %3181 = vmatpush1.bf16.msra.mxu0 0
      %3182 = vmatprep.subr.bf16.mxu0 0
      %3183 = vmatpush1.bf16.msra.mxu0 0
      %3184 = vmatprep.subr.bf16.mxu0 0
      %3185 = vmatpush1.bf16.msra.mxu0 0
      %3186 = vmatprep.subr.bf16.mxu0 0
      %3187 = vmatpush1.bf16.msra.mxu0 0
      %3188 = vmatprep.subr.bf16.mxu0 0
      %3189 = vmatpush1.bf16.msra.mxu0 0
      %3190 = vmatprep.mubr.bf16.mxu0 0
      %3191 = vmatmul.mubr.bf16.gmra.mrb[0].mxu0 %v3078
      %v3192 = vpop.f32.mrb[0].mxu0
      %v3193 = vadd.f32 0.0, %v3192
      %v3194 = vpop.f32.mrb[0].mxu0
      %v3195 = vpop.f32.mrb[0].mxu0
      %v3196 = vadd.f32 0.0, %v3195
      %v3197 = vpop.f32.mrb[0].mxu0
      %3198 = vmatprep.mubr.bf16.mxu0 0
      %3199 = vmatmul.mubr.bf16.gmra.mrb[0].mxu0 %v3079
      %v3200 = vpop.f32.mrb[0].mxu0
      %v3201 = vadd.f32 0.0, %v3200
      %v3202 = vpop.f32.mrb[0].mxu0
      %v3203 = vpop.f32.mrb[0].mxu0
      %v3204 = vadd.f32 0.0, %v3203
      %v3205 = vpop.f32.mrb[0].mxu0
      %3206 = vmatprep.mubr.bf16.mxu0 0
      %3207 = vmatmul.mubr.bf16.gmra.mrb[0].mxu0 %v3080
      %v3208 = vpop.f32.mrb[0].mxu0
      %v3209 = vadd.f32 0.0, %v3208
      %v3210 = vpop.f32.mrb[0].mxu0
      %v3211 = vpop.f32.mrb[0].mxu0
      %v3212 = vadd.f32 0.0, %v3211
      %v3213 = vpop.f32.mrb[0].mxu0
      %3214 = vmatprep.mubr.bf16.mxu0 0
      %3215 = vmatmul.mubr.bf16.gmra.mrb[0].mxu0 %v3081
      %v3216 = vpop.f32.mrb[0].mxu0
      %v3217 = vadd.f32 0.0, %v3216
      %v3218 = vpop.f32.mrb[0].mxu0
      %v3219 = vpop.f32.mrb[0].mxu0
      %v3220 = vadd.f32 0.0, %v3219
      %v3221 = vpop.f32.mrb[0].mxu0
      %3222 = vmatprep.mubr.bf16.mxu0 0
      %3223 = vmatmul.mubr.bf16.gmra.mrb[0].mxu0 %v3082
      %v3224 = vpop.f32.mrb[0].mxu0
      %v3225 = vadd.f32 0.0, %v3224
      %v3226 = vpop.f32.mrb[0].mxu0
      %v3227 = vpop.f32.mrb[0].mxu0
      %v3228 = vadd.f32 0.0, %v3227
      %v3229 = vpop.f32.mrb[0].mxu0
      %3230 = vmatprep.mubr.bf16.mxu0 0
      %3231 = vmatmul.mubr.bf16.gmra.mrb[0].mxu0 %v3083
      %v3232 = vpop.f32.mrb[0].mxu0
      %v3233 = vadd.f32 0.0, %v3232
      %v3234 = vpop.f32.mrb[0].mxu0
      %v3235 = vpop.f32.mrb[0].mxu0
      %v3236 = vadd.f32 0.0, %v3235
      %v3237 = vpop.f32.mrb[0].mxu0
      %3238 = vmatprep.mubr.bf16.mxu0 0
      %3239 = vmatmul.mubr.bf16.gmra.mrb[0].mxu0 %v3084
      %v3240 = vpop.f32.mrb[0].mxu0
      %v3241 = vadd.f32 0.0, %v3240
      %v3242 = vpop.f32.mrb[0].mxu0
      %v3243 = vpop.f32.mrb[0].mxu0
      %v3244 = vadd.f32 0.0, %v3243
      %v3245 = vpop.f32.mrb[0].mxu0
      %3246 = vmatprep.mubr.bf16.mxu0 0
      %3247 = vmatmul.mubr.bf16.gmra.mrb[0].mxu0 %v3085
      %v3248 = vpop.f32.mrb[0].mxu0
      %v3249 = vadd.f32 0.0, %v3248
      %v3250 = vpop.f32.mrb[0].mxu0
      %v3251 = vpop.f32.mrb[0].mxu0
      %v3252 = vadd.f32 0.0, %v3251
      %v3253 = vpop.f32.mrb[0].mxu0
      %3254 = vmatprep.mubr.bf16.mxu0 0
      %3255 = vmatmul.mubr.bf16.gmra.mrb[0].mxu0 %v3086
      %v3256 = vpop.f32.mrb[0].mxu0
      %v3257 = vadd.f32 0.0, %v3256
      %v3258 = vpop.f32.mrb[0].mxu0
      %v3259 = vpop.f32.mrb[0].mxu0
      %v3260 = vadd.f32 0.0, %v3259
      %v3261 = vpop.f32.mrb[0].mxu0
      %3262 = vmatprep.mubr.bf16.mxu0 0
      %3263 = vmatmul.mubr.bf16.gmra.mrb[0].mxu0 %v3087
      %v3264 = vpop.f32.mrb[0].mxu0
      %v3265 = vadd.f32 0.0, %v3264
      %v3266 = vpop.f32.mrb[0].mxu0
      %v3267 = vpop.f32.mrb[0].mxu0
      %v3268 = vadd.f32 0.0, %v3267
      %v3269 = vpop.f32.mrb[0].mxu0
      %3270 = vmatprep.mubr.bf16.mxu0 0
      %3271 = vmatmul.mubr.bf16.gmra.mrb[0].mxu0 %v3088
      %v3272 = vpop.f32.mrb[0].mxu0
      %v3273 = vadd.f32 0.0, %v3272
      %v3274 = vpop.f32.mrb[0].mxu0
      %v3275 = vpop.f32.mrb[0].mxu0
      %v3276 = vadd.f32 0.0, %v3275
      %v3277 = vpop.f32.mrb[0].mxu0
      %3278 = vmatprep.mubr.bf16.mxu0 0
      %3279 = vmatmul.mubr.bf16.gmra.mrb[0].mxu0 %v3089
      %v3280 = vpop.f32.mrb[0].mxu0
      %v3281 = vadd.f32 0.0, %v3280
      %v3282 = vpop.f32.mrb[0].mxu0
      %v3283 = vpop.f32.mrb[0].mxu0
      %v3284 = vadd.f32 0.0, %v3283
      %v3285 = vpop.f32.mrb[0].mxu0
      %3286 = vmatprep.mubr.bf16.mxu0 0
      %3287 = vmatmul.mubr.bf16.gmra.mrb[0].mxu0 %v3090
      %v3288 = vpop.f32.mrb[0].mxu0
      %v3289 = vadd.f32 0.0, %v3288
      %v3290 = vpop.f32.mrb[0].mxu0
      %v3291 = vpop.f32.mrb[0].mxu0
      %v3292 = vadd.f32 0.0, %v3291
      %v3293 = vpop.f32.mrb[0].mxu0
      %3294 = vmatprep.mubr.bf16.mxu0 0
      %3295 = vmatmul.mubr.bf16.gmra.mrb[0].mxu0 %v3091
      %v3296 = vpop.f32.mrb[0].mxu0
      %v3297 = vadd.f32 0.0, %v3296
      %v3298 = vpop.f32.mrb[0].mxu0
      %v3299 = vpop.f32.mrb[0].mxu0
      %v3300 = vadd.f32 0.0, %v3299
      %v3301 = vpop.f32.mrb[0].mxu0
      %3302 = vmatprep.mubr.bf16.mxu0 0
      %3303 = vmatmul.mubr.bf16.gmra.mrb[0].mxu0 %v3092
      %v3304 = vpop.f32.mrb[0].mxu0
      %v3305 = vadd.f32 0.0, %v3304
      %v3306 = vpop.f32.mrb[0].mxu0
      %v3307 = vpop.f32.mrb[0].mxu0
      %v3308 = vadd.f32 0.0, %v3307
      %v3309 = vpop.f32.mrb[0].mxu0
      %3310 = vmatprep.mubr.bf16.mxu0 0
      %3311 = vmatmul.mubr.bf16.gmra.mrb[0].mxu0 %v3093
      %v3312 = vpop.f32.mrb[0].mxu0
      %v3313 = vadd.f32 0.0, %v3312
      %v3314 = vpop.f32.mrb[0].mxu0
      %v3315 = vpop.f32.mrb[0].mxu0
      %v3316 = vadd.f32 0.0, %v3315
      %v3317 = vpop.f32.mrb[0].mxu0
      %3318 = vdwg.mxu0
      %v3319 = vld [vmem:[%s8] sm:$0x1]
      %v3321 = vlaneseq
      %v3322 = vshrl.u32 %v3321, 7
      %v3323 = vsub.s32 0, %v3322
      %v3324 = vrot.slane %v3319, %v3323
      %v3326 = vmul.f32 %v3193, %v3324
      %v3327 = vmul.f32 %v3196, %v3324
      %v3328 = vmul.f32 %v3201, %v3324
      %v3329 = vmul.f32 %v3204, %v3324
      %v3330 = vmul.f32 %v3209, %v3324
      %v3331 = vmul.f32 %v3212, %v3324
      %v3332 = vmul.f32 %v3217, %v3324
      %v3333 = vmul.f32 %v3220, %v3324
      %v3334 = vmul.f32 %v3225, %v3324
      %v3335 = vmul.f32 %v3228, %v3324
      %v3336 = vmul.f32 %v3233, %v3324
      %v3337 = vmul.f32 %v3236, %v3324
      %v3338 = vmul.f32 %v3241, %v3324
      %v3339 = vmul.f32 %v3244, %v3324
      %v3340 = vmul.f32 %v3249, %v3324
      %v3341 = vmul.f32 %v3252, %v3324
      %v3342 = vmul.f32 %v3257, %v3324
      %v3343 = vmul.f32 %v3260, %v3324
      %v3344 = vmul.f32 %v3265, %v3324
      %v3345 = vmul.f32 %v3268, %v3324
      %v3346 = vmul.f32 %v3273, %v3324
      %v3347 = vmul.f32 %v3276, %v3324
      %v3348 = vmul.f32 %v3281, %v3324
      %v3349 = vmul.f32 %v3284, %v3324
      %v3350 = vmul.f32 %v3289, %v3324
      %v3351 = vmul.f32 %v3292, %v3324
      %v3352 = vmul.f32 %v3297, %v3324
      %v3353 = vmul.f32 %v3300, %v3324
      %v3354 = vmul.f32 %v3305, %v3324
      %v3355 = vmul.f32 %v3308, %v3324
      %v3356 = vmul.f32 %v3313, %v3324
      %v3357 = vmul.f32 %v3316, %v3324
      %v3358 = vld [vmem:[%s9] sm:$0x1]
      %v3360 = vlaneseq
      %v3361 = vshrl.u32 %v3360, 7
      %v3362 = vsub.s32 0, %v3361
      %v3363 = vrot.slane %v3358, %v3362
      %v3365 = vadd.f32 %v3326, %v3363
      %v3366 = vadd.f32 %v3327, %v3363
      %v3367 = vadd.f32 %v3328, %v3363
      %v3368 = vadd.f32 %v3329, %v3363
      %v3369 = vadd.f32 %v3330, %v3363
      %v3370 = vadd.f32 %v3331, %v3363
      %v3371 = vadd.f32 %v3332, %v3363
      %v3372 = vadd.f32 %v3333, %v3363
      %v3373 = vadd.f32 %v3334, %v3363
      %v3374 = vadd.f32 %v3335, %v3363
      %v3375 = vadd.f32 %v3336, %v3363
      %v3376 = vadd.f32 %v3337, %v3363
      %v3377 = vadd.f32 %v3338, %v3363
      %v3378 = vadd.f32 %v3339, %v3363
      %v3379 = vadd.f32 %v3340, %v3363
      %v3380 = vadd.f32 %v3341, %v3363
      %v3381 = vadd.f32 %v3342, %v3363
      %v3382 = vadd.f32 %v3343, %v3363
      %v3383 = vadd.f32 %v3344, %v3363
      %v3384 = vadd.f32 %v3345, %v3363
      %v3385 = vadd.f32 %v3346, %v3363
      %v3386 = vadd.f32 %v3347, %v3363
      %v3387 = vadd.f32 %v3348, %v3363
      %v3388 = vadd.f32 %v3349, %v3363
      %v3389 = vadd.f32 %v3350, %v3363
      %v3390 = vadd.f32 %v3351, %v3363
      %v3391 = vadd.f32 %v3352, %v3363
      %v3392 = vadd.f32 %v3353, %v3363
      %v3393 = vadd.f32 %v3354, %v3363
      %v3394 = vadd.f32 %v3355, %v3363
      %v3395 = vadd.f32 %v3356, %v3363
      %v3396 = vadd.f32 %v3357, %v3363
      %v3397 = vadd.f32 %v3365, %v433
      %v3398 = vadd.f32 %v3366, %v434
      %v3399 = vadd.f32 %v3367, %v435
      %v3400 = vadd.f32 %v3368, %v436
      %v3401 = vadd.f32 %v3369, %v437
      %v3402 = vadd.f32 %v3370, %v438
      %v3403 = vadd.f32 %v3371, %v439
      %v3404 = vadd.f32 %v3372, %v440
      %v3405 = vadd.f32 %v3373, %v441
      %v3406 = vadd.f32 %v3374, %v442
      %v3407 = vadd.f32 %v3375, %v443
      %v3408 = vadd.f32 %v3376, %v444
      %v3409 = vadd.f32 %v3377, %v445
      %v3410 = vadd.f32 %v3378, %v446
      %v3411 = vadd.f32 %v3379, %v447
      %v3412 = vadd.f32 %v3380, %v448
      %v3413 = vadd.f32 %v3381, %v449
      %v3414 = vadd.f32 %v3382, %v450
      %v3415 = vadd.f32 %v3383, %v451
      %v3416 = vadd.f32 %v3384, %v452
      %v3417 = vadd.f32 %v3385, %v453
      %v3418 = vadd.f32 %v3386, %v454
      %v3419 = vadd.f32 %v3387, %v455
      %v3420 = vadd.f32 %v3388, %v456
      %v3421 = vadd.f32 %v3389, %v457
      %v3422 = vadd.f32 %v3390, %v458
      %v3423 = vadd.f32 %v3391, %v459
      %v3424 = vadd.f32 %v3392, %v460
      %v3425 = vadd.f32 %v3393, %v461
      %v3426 = vadd.f32 %v3394, %v462
      %v3427 = vadd.f32 %v3395, %v463
      %v3428 = vadd.f32 %v3396, %v464
      %3429 = vst.msk [vmem:[%s359] sm:$0xff] %vm482, %v3397
      %3430 = vst.msk [vmem:[%s359 + $0x8] sm:$0xff] %vm482, %v3398
      %3431 = vst.msk [vmem:[%s359 + $0x10] sm:$0xff] %vm482, %v3399
      %3432 = vst.msk [vmem:[%s359 + $0x18] sm:$0xff] %vm482, %v3400
      %3433 = vst.msk [vmem:[%s359 + $0x20] sm:$0xff] %vm482, %v3401
      %3434 = vst.msk [vmem:[%s359 + $0x28] sm:$0xff] %vm482, %v3402
      %3435 = vst.msk [vmem:[%s359 + $0x30] sm:$0xff] %vm482, %v3403
      %3436 = vst.msk [vmem:[%s359 + $0x38] sm:$0xff] %vm482, %v3404
      %3437 = vst.msk [vmem:[%s359 + $0x40] sm:$0xff] %vm482, %v3405
      %3438 = vst.msk [vmem:[%s359 + $0x48] sm:$0xff] %vm482, %v3406
      %3439 = vst.msk [vmem:[%s359 + $0x50] sm:$0xff] %vm482, %v3407
      %3440 = vst.msk [vmem:[%s359 + $0x58] sm:$0xff] %vm482, %v3408
      %3441 = vst.msk [vmem:[%s359 + $0x60] sm:$0xff] %vm482, %v3409
      %3442 = vst.msk [vmem:[%s359 + $0x68] sm:$0xff] %vm482, %v3410
      %3443 = vst.msk [vmem:[%s359 + $0x70] sm:$0xff] %vm482, %v3411
      %3444 = vst.msk [vmem:[%s359 + $0x78] sm:$0xff] %vm482, %v3412
      %3445 = vst.msk [vmem:[%s359 + $0x80] sm:$0xff] %vm482, %v3413
      %3446 = vst.msk [vmem:[%s359 + $0x88] sm:$0xff] %vm482, %v3414
      %3447 = vst.msk [vmem:[%s359 + $0x90] sm:$0xff] %vm482, %v3415
      %3448 = vst.msk [vmem:[%s359 + $0x98] sm:$0xff] %vm482, %v3416
      %3449 = vst.msk [vmem:[%s359 + $0xa0] sm:$0xff] %vm482, %v3417
      %3450 = vst.msk [vmem:[%s359 + $0xa8] sm:$0xff] %vm482, %v3418
      %3451 = vst.msk [vmem:[%s359 + $0xb0] sm:$0xff] %vm482, %v3419
      %3452 = vst.msk [vmem:[%s359 + $0xb8] sm:$0xff] %vm482, %v3420
      %3453 = vst.msk [vmem:[%s359 + $0xc0] sm:$0xff] %vm482, %v3421
      %3454 = vst.msk [vmem:[%s359 + $0xc8] sm:$0xff] %vm482, %v3422
      %3455 = vst.msk [vmem:[%s359 + $0xd0] sm:$0xff] %vm482, %v3423
      %3456 = vst.msk [vmem:[%s359 + $0xd8] sm:$0xff] %vm482, %v3424
      %3457 = vst.msk [vmem:[%s359 + $0xe0] sm:$0xff] %vm482, %v3425
      %3458 = vst.msk [vmem:[%s359 + $0xe8] sm:$0xff] %vm482, %v3426
      %3459 = vst.msk [vmem:[%s359 + $0xf0] sm:$0xff] %vm482, %v3427
      %3460 = vst.msk [vmem:[%s359 + $0xf8] sm:$0xff] %vm482, %v3428
      %p3461 = scmp.lt.s32.totalorder %s21, 1
      %s3462 = scalar_select %p3461, %s21, 1
      %s3463 = smul.addr %s3462, 32
      %s3464 = smul.addr %s3463, 8
      %s3465 = scalar_lea.vmem %s10, %s3464
      // Predicated region
      $region61: #{tpu_custom_call.1} parent=59 // pred_check
        %p3466 = pneg %p254
      $region62: #{tpu_custom_call.1} parent=59 // pred_check_branch
        %3468 = sbr.rel (%p3466) target = $region64
      $region63: #{tpu_custom_call.1} parent=59 // pred_region
        _
      $region64: #{tpu_custom_call.1} parent=59 // pred_fallthru
        _
    $region60: #{tpu_custom_call.1} parent=5 // pred_fallthru
      _
    %p3469 = scmp.le.s32.totalorder 2, %s16
    // Predicated region
    $region65: #{tpu_custom_call.1} parent=5 // pred_check
      %p3470 = pneg %p3469
    $region66: #{tpu_custom_call.1} parent=5 // pred_check_branch
      %3472 = sbr.rel (%p3470) target = $region68
    $region67: #{tpu_custom_call.1} parent=5 // pred_region
      %s3473 = ssub.s32 %s16, 2
      // Predicated region
      $region69: #{tpu_custom_call.1} parent=67 // pred_check
        %p3474 = pneg %p260
      $region70: #{tpu_custom_call.1} parent=67 // pred_check_branch
        %3476 = sbr.rel (%p3474) target = $region72
      $region71: #{tpu_custom_call.1} parent=67 // pred_region
        %p3477 = scmp.lt.s32.totalorder %s22, 1
        %s3478 = scalar_select %p3477, %s22, 1
        %s3479 = smul.addr %s3478, 32
        %s3480 = smul.addr %s3479, 8
        %s3481 = scalar_lea.vmem %s10, %s3480
      $region72: #{tpu_custom_call.1} parent=67 // pred_fallthru
        _
    $region68: #{tpu_custom_call.1} parent=5 // pred_fallthru
      _
  $region6: #{tpu_custom_call.1} parent=0 // loop_footer
    %s20 = sadd.s32 1, %s16
  $region7: #{tpu_custom_call.1} parent=0 // loop_footer_branch
    %15 = sbr.rel target = $region3
  $region8: #{tpu_custom_call.1} parent=0 // loop_exit
    _

</llo_original>
